<compile_context>
chip_gen: v7x
topology: tpu7x:2x2x1
jax: 0.10.0
libtpu: 0.0.40
codegen_flags: <defaults>
</compile_context>

<pallas_src>
import functools

import numpy as np

import jax
import jax.numpy as jnp
from jax.experimental import pallas as pl
from jax.experimental.pallas import tpu as pltpu


# ------------------------------ helpers ------------------------------------ #

def _round_up(x, m):
    return (x + m - 1) // m * m


def _tile_plan(batch):
    """Pick the per-grid-step batch tile (tb) and the padded batch size."""
    if batch <= 8:
        return batch, batch
    tb = 32 if batch >= 32 else 8
    return tb, _round_up(batch, tb)


# ---------------------------- Pallas kernel --------------------------------- #

def _trash_kernel(tb, x_ref, w1b_ref, b1b_ref, w2b_ref, b2b_ref,
                  w1r_ref, b1_ref, w2f_ref, b2_ref, w3f_ref, b3_ref,
                  o_ref, p1_ref):
    """Fused LeNet forward for `tb` images.

    Layouts (per image, row stride 8 everywhere):
      x_ref : (tb*8, 384)  row = img*8 + (y>>2),  lane = (y&3)*96 + x*3 + c
      p1    : (tb*8, 168)  row = img*8 + (y'>>1), lane = (y'&1)*84 + x'*6 + c   (pooled conv1)
      p2    : (tb*8-2, 80) row = img*8 + y'',     lane = x''*16 + c             (pooled conv2)
    """
    f32 = jnp.float32
    l1 = tb * 8 - 1          # conv1/pool1 rows computed
    l2 = tb * 8 - 2          # conv2/pool2 rows computed

    # ---- conv1 + ReLU + 2x2/2 max-pool: 4 pool parities x 2 row shifts ----
    best1 = None
    for ab in range(4):
        acc = None
        for t in range(2):
            xs = x_ref[pl.ds(t, l1), :]                               # (l1, 384)
            z = jnp.dot(xs, w1b_ref[ab * 2 + t],
                        preferred_element_type=f32)                   # (l1, 168)
            acc = z if acc is None else acc + z
        best1 = acc if best1 is None else jnp.maximum(best1, acc)
    p1 = jnp.maximum(best1 + b1b_ref[...], 0.0)                       # bias+ReLU after max
    p1_ref[pl.ds(0, l1), :] = p1
    p1_ref[pl.ds(l1, 1), :] = jnp.zeros((1, 168), f32)                # keep junk row finite

    # ---- conv2 + ReLU + 2x2/2 max-pool: 4 pool parities x 3 row shifts ----
    best2 = None
    for ab in range(4):
        acc = None
        for t in range(3):
            xs = p1_ref[pl.ds(t, l2), :]                              # (l2, 168)
            z = jnp.dot(xs, w2b_ref[ab * 3 + t],
                        preferred_element_type=f32)                   # (l2, 80)
            acc = z if acc is None else acc + z
        best2 = acc if best2 is None else jnp.maximum(best2, acc)
    p2 = jnp.maximum(best2 + b2b_ref[...], 0.0)                       # (l2, 80)

    # ---- flatten (pick the 5 valid rows of each image) + fc1 -------------
    ri = jax.lax.broadcasted_iota(jnp.int32, (tb, l2), 0)
    ci = jax.lax.broadcasted_iota(jnp.int32, (tb, l2), 1)
    rel = ci - ri * 8                                                 # col - 8*row
    h = jnp.zeros((tb, 256), f32)
    for u in range(5):                                                # y'' = u
        sel = (rel == u).astype(f32)                                  # (tb, l2) 0/1
        rows_u = jnp.dot(sel, p2, preferred_element_type=f32)         # (tb, 80)
        h = h + jnp.dot(rows_u, w1r_ref[u], preferred_element_type=f32)
    h = jnp.maximum(h + b1_ref[...], 0.0)                             # (tb, 256)

    # ---- fc2 + fc3 --------------------------------------------------------
    h = jnp.maximum(jnp.dot(h, w2f_ref[...], preferred_element_type=f32)
                    + b2_ref[...], 0.0)                               # (tb, 128)
    o_ref[...] = (jnp.dot(h, w3f_ref[...], preferred_element_type=f32)
                  + b3_ref[...])


# ------------------------------ Parameters ---------------------------------- #

def init_params(key, num_classes=100):
    """Torch-layout parameters (Conv2d / Linear conventions)."""
    ks = jax.random.split(key, 10)
    s = 0.05

    def n(k, shape):
        return s * jax.random.normal(k, shape, jnp.float32)

    return {
        "conv1_w": n(ks[0], (6, 3, 5, 5)),
        "conv1_b": n(ks[1], (6,)),
        "conv2_w": n(ks[2], (16, 6, 5, 5)),
        "conv2_b": n(ks[3], (16,)),
        "fc1_w":   n(ks[4], (256, 16 * 5 * 5)),
        "fc1_b":   n(ks[5], (256,)),
        "fc2_w":   n(ks[6], (128, 256)),
        "fc2_b":   n(ks[7], (128,)),
        "fc3_w":   n(ks[8], (num_classes, 128)),
        "fc3_b":   n(ks[9], (num_classes,)),
    }


def prepare_params(params):
    """One-time offline layout work: build banded conv(+pool) matrices, fold the
    torch flatten order into fc1, transpose the fc weights."""
    w1 = np.asarray(params["conv1_w"], np.float32)      # (6,3,5,5)
    b1 = np.asarray(params["conv1_b"], np.float32)
    w2 = np.asarray(params["conv2_w"], np.float32)      # (16,6,5,5)
    b2 = np.asarray(params["conv2_b"], np.float32)
    f1w = np.asarray(params["fc1_w"], np.float32)       # (256,400)

    # conv1 band: [(a,b) pool parity][t row shift] : (384, 168)
    #   in lane  = ((2p+a+dy)&3)*96 + (2x'+b+dx)*3 + ci
    #   out lane = p*84 + x'*6 + co          (p = y' parity inside the row)
    w1b = np.zeros((2, 2, 2, 384, 168), np.float32)
    for a in range(2):
        for b in range(2):
            for p in range(2):
                for xo in range(14):
                    for co in range(6):
                        ol = p * 84 + xo * 6 + co
                        for dy in range(5):
                            s = 2 * p + a + dy
                            for dx in range(5):
                                xin = 2 * xo + b + dx
                                for ci in range(3):
                                    il = (s & 3) * 96 + xin * 3 + ci
                                    w1b[a, b, s >> 2, il, ol] = w1[co, ci, dy, dx]
    w1b = w1b.reshape(8, 384, 168)                        # index = (a*2+b)*2 + t

    b1b = np.zeros((1, 168), np.float32)
    for p in range(2):
        for xo in range(14):
            for co in range(6):
                b1b[0, p * 84 + xo * 6 + co] = b1[co]

    # conv2 band: [(a,b)][t] : (168, 80)
    #   in lane  = ((a+dy)&1)*84 + (2x''+b+dx)*6 + ci
    #   out lane = x''*16 + co
    w2b = np.zeros((2, 2, 3, 168, 80), np.float32)
    for a in range(2):
        for b in range(2):
            for xo in range(5):
                for co in range(16):
                    ol = xo * 16 + co
                    for dy in range(5):
                        s = a + dy
                        for dx in range(5):
                            xin = 2 * xo + b + dx
                            for ci in range(6):
                                il = (s & 1) * 84 + xin * 6 + ci
                                w2b[a, b, s >> 1, il, ol] = w2[co, ci, dy, dx]
    w2b = w2b.reshape(12, 168, 80)                        # index = (a*2+b)*3 + t

    b2b = np.zeros((1, 80), np.float32)
    for xo in range(5):
        for co in range(16):
            b2b[0, xo * 16 + co] = b2[co]

    # fc1 rearranged per y'' row: W1r[y''][x''*16+co, n] = fc1_w[n, co*25 + y''*5 + x'']
    w1r = f1w.reshape(256, 16, 5, 5).transpose(2, 3, 1, 0).reshape(5, 80, 256)

    return {
        "w1b": jnp.asarray(w1b), "b1b": jnp.asarray(b1b),
        "w2b": jnp.asarray(w2b), "b2b": jnp.asarray(b2b),
        "w1r": jnp.asarray(w1r),
        "b1": jnp.asarray(params["fc1_b"], jnp.float32).reshape(1, -1),
        "w2f": jnp.asarray(params["fc2_w"], jnp.float32).T,
        "b2": jnp.asarray(params["fc2_b"], jnp.float32).reshape(1, -1),
        "w3f": jnp.asarray(params["fc3_w"], jnp.float32).T,
        "b3": jnp.asarray(params["fc3_b"], jnp.float32).reshape(1, -1),
    }


# ------------------------------- Forward ------------------------------------ #

def trash_forward(prep, x_nchw):
    """x_nchw: (B, 3, 32, 32) f32 -> (B, num_classes) f32."""
    B = x_nchw.shape[0]
    num_classes = prep["w3f"].shape[1]
    tb, b_pad = _tile_plan(B)

    # NHWC, then pack 4 consecutive image rows into lanes: (B*8, 384),
    # row = img*8 + (y>>2), lane = (y&3)*96 + x*3 + c.   (cheap: 12 KB / image)
    x = jnp.transpose(x_nchw, (0, 2, 3, 1)).astype(jnp.float32).reshape(B * 8, 384)
    if b_pad != B:
        x = jnp.pad(x, ((0, (b_pad - B) * 8), (0, 0)))

    kernel = functools.partial(_trash_kernel, tb)
    out = pl.pallas_call(
        kernel,
        out_shape=jax.ShapeDtypeStruct((b_pad, num_classes), jnp.float32),
        grid=(b_pad // tb,),
        in_specs=[
            pl.BlockSpec((tb * 8, 384), lambda i: (i, 0)),            # x (batch-tiled)
            pl.BlockSpec((8, 384, 168), lambda i: (0, 0, 0)),          # conv1 band
            pl.BlockSpec((1, 168), lambda i: (0, 0)),                  # conv1 bias band
            pl.BlockSpec((12, 168, 80), lambda i: (0, 0, 0)),          # conv2 band
            pl.BlockSpec((1, 80), lambda i: (0, 0)),                   # conv2 bias band
            pl.BlockSpec((5, 80, 256), lambda i: (0, 0, 0)),           # fc1 (rearranged)
            pl.BlockSpec((1, 256), lambda i: (0, 0)),                  # fc1 bias
            pl.BlockSpec((256, 128), lambda i: (0, 0)),                # fc2
            pl.BlockSpec((1, 128), lambda i: (0, 0)),                  # fc2 bias
            pl.BlockSpec((128, num_classes), lambda i: (0, 0)),        # fc3
            pl.BlockSpec((1, num_classes), lambda i: (0, 0)),          # fc3 bias
        ],
        out_specs=pl.BlockSpec((tb, num_classes), lambda i: (i, 0)),
        scratch_shapes=[pltpu.VMEM((tb * 8, 168), jnp.float32)],       # pooled conv1 act.
        compiler_params=pltpu.CompilerParams(
            dimension_semantics=("parallel",),
            vmem_limit_bytes=48 * 1024 * 1024,
        ),
    )(x, prep["w1b"], prep["b1b"], prep["w2b"], prep["b2b"],
      prep["w1r"], prep["b1"], prep["w2f"], prep["b2"], prep["w3f"], prep["b3"])
    return out[:B]


# ---------------------------- Pure-JAX reference ----------------------------- #

def reference_forward(params, x):
    hi = jax.lax.Precision.HIGHEST

    def conv(v, w, b):
        y = jax.lax.conv(v, w, (1, 1), "VALID", precision=hi)
        return y + b[None, :, None, None]

    def pool(v):
        return jax.lax.reduce_window(v, -jnp.inf, jax.lax.max,
                                     (1, 1, 2, 2), (1, 1, 2, 2), "VALID")

    c1 = jax.nn.relu(conv(x, params["conv1_w"], params["conv1_b"]))
    s2 = pool(c1)
    c3 = jax.nn.relu(conv(s2, params["conv2_w"], params["conv2_b"]))
    s4 = pool(c3)
    flat = s4.reshape(s4.shape[0], -1)
    f5 = jax.nn.relu(jnp.dot(flat, params["fc1_w"].T, precision=hi) + params["fc1_b"])
    f6 = jax.nn.relu(jnp.dot(f5, params["fc2_w"].T, precision=hi) + params["fc2_b"])
    return jnp.dot(f6, params["fc3_w"].T, precision=hi) + params["fc3_b"]


# --------------------------------- Main -------------------------------------- #

if __name__ == "__main__":
    key = jax.random.PRNGKey(0)
    params = init_params(key, num_classes=100)
    prep = prepare_params(params)
    x = jax.random.normal(jax.random.fold_in(key, 1234), (2, 3, 32, 32), jnp.float32)

    fwd = jax.jit(trash_forward)
    out = jax.block_until_ready(fwd(prep, x))

    assert out.shape == (2, 100), out.shape
    assert out.dtype == jnp.float32
    assert bool(jnp.all(jnp.isfinite(out)))

    ref = reference_forward(params, x)
    max_err = float(jnp.max(jnp.abs(out - ref)))
    assert max_err < 1e-2, f"max abs error vs reference: {max_err}"
    print("KERNEL_OK")
</pallas_src>

<mosaic_0001>
module attributes {stable_mosaic.version = 11 : i64} {
  func.func @_trash_kernel(%arg0: i32, %arg1: memref<16x384xf32, #tpu.memory_space<vmem>>, %arg2: memref<8x384x168xf32, #tpu.memory_space<vmem>>, %arg3: memref<1x168xf32, #tpu.memory_space<vmem>>, %arg4: memref<12x168x80xf32, #tpu.memory_space<vmem>>, %arg5: memref<1x80xf32, #tpu.memory_space<vmem>>, %arg6: memref<5x80x256xf32, #tpu.memory_space<vmem>>, %arg7: memref<1x256xf32, #tpu.memory_space<vmem>>, %arg8: memref<256x128xf32, #tpu.memory_space<vmem>>, %arg9: memref<1x128xf32, #tpu.memory_space<vmem>>, %arg10: memref<128x100xf32, #tpu.memory_space<vmem>>, %arg11: memref<1x100xf32, #tpu.memory_space<vmem>>, %arg12: memref<2x100xf32, #tpu.memory_space<vmem>>, %arg13: memref<16x168xf32, #tpu.memory_space<vmem>>) attributes {dimension_semantics = [#tpu.dimension_semantics<parallel>], iteration_bounds = array<i64: 1>, scalar_prefetch = 0 : i64, scratch_operands = 1 : i64, tpu.core_type = #tpu.core_type<tc>, window_params = [{transform_indices = @transform_0, window_bounds = array<i64: 16, 384>}, {pipeline_mode = #tpu.pipeline_mode<synchronous>, transform_indices = @transform_1, window_bounds = array<i64: 8, 384, 168>}, {pipeline_mode = #tpu.pipeline_mode<synchronous>, transform_indices = @transform_2, window_bounds = array<i64: 1, 168>}, {pipeline_mode = #tpu.pipeline_mode<synchronous>, transform_indices = @transform_3, window_bounds = array<i64: 12, 168, 80>}, {pipeline_mode = #tpu.pipeline_mode<synchronous>, transform_indices = @transform_4, window_bounds = array<i64: 1, 80>}, {pipeline_mode = #tpu.pipeline_mode<synchronous>, transform_indices = @transform_5, window_bounds = array<i64: 5, 80, 256>}, {pipeline_mode = #tpu.pipeline_mode<synchronous>, transform_indices = @transform_6, window_bounds = array<i64: 1, 256>}, {pipeline_mode = #tpu.pipeline_mode<synchronous>, transform_indices = @transform_7, window_bounds = array<i64: 256, 128>}, {pipeline_mode = #tpu.pipeline_mode<synchronous>, transform_indices = @transform_8, window_bounds = array<i64: 1, 128>}, {pipeline_mode = #tpu.pipeline_mode<synchronous>, transform_indices = @transform_9, window_bounds = array<i64: 128, 100>}, {pipeline_mode = #tpu.pipeline_mode<synchronous>, transform_indices = @transform_10, window_bounds = array<i64: 1, 100>}, {transform_indices = @transform_11, window_bounds = array<i64: 2, 100>}]} {
    %c0 = arith.constant 0 : index
    %c0_0 = arith.constant 0 : index
    %0 = vector.load %arg1[%c0, %c0_0] : memref<16x384xf32, #tpu.memory_space<vmem>>, vector<15x384xf32>
    %c0_1 = arith.constant 0 : index
    %c0_2 = arith.constant 0 : index
    %c0_3 = arith.constant 0 : index
    %1 = vector.load %arg2[%c0_1, %c0_2, %c0_3] : memref<8x384x168xf32, #tpu.memory_space<vmem>>, vector<1x384x168xf32>
    %2 = vector.shape_cast %1 : vector<1x384x168xf32> to vector<384x168xf32>
    %cst = arith.constant dense<0.000000e+00> : vector<15x168xf32>
    %3 = tpu.matmul %0, %2, %cst {dimension_numbers = #tpu.dot_dimension_numbers<[1], [0], [0], [1], [0, 0, 1, 1], [], []>} : vector<15x384xf32>, vector<384x168xf32>, vector<15x168xf32> -> vector<15x168xf32>
    %c1 = arith.constant 1 : index
    %c0_4 = arith.constant 0 : index
    %4 = vector.load %arg1[%c1, %c0_4] : memref<16x384xf32, #tpu.memory_space<vmem>>, vector<15x384xf32>
    %c1_5 = arith.constant 1 : index
    %c0_6 = arith.constant 0 : index
    %c0_7 = arith.constant 0 : index
    %5 = vector.load %arg2[%c1_5, %c0_6, %c0_7] : memref<8x384x168xf32, #tpu.memory_space<vmem>>, vector<1x384x168xf32>
    %6 = vector.shape_cast %5 : vector<1x384x168xf32> to vector<384x168xf32>
    %cst_8 = arith.constant dense<0.000000e+00> : vector<15x168xf32>
    %7 = tpu.matmul %4, %6, %cst_8 {dimension_numbers = #tpu.dot_dimension_numbers<[1], [0], [0], [1], [0, 0, 1, 1], [], []>} : vector<15x384xf32>, vector<384x168xf32>, vector<15x168xf32> -> vector<15x168xf32>
    %8 = arith.addf %3, %7 : vector<15x168xf32>
    %c0_9 = arith.constant 0 : index
    %c0_10 = arith.constant 0 : index
    %9 = vector.load %arg1[%c0_9, %c0_10] : memref<16x384xf32, #tpu.memory_space<vmem>>, vector<15x384xf32>
    %c2 = arith.constant 2 : index
    %c0_11 = arith.constant 0 : index
    %c0_12 = arith.constant 0 : index
    %10 = vector.load %arg2[%c2, %c0_11, %c0_12] : memref<8x384x168xf32, #tpu.memory_space<vmem>>, vector<1x384x168xf32>
    %11 = vector.shape_cast %10 : vector<1x384x168xf32> to vector<384x168xf32>
    %cst_13 = arith.constant dense<0.000000e+00> : vector<15x168xf32>
    %12 = tpu.matmul %9, %11, %cst_13 {dimension_numbers = #tpu.dot_dimension_numbers<[1], [0], [0], [1], [0, 0, 1, 1], [], []>} : vector<15x384xf32>, vector<384x168xf32>, vector<15x168xf32> -> vector<15x168xf32>
    %c1_14 = arith.constant 1 : index
    %c0_15 = arith.constant 0 : index
    %13 = vector.load %arg1[%c1_14, %c0_15] : memref<16x384xf32, #tpu.memory_space<vmem>>, vector<15x384xf32>
    %c3 = arith.constant 3 : index
    %c0_16 = arith.constant 0 : index
    %c0_17 = arith.constant 0 : index
    %14 = vector.load %arg2[%c3, %c0_16, %c0_17] : memref<8x384x168xf32, #tpu.memory_space<vmem>>, vector<1x384x168xf32>
    %15 = vector.shape_cast %14 : vector<1x384x168xf32> to vector<384x168xf32>
    %cst_18 = arith.constant dense<0.000000e+00> : vector<15x168xf32>
    %16 = tpu.matmul %13, %15, %cst_18 {dimension_numbers = #tpu.dot_dimension_numbers<[1], [0], [0], [1], [0, 0, 1, 1], [], []>} : vector<15x384xf32>, vector<384x168xf32>, vector<15x168xf32> -> vector<15x168xf32>
    %17 = arith.addf %12, %16 : vector<15x168xf32>
    %18 = arith.maximumf %8, %17 : vector<15x168xf32>
    %c0_19 = arith.constant 0 : index
    %c0_20 = arith.constant 0 : index
    %19 = vector.load %arg1[%c0_19, %c0_20] : memref<16x384xf32, #tpu.memory_space<vmem>>, vector<15x384xf32>
    %c4 = arith.constant 4 : index
    %c0_21 = arith.constant 0 : index
    %c0_22 = arith.constant 0 : index
    %20 = vector.load %arg2[%c4, %c0_21, %c0_22] : memref<8x384x168xf32, #tpu.memory_space<vmem>>, vector<1x384x168xf32>
    %21 = vector.shape_cast %20 : vector<1x384x168xf32> to vector<384x168xf32>
    %cst_23 = arith.constant dense<0.000000e+00> : vector<15x168xf32>
    %22 = tpu.matmul %19, %21, %cst_23 {dimension_numbers = #tpu.dot_dimension_numbers<[1], [0], [0], [1], [0, 0, 1, 1], [], []>} : vector<15x384xf32>, vector<384x168xf32>, vector<15x168xf32> -> vector<15x168xf32>
    %c1_24 = arith.constant 1 : index
    %c0_25 = arith.constant 0 : index
    %23 = vector.load %arg1[%c1_24, %c0_25] : memref<16x384xf32, #tpu.memory_space<vmem>>, vector<15x384xf32>
    %c5 = arith.constant 5 : index
    %c0_26 = arith.constant 0 : index
    %c0_27 = arith.constant 0 : index
    %24 = vector.load %arg2[%c5, %c0_26, %c0_27] : memref<8x384x168xf32, #tpu.memory_space<vmem>>, vector<1x384x168xf32>
    %25 = vector.shape_cast %24 : vector<1x384x168xf32> to vector<384x168xf32>
    %cst_28 = arith.constant dense<0.000000e+00> : vector<15x168xf32>
    %26 = tpu.matmul %23, %25, %cst_28 {dimension_numbers = #tpu.dot_dimension_numbers<[1], [0], [0], [1], [0, 0, 1, 1], [], []>} : vector<15x384xf32>, vector<384x168xf32>, vector<15x168xf32> -> vector<15x168xf32>
    %27 = arith.addf %22, %26 : vector<15x168xf32>
    %28 = arith.maximumf %18, %27 : vector<15x168xf32>
    %c0_29 = arith.constant 0 : index
    %c0_30 = arith.constant 0 : index
    %29 = vector.load %arg1[%c0_29, %c0_30] : memref<16x384xf32, #tpu.memory_space<vmem>>, vector<15x384xf32>
    %c6 = arith.constant 6 : index
    %c0_31 = arith.constant 0 : index
    %c0_32 = arith.constant 0 : index
    %30 = vector.load %arg2[%c6, %c0_31, %c0_32] : memref<8x384x168xf32, #tpu.memory_space<vmem>>, vector<1x384x168xf32>
    %31 = vector.shape_cast %30 : vector<1x384x168xf32> to vector<384x168xf32>
    %cst_33 = arith.constant dense<0.000000e+00> : vector<15x168xf32>
    %32 = tpu.matmul %29, %31, %cst_33 {dimension_numbers = #tpu.dot_dimension_numbers<[1], [0], [0], [1], [0, 0, 1, 1], [], []>} : vector<15x384xf32>, vector<384x168xf32>, vector<15x168xf32> -> vector<15x168xf32>
    %c1_34 = arith.constant 1 : index
    %c0_35 = arith.constant 0 : index
    %33 = vector.load %arg1[%c1_34, %c0_35] : memref<16x384xf32, #tpu.memory_space<vmem>>, vector<15x384xf32>
    %c7 = arith.constant 7 : index
    %c0_36 = arith.constant 0 : index
    %c0_37 = arith.constant 0 : index
    %34 = vector.load %arg2[%c7, %c0_36, %c0_37] : memref<8x384x168xf32, #tpu.memory_space<vmem>>, vector<1x384x168xf32>
    %35 = vector.shape_cast %34 : vector<1x384x168xf32> to vector<384x168xf32>
    %cst_38 = arith.constant dense<0.000000e+00> : vector<15x168xf32>
    %36 = tpu.matmul %33, %35, %cst_38 {dimension_numbers = #tpu.dot_dimension_numbers<[1], [0], [0], [1], [0, 0, 1, 1], [], []>} : vector<15x384xf32>, vector<384x168xf32>, vector<15x168xf32> -> vector<15x168xf32>
    %37 = arith.addf %32, %36 : vector<15x168xf32>
    %38 = arith.maximumf %28, %37 : vector<15x168xf32>
    %c0_39 = arith.constant 0 : index
    %c0_40 = arith.constant 0 : index
    %39 = vector.load %arg3[%c0_39, %c0_40] : memref<1x168xf32, #tpu.memory_space<vmem>>, vector<1x168xf32>
    %40 = vector.broadcast %39 : vector<1x168xf32> to vector<15x168xf32>
    %41 = arith.addf %38, %40 : vector<15x168xf32>
    %cst_41 = arith.constant 0.000000e+00 : f32
    %42 = vector.broadcast %cst_41 : f32 to vector<15x168xf32>
    %43 = arith.maximumf %41, %42 : vector<15x168xf32>
    %c0_42 = arith.constant 0 : index
    %c0_43 = arith.constant 0 : index
    %44 = vector.load %arg13[%c0_42, %c0_43] : memref<16x168xf32, #tpu.memory_space<vmem>>, vector<15x168xf32>
    tpu.vector_store %arg13[%c0_42, %c0_43], %43 {strides = array<i32>} : memref<16x168xf32, #tpu.memory_space<vmem>>, vector<15x168xf32>,
    %cst_44 = arith.constant 0.000000e+00 : f32
    %45 = vector.broadcast %cst_44 : f32 to vector<1x168xf32>
    %c15 = arith.constant 15 : index
    %c0_45 = arith.constant 0 : index
    %46 = vector.load %arg13[%c15, %c0_45] : memref<16x168xf32, #tpu.memory_space<vmem>>, vector<1x168xf32>
    tpu.vector_store %arg13[%c15, %c0_45], %45 {strides = array<i32>} : memref<16x168xf32, #tpu.memory_space<vmem>>, vector<1x168xf32>,
    %c0_46 = arith.constant 0 : index
    %c0_47 = arith.constant 0 : index
    %47 = vector.load %arg13[%c0_46, %c0_47] : memref<16x168xf32, #tpu.memory_space<vmem>>, vector<14x168xf32>
    %c0_48 = arith.constant 0 : index
    %c0_49 = arith.constant 0 : index
    %c0_50 = arith.constant 0 : index
    %48 = vector.load %arg4[%c0_48, %c0_49, %c0_50] : memref<12x168x80xf32, #tpu.memory_space<vmem>>, vector<1x168x80xf32>
    %49 = vector.shape_cast %48 : vector<1x168x80xf32> to vector<168x80xf32>
    %cst_51 = arith.constant dense<0.000000e+00> : vector<14x80xf32>
    %50 = tpu.matmul %47, %49, %cst_51 {dimension_numbers = #tpu.dot_dimension_numbers<[1], [0], [0], [1], [0, 0, 1, 1], [], []>} : vector<14x168xf32>, vector<168x80xf32>, vector<14x80xf32> -> vector<14x80xf32>
    %c1_52 = arith.constant 1 : index
    %c0_53 = arith.constant 0 : index
    %51 = vector.load %arg13[%c1_52, %c0_53] : memref<16x168xf32, #tpu.memory_space<vmem>>, vector<14x168xf32>
    %c1_54 = arith.constant 1 : index
    %c0_55 = arith.constant 0 : index
    %c0_56 = arith.constant 0 : index
    %52 = vector.load %arg4[%c1_54, %c0_55, %c0_56] : memref<12x168x80xf32, #tpu.memory_space<vmem>>, vector<1x168x80xf32>
    %53 = vector.shape_cast %52 : vector<1x168x80xf32> to vector<168x80xf32>
    %cst_57 = arith.constant dense<0.000000e+00> : vector<14x80xf32>
    %54 = tpu.matmul %51, %53, %cst_57 {dimension_numbers = #tpu.dot_dimension_numbers<[1], [0], [0], [1], [0, 0, 1, 1], [], []>} : vector<14x168xf32>, vector<168x80xf32>, vector<14x80xf32> -> vector<14x80xf32>
    %55 = arith.addf %50, %54 : vector<14x80xf32>
    %c2_58 = arith.constant 2 : index
    %c0_59 = arith.constant 0 : index
    %56 = vector.load %arg13[%c2_58, %c0_59] : memref<16x168xf32, #tpu.memory_space<vmem>>, vector<14x168xf32>
    %c2_60 = arith.constant 2 : index
    %c0_61 = arith.constant 0 : index
    %c0_62 = arith.constant 0 : index
    %57 = vector.load %arg4[%c2_60, %c0_61, %c0_62] : memref<12x168x80xf32, #tpu.memory_space<vmem>>, vector<1x168x80xf32>
    %58 = vector.shape_cast %57 : vector<1x168x80xf32> to vector<168x80xf32>
    %cst_63 = arith.constant dense<0.000000e+00> : vector<14x80xf32>
    %59 = tpu.matmul %56, %58, %cst_63 {dimension_numbers = #tpu.dot_dimension_numbers<[1], [0], [0], [1], [0, 0, 1, 1], [], []>} : vector<14x168xf32>, vector<168x80xf32>, vector<14x80xf32> -> vector<14x80xf32>
    %60 = arith.addf %55, %59 : vector<14x80xf32>
    %c0_64 = arith.constant 0 : index
    %c0_65 = arith.constant 0 : index
    %61 = vector.load %arg13[%c0_64, %c0_65] : memref<16x168xf32, #tpu.memory_space<vmem>>, vector<14x168xf32>
    %c3_66 = arith.constant 3 : index
    %c0_67 = arith.constant 0 : index
    %c0_68 = arith.constant 0 : index
    %62 = vector.load %arg4[%c3_66, %c0_67, %c0_68] : memref<12x168x80xf32, #tpu.memory_space<vmem>>, vector<1x168x80xf32>
    %63 = vector.shape_cast %62 : vector<1x168x80xf32> to vector<168x80xf32>
    %cst_69 = arith.constant dense<0.000000e+00> : vector<14x80xf32>
    %64 = tpu.matmul %61, %63, %cst_69 {dimension_numbers = #tpu.dot_dimension_numbers<[1], [0], [0], [1], [0, 0, 1, 1], [], []>} : vector<14x168xf32>, vector<168x80xf32>, vector<14x80xf32> -> vector<14x80xf32>
    %c1_70 = arith.constant 1 : index
    %c0_71 = arith.constant 0 : index
    %65 = vector.load %arg13[%c1_70, %c0_71] : memref<16x168xf32, #tpu.memory_space<vmem>>, vector<14x168xf32>
    %c4_72 = arith.constant 4 : index
    %c0_73 = arith.constant 0 : index
    %c0_74 = arith.constant 0 : index
    %66 = vector.load %arg4[%c4_72, %c0_73, %c0_74] : memref<12x168x80xf32, #tpu.memory_space<vmem>>, vector<1x168x80xf32>
    %67 = vector.shape_cast %66 : vector<1x168x80xf32> to vector<168x80xf32>
    %cst_75 = arith.constant dense<0.000000e+00> : vector<14x80xf32>
    %68 = tpu.matmul %65, %67, %cst_75 {dimension_numbers = #tpu.dot_dimension_numbers<[1], [0], [0], [1], [0, 0, 1, 1], [], []>} : vector<14x168xf32>, vector<168x80xf32>, vector<14x80xf32> -> vector<14x80xf32>
    %69 = arith.addf %64, %68 : vector<14x80xf32>
    %c2_76 = arith.constant 2 : index
    %c0_77 = arith.constant 0 : index
    %70 = vector.load %arg13[%c2_76, %c0_77] : memref<16x168xf32, #tpu.memory_space<vmem>>, vector<14x168xf32>
    %c5_78 = arith.constant 5 : index
    %c0_79 = arith.constant 0 : index
    %c0_80 = arith.constant 0 : index
    %71 = vector.load %arg4[%c5_78, %c0_79, %c0_80] : memref<12x168x80xf32, #tpu.memory_space<vmem>>, vector<1x168x80xf32>
    %72 = vector.shape_cast %71 : vector<1x168x80xf32> to vector<168x80xf32>
    %cst_81 = arith.constant dense<0.000000e+00> : vector<14x80xf32>
    %73 = tpu.matmul %70, %72, %cst_81 {dimension_numbers = #tpu.dot_dimension_numbers<[1], [0], [0], [1], [0, 0, 1, 1], [], []>} : vector<14x168xf32>, vector<168x80xf32>, vector<14x80xf32> -> vector<14x80xf32>
    %74 = arith.addf %69, %73 : vector<14x80xf32>
    %75 = arith.maximumf %60, %74 : vector<14x80xf32>
    %c0_82 = arith.constant 0 : index
    %c0_83 = arith.constant 0 : index
    %76 = vector.load %arg13[%c0_82, %c0_83] : memref<16x168xf32, #tpu.memory_space<vmem>>, vector<14x168xf32>
    %c6_84 = arith.constant 6 : index
    %c0_85 = arith.constant 0 : index
    %c0_86 = arith.constant 0 : index
    %77 = vector.load %arg4[%c6_84, %c0_85, %c0_86] : memref<12x168x80xf32, #tpu.memory_space<vmem>>, vector<1x168x80xf32>
    %78 = vector.shape_cast %77 : vector<1x168x80xf32> to vector<168x80xf32>
    %cst_87 = arith.constant dense<0.000000e+00> : vector<14x80xf32>
    %79 = tpu.matmul %76, %78, %cst_87 {dimension_numbers = #tpu.dot_dimension_numbers<[1], [0], [0], [1], [0, 0, 1, 1], [], []>} : vector<14x168xf32>, vector<168x80xf32>, vector<14x80xf32> -> vector<14x80xf32>
    %c1_88 = arith.constant 1 : index
    %c0_89 = arith.constant 0 : index
    %80 = vector.load %arg13[%c1_88, %c0_89] : memref<16x168xf32, #tpu.memory_space<vmem>>, vector<14x168xf32>
    %c7_90 = arith.constant 7 : index
    %c0_91 = arith.constant 0 : index
    %c0_92 = arith.constant 0 : index
    %81 = vector.load %arg4[%c7_90, %c0_91, %c0_92] : memref<12x168x80xf32, #tpu.memory_space<vmem>>, vector<1x168x80xf32>
    %82 = vector.shape_cast %81 : vector<1x168x80xf32> to vector<168x80xf32>
    %cst_93 = arith.constant dense<0.000000e+00> : vector<14x80xf32>
    %83 = tpu.matmul %80, %82, %cst_93 {dimension_numbers = #tpu.dot_dimension_numbers<[1], [0], [0], [1], [0, 0, 1, 1], [], []>} : vector<14x168xf32>, vector<168x80xf32>, vector<14x80xf32> -> vector<14x80xf32>
    %84 = arith.addf %79, %83 : vector<14x80xf32>
    %c2_94 = arith.constant 2 : index
    %c0_95 = arith.constant 0 : index
    %85 = vector.load %arg13[%c2_94, %c0_95] : memref<16x168xf32, #tpu.memory_space<vmem>>, vector<14x168xf32>
    %c8 = arith.constant 8 : index
    %c0_96 = arith.constant 0 : index
    %c0_97 = arith.constant 0 : index
    %86 = vector.load %arg4[%c8, %c0_96, %c0_97] : memref<12x168x80xf32, #tpu.memory_space<vmem>>, vector<1x168x80xf32>
    %87 = vector.shape_cast %86 : vector<1x168x80xf32> to vector<168x80xf32>
    %cst_98 = arith.constant dense<0.000000e+00> : vector<14x80xf32>
    %88 = tpu.matmul %85, %87, %cst_98 {dimension_numbers = #tpu.dot_dimension_numbers<[1], [0], [0], [1], [0, 0, 1, 1], [], []>} : vector<14x168xf32>, vector<168x80xf32>, vector<14x80xf32> -> vector<14x80xf32>
    %89 = arith.addf %84, %88 : vector<14x80xf32>
    %90 = arith.maximumf %75, %89 : vector<14x80xf32>
    %c0_99 = arith.constant 0 : index
    %c0_100 = arith.constant 0 : index
    %91 = vector.load %arg13[%c0_99, %c0_100] : memref<16x168xf32, #tpu.memory_space<vmem>>, vector<14x168xf32>
    %c9 = arith.constant 9 : index
    %c0_101 = arith.constant 0 : index
    %c0_102 = arith.constant 0 : index
    %92 = vector.load %arg4[%c9, %c0_101, %c0_102] : memref<12x168x80xf32, #tpu.memory_space<vmem>>, vector<1x168x80xf32>
    %93 = vector.shape_cast %92 : vector<1x168x80xf32> to vector<168x80xf32>
    %cst_103 = arith.constant dense<0.000000e+00> : vector<14x80xf32>
    %94 = tpu.matmul %91, %93, %cst_103 {dimension_numbers = #tpu.dot_dimension_numbers<[1], [0], [0], [1], [0, 0, 1, 1], [], []>} : vector<14x168xf32>, vector<168x80xf32>, vector<14x80xf32> -> vector<14x80xf32>
    %c1_104 = arith.constant 1 : index
    %c0_105 = arith.constant 0 : index
    %95 = vector.load %arg13[%c1_104, %c0_105] : memref<16x168xf32, #tpu.memory_space<vmem>>, vector<14x168xf32>
    %c10 = arith.constant 10 : index
    %c0_106 = arith.constant 0 : index
    %c0_107 = arith.constant 0 : index
    %96 = vector.load %arg4[%c10, %c0_106, %c0_107] : memref<12x168x80xf32, #tpu.memory_space<vmem>>, vector<1x168x80xf32>
    %97 = vector.shape_cast %96 : vector<1x168x80xf32> to vector<168x80xf32>
    %cst_108 = arith.constant dense<0.000000e+00> : vector<14x80xf32>
    %98 = tpu.matmul %95, %97, %cst_108 {dimension_numbers = #tpu.dot_dimension_numbers<[1], [0], [0], [1], [0, 0, 1, 1], [], []>} : vector<14x168xf32>, vector<168x80xf32>, vector<14x80xf32> -> vector<14x80xf32>
    %99 = arith.addf %94, %98 : vector<14x80xf32>
    %c2_109 = arith.constant 2 : index
    %c0_110 = arith.constant 0 : index
    %100 = vector.load %arg13[%c2_109, %c0_110] : memref<16x168xf32, #tpu.memory_space<vmem>>, vector<14x168xf32>
    %c11 = arith.constant 11 : index
    %c0_111 = arith.constant 0 : index
    %c0_112 = arith.constant 0 : index
    %101 = vector.load %arg4[%c11, %c0_111, %c0_112] : memref<12x168x80xf32, #tpu.memory_space<vmem>>, vector<1x168x80xf32>
    %102 = vector.shape_cast %101 : vector<1x168x80xf32> to vector<168x80xf32>
    %cst_113 = arith.constant dense<0.000000e+00> : vector<14x80xf32>
    %103 = tpu.matmul %100, %102, %cst_113 {dimension_numbers = #tpu.dot_dimension_numbers<[1], [0], [0], [1], [0, 0, 1, 1], [], []>} : vector<14x168xf32>, vector<168x80xf32>, vector<14x80xf32> -> vector<14x80xf32>
    %104 = arith.addf %99, %103 : vector<14x80xf32>
    %105 = arith.maximumf %90, %104 : vector<14x80xf32>
    %c0_114 = arith.constant 0 : index
    %c0_115 = arith.constant 0 : index
    %106 = vector.load %arg5[%c0_114, %c0_115] : memref<1x80xf32, #tpu.memory_space<vmem>>, vector<1x80xf32>
    %107 = vector.broadcast %106 : vector<1x80xf32> to vector<14x80xf32>
    %108 = arith.addf %105, %107 : vector<14x80xf32>
    %cst_116 = arith.constant 0.000000e+00 : f32
    %109 = vector.broadcast %cst_116 : f32 to vector<14x80xf32>
    %110 = arith.maximumf %108, %109 : vector<14x80xf32>
    %111 = tpu.iota {dimensions = array<i32: 0>} : vector<2x14xi32>
    %112 = tpu.iota {dimensions = array<i32: 1>} : vector<2x14xi32>
    %c8_i32 = arith.constant 8 : i32
    %113 = vector.broadcast %c8_i32 : i32 to vector<2x14xi32>
    %114 = arith.muli %111, %113 : vector<2x14xi32>
    %115 = arith.subi %112, %114 : vector<2x14xi32>
    %cst_117 = arith.constant 0.000000e+00 : f32
    %116 = vector.broadcast %cst_117 : f32 to vector<2x256xf32>
    %c0_i32 = arith.constant 0 : i32
    %117 = vector.broadcast %c0_i32 : i32 to vector<2x14xi32>
    %118 = arith.cmpi eq, %115, %117 : vector<2x14xi32>
    %119 = arith.extui %118 : vector<2x14xi1> to vector<2x14xi32>
    %120 = arith.sitofp %119 : vector<2x14xi32> to vector<2x14xf32>
    %cst_118 = arith.constant dense<0.000000e+00> : vector<2x80xf32>
    %121 = tpu.matmul %120, %110, %cst_118 {dimension_numbers = #tpu.dot_dimension_numbers<[1], [0], [0], [1], [0, 0, 1, 1], [], []>} : vector<2x14xf32>, vector<14x80xf32>, vector<2x80xf32> -> vector<2x80xf32>
    %c0_119 = arith.constant 0 : index
    %c0_120 = arith.constant 0 : index
    %c0_121 = arith.constant 0 : index
    %122 = vector.load %arg6[%c0_119, %c0_120, %c0_121] : memref<5x80x256xf32, #tpu.memory_space<vmem>>, vector<1x80x256xf32>
    %123 = vector.shape_cast %122 : vector<1x80x256xf32> to vector<80x256xf32>
    %cst_122 = arith.constant dense<0.000000e+00> : vector<2x256xf32>
    %124 = tpu.matmul %121, %123, %cst_122 {dimension_numbers = #tpu.dot_dimension_numbers<[1], [0], [0], [1], [0, 0, 1, 1], [], []>} : vector<2x80xf32>, vector<80x256xf32>, vector<2x256xf32> -> vector<2x256xf32>
    %125 = arith.addf %116, %124 : vector<2x256xf32>
    %c1_i32 = arith.constant 1 : i32
    %126 = vector.broadcast %c1_i32 : i32 to vector<2x14xi32>
    %127 = arith.cmpi eq, %115, %126 : vector<2x14xi32>
    %128 = arith.extui %127 : vector<2x14xi1> to vector<2x14xi32>
    %129 = arith.sitofp %128 : vector<2x14xi32> to vector<2x14xf32>
    %cst_123 = arith.constant dense<0.000000e+00> : vector<2x80xf32>
    %130 = tpu.matmul %129, %110, %cst_123 {dimension_numbers = #tpu.dot_dimension_numbers<[1], [0], [0], [1], [0, 0, 1, 1], [], []>} : vector<2x14xf32>, vector<14x80xf32>, vector<2x80xf32> -> vector<2x80xf32>
    %c1_124 = arith.constant 1 : index
    %c0_125 = arith.constant 0 : index
    %c0_126 = arith.constant 0 : index
    %131 = vector.load %arg6[%c1_124, %c0_125, %c0_126] : memref<5x80x256xf32, #tpu.memory_space<vmem>>, vector<1x80x256xf32>
    %132 = vector.shape_cast %131 : vector<1x80x256xf32> to vector<80x256xf32>
    %cst_127 = arith.constant dense<0.000000e+00> : vector<2x256xf32>
    %133 = tpu.matmul %130, %132, %cst_127 {dimension_numbers = #tpu.dot_dimension_numbers<[1], [0], [0], [1], [0, 0, 1, 1], [], []>} : vector<2x80xf32>, vector<80x256xf32>, vector<2x256xf32> -> vector<2x256xf32>
    %134 = arith.addf %125, %133 : vector<2x256xf32>
    %c2_i32 = arith.constant 2 : i32
    %135 = vector.broadcast %c2_i32 : i32 to vector<2x14xi32>
    %136 = arith.cmpi eq, %115, %135 : vector<2x14xi32>
    %137 = arith.extui %136 : vector<2x14xi1> to vector<2x14xi32>
    %138 = arith.sitofp %137 : vector<2x14xi32> to vector<2x14xf32>
    %cst_128 = arith.constant dense<0.000000e+00> : vector<2x80xf32>
    %139 = tpu.matmul %138, %110, %cst_128 {dimension_numbers = #tpu.dot_dimension_numbers<[1], [0], [0], [1], [0, 0, 1, 1], [], []>} : vector<2x14xf32>, vector<14x80xf32>, vector<2x80xf32> -> vector<2x80xf32>
    %c2_129 = arith.constant 2 : index
    %c0_130 = arith.constant 0 : index
    %c0_131 = arith.constant 0 : index
    %140 = vector.load %arg6[%c2_129, %c0_130, %c0_131] : memref<5x80x256xf32, #tpu.memory_space<vmem>>, vector<1x80x256xf32>
    %141 = vector.shape_cast %140 : vector<1x80x256xf32> to vector<80x256xf32>
    %cst_132 = arith.constant dense<0.000000e+00> : vector<2x256xf32>
    %142 = tpu.matmul %139, %141, %cst_132 {dimension_numbers = #tpu.dot_dimension_numbers<[1], [0], [0], [1], [0, 0, 1, 1], [], []>} : vector<2x80xf32>, vector<80x256xf32>, vector<2x256xf32> -> vector<2x256xf32>
    %143 = arith.addf %134, %142 : vector<2x256xf32>
    %c3_i32 = arith.constant 3 : i32
    %144 = vector.broadcast %c3_i32 : i32 to vector<2x14xi32>
    %145 = arith.cmpi eq, %115, %144 : vector<2x14xi32>
    %146 = arith.extui %145 : vector<2x14xi1> to vector<2x14xi32>
    %147 = arith.sitofp %146 : vector<2x14xi32> to vector<2x14xf32>
    %cst_133 = arith.constant dense<0.000000e+00> : vector<2x80xf32>
    %148 = tpu.matmul %147, %110, %cst_133 {dimension_numbers = #tpu.dot_dimension_numbers<[1], [0], [0], [1], [0, 0, 1, 1], [], []>} : vector<2x14xf32>, vector<14x80xf32>, vector<2x80xf32> -> vector<2x80xf32>
    %c3_134 = arith.constant 3 : index
    %c0_135 = arith.constant 0 : index
    %c0_136 = arith.constant 0 : index
    %149 = vector.load %arg6[%c3_134, %c0_135, %c0_136] : memref<5x80x256xf32, #tpu.memory_space<vmem>>, vector<1x80x256xf32>
    %150 = vector.shape_cast %149 : vector<1x80x256xf32> to vector<80x256xf32>
    %cst_137 = arith.constant dense<0.000000e+00> : vector<2x256xf32>
    %151 = tpu.matmul %148, %150, %cst_137 {dimension_numbers = #tpu.dot_dimension_numbers<[1], [0], [0], [1], [0, 0, 1, 1], [], []>} : vector<2x80xf32>, vector<80x256xf32>, vector<2x256xf32> -> vector<2x256xf32>
    %152 = arith.addf %143, %151 : vector<2x256xf32>
    %c4_i32 = arith.constant 4 : i32
    %153 = vector.broadcast %c4_i32 : i32 to vector<2x14xi32>
    %154 = arith.cmpi eq, %115, %153 : vector<2x14xi32>
    %155 = arith.extui %154 : vector<2x14xi1> to vector<2x14xi32>
    %156 = arith.sitofp %155 : vector<2x14xi32> to vector<2x14xf32>
    %cst_138 = arith.constant dense<0.000000e+00> : vector<2x80xf32>
    %157 = tpu.matmul %156, %110, %cst_138 {dimension_numbers = #tpu.dot_dimension_numbers<[1], [0], [0], [1], [0, 0, 1, 1], [], []>} : vector<2x14xf32>, vector<14x80xf32>, vector<2x80xf32> -> vector<2x80xf32>
    %c4_139 = arith.constant 4 : index
    %c0_140 = arith.constant 0 : index
    %c0_141 = arith.constant 0 : index
    %158 = vector.load %arg6[%c4_139, %c0_140, %c0_141] : memref<5x80x256xf32, #tpu.memory_space<vmem>>, vector<1x80x256xf32>
    %159 = vector.shape_cast %158 : vector<1x80x256xf32> to vector<80x256xf32>
    %cst_142 = arith.constant dense<0.000000e+00> : vector<2x256xf32>
    %160 = tpu.matmul %157, %159, %cst_142 {dimension_numbers = #tpu.dot_dimension_numbers<[1], [0], [0], [1], [0, 0, 1, 1], [], []>} : vector<2x80xf32>, vector<80x256xf32>, vector<2x256xf32> -> vector<2x256xf32>
    %161 = arith.addf %152, %160 : vector<2x256xf32>
    %c0_143 = arith.constant 0 : index
    %c0_144 = arith.constant 0 : index
    %162 = vector.load %arg7[%c0_143, %c0_144] : memref<1x256xf32, #tpu.memory_space<vmem>>, vector<1x256xf32>
    %163 = vector.broadcast %162 : vector<1x256xf32> to vector<2x256xf32>
    %164 = arith.addf %161, %163 : vector<2x256xf32>
    %cst_145 = arith.constant 0.000000e+00 : f32
    %165 = vector.broadcast %cst_145 : f32 to vector<2x256xf32>
    %166 = arith.maximumf %164, %165 : vector<2x256xf32>
    %c0_146 = arith.constant 0 : index
    %c0_147 = arith.constant 0 : index
    %167 = vector.load %arg8[%c0_146, %c0_147] : memref<256x128xf32, #tpu.memory_space<vmem>>, vector<256x128xf32>
    %cst_148 = arith.constant dense<0.000000e+00> : vector<2x128xf32>
    %168 = tpu.matmul %166, %167, %cst_148 {dimension_numbers = #tpu.dot_dimension_numbers<[1], [0], [0], [1], [0, 0, 1, 1], [], []>} : vector<2x256xf32>, vector<256x128xf32>, vector<2x128xf32> -> vector<2x128xf32>
    %c0_149 = arith.constant 0 : index
    %c0_150 = arith.constant 0 : index
    %169 = vector.load %arg9[%c0_149, %c0_150] : memref<1x128xf32, #tpu.memory_space<vmem>>, vector<1x128xf32>
    %170 = vector.broadcast %169 : vector<1x128xf32> to vector<2x128xf32>
    %171 = arith.addf %168, %170 : vector<2x128xf32>
    %cst_151 = arith.constant 0.000000e+00 : f32
    %172 = vector.broadcast %cst_151 : f32 to vector<2x128xf32>
    %173 = arith.maximumf %171, %172 : vector<2x128xf32>
    %c0_152 = arith.constant 0 : index
    %c0_153 = arith.constant 0 : index
    %174 = vector.load %arg10[%c0_152, %c0_153] : memref<128x100xf32, #tpu.memory_space<vmem>>, vector<128x100xf32>
    %cst_154 = arith.constant dense<0.000000e+00> : vector<2x100xf32>
    %175 = tpu.matmul %173, %174, %cst_154 {dimension_numbers = #tpu.dot_dimension_numbers<[1], [0], [0], [1], [0, 0, 1, 1], [], []>} : vector<2x128xf32>, vector<128x100xf32>, vector<2x100xf32> -> vector<2x100xf32>
    %c0_155 = arith.constant 0 : index
    %c0_156 = arith.constant 0 : index
    %176 = vector.load %arg11[%c0_155, %c0_156] : memref<1x100xf32, #tpu.memory_space<vmem>>, vector<1x100xf32>
    %177 = vector.broadcast %176 : vector<1x100xf32> to vector<2x100xf32>
    %178 = arith.addf %175, %177 : vector<2x100xf32>
    %c0_157 = arith.constant 0 : index
    %c0_158 = arith.constant 0 : index
    %179 = vector.load %arg12[%c0_157, %c0_158] : memref<2x100xf32, #tpu.memory_space<vmem>>, vector<2x100xf32>
    tpu.vector_store %arg12[%c0_157, %c0_158], %178 {strides = array<i32>} : memref<2x100xf32, #tpu.memory_space<vmem>>, vector<2x100xf32>,
    return
  }
  func.func @transform_0(%arg0: i32) -> (i32, i32) {
    %c0_i32 = arith.constant 0 : i32
    %c0_i32_0 = arith.constant 0 : i32
    return %arg0, %c0_i32 : i32, i32
  }
  func.func @transform_1(%arg0: i32) -> (i32, i32, i32) {
    %c0_i32 = arith.constant 0 : i32
    %c0_i32_0 = arith.constant 0 : i32
    %c0_i32_1 = arith.constant 0 : i32
    %c0_i32_2 = arith.constant 0 : i32
    return %c0_i32, %c0_i32_0, %c0_i32_1 : i32, i32, i32
  }
  func.func @transform_2(%arg0: i32) -> (i32, i32) {
    %c0_i32 = arith.constant 0 : i32
    %c0_i32_0 = arith.constant 0 : i32
    %c0_i32_1 = arith.constant 0 : i32
    return %c0_i32, %c0_i32_0 : i32, i32
  }
  func.func @transform_3(%arg0: i32) -> (i32, i32, i32) {
    %c0_i32 = arith.constant 0 : i32
    %c0_i32_0 = arith.constant 0 : i32
    %c0_i32_1 = arith.constant 0 : i32
    %c0_i32_2 = arith.constant 0 : i32
    return %c0_i32, %c0_i32_0, %c0_i32_1 : i32, i32, i32
  }
  func.func @transform_4(%arg0: i32) -> (i32, i32) {
    %c0_i32 = arith.constant 0 : i32
    %c0_i32_0 = arith.constant 0 : i32
    %c0_i32_1 = arith.constant 0 : i32
    return %c0_i32, %c0_i32_0 : i32, i32
  }
  func.func @transform_5(%arg0: i32) -> (i32, i32, i32) {
    %c0_i32 = arith.constant 0 : i32
    %c0_i32_0 = arith.constant 0 : i32
    %c0_i32_1 = arith.constant 0 : i32
    %c0_i32_2 = arith.constant 0 : i32
    return %c0_i32, %c0_i32_0, %c0_i32_1 : i32, i32, i32
  }
  func.func @transform_6(%arg0: i32) -> (i32, i32) {
    %c0_i32 = arith.constant 0 : i32
    %c0_i32_0 = arith.constant 0 : i32
    %c0_i32_1 = arith.constant 0 : i32
    return %c0_i32, %c0_i32_0 : i32, i32
  }
  func.func @transform_7(%arg0: i32) -> (i32, i32) {
    %c0_i32 = arith.constant 0 : i32
    %c0_i32_0 = arith.constant 0 : i32
    %c0_i32_1 = arith.constant 0 : i32
    return %c0_i32, %c0_i32_0 : i32, i32
  }
  func.func @transform_8(%arg0: i32) -> (i32, i32) {
    %c0_i32 = arith.constant 0 : i32
    %c0_i32_0 = arith.constant 0 : i32
    %c0_i32_1 = arith.constant 0 : i32
    return %c0_i32, %c0_i32_0 : i32, i32
  }
  func.func @transform_9(%arg0: i32) -> (i32, i32) {
    %c0_i32 = arith.constant 0 : i32
    %c0_i32_0 = arith.constant 0 : i32
    %c0_i32_1 = arith.constant 0 : i32
    return %c0_i32, %c0_i32_0 : i32, i32
  }
  func.func @transform_10(%arg0: i32) -> (i32, i32) {
    %c0_i32 = arith.constant 0 : i32
    %c0_i32_0 = arith.constant 0 : i32
    %c0_i32_1 = arith.constant 0 : i32
    return %c0_i32, %c0_i32_0 : i32, i32
  }
  func.func @transform_11(%arg0: i32) -> (i32, i32) {
    %c0_i32 = arith.constant 0 : i32
    %c0_i32_0 = arith.constant 0 : i32
    return %arg0, %c0_i32 : i32, i32
  }
}

</mosaic_0001>

<llo_original>
// kernel: trash_forward.1
$region0: #{trash_forward.1}
  #allocation0 [shape = 'u32[]', space=smem, size = 0x4, offset = 0x4, fixed_abs, tag = 'smem constant byte address 0x4 - core index']
  #allocation1 [shape = 'u32[144,128]{1,0:T(1,128)}', space=vmem, size = 0x12000, scoped, tag = 'internal scratch']
  #allocation2 [shape = 'f32[16,168]{1,0:T(8,128)}', space=vmem, size = 0x4000, scoped, tag = 'scratch operand']
  %s0 = inlined_call_operand.vmem [shape: f32[16,384], index: 0, kind: input, shape index: {}]
  %s1 = inlined_call_operand.vmem [shape: f32[8,384,168], index: 1, kind: input, shape index: {}]
  %s2 = inlined_call_operand.vmem [shape: f32[1,168], index: 2, kind: input, shape index: {}]
  %s3 = inlined_call_operand.vmem [shape: f32[12,168,80], index: 3, kind: input, shape index: {}]
  %s4 = inlined_call_operand.vmem [shape: f32[1,80], index: 4, kind: input, shape index: {}]
  %s5 = inlined_call_operand.vmem [shape: f32[5,80,256], index: 5, kind: input, shape index: {}]
  %s6 = inlined_call_operand.vmem [shape: f32[1,256], index: 6, kind: input, shape index: {}]
  %s7 = inlined_call_operand.vmem [shape: f32[256,128], index: 7, kind: input, shape index: {}]
  %s8 = inlined_call_operand.vmem [shape: f32[1,128], index: 8, kind: input, shape index: {}]
  %s9 = inlined_call_operand.vmem [shape: f32[128,100], index: 9, kind: input, shape index: {}]
  %s10 = inlined_call_operand.vmem [shape: f32[1,100], index: 10, kind: input, shape index: {}]
  %s11 = inlined_call_operand.hbm [shape: f32[2,100], index: 11, kind: output, shape index: {}]
  %s12 = sld [smem:[#allocation0]]
  $region54: #{trash_forward.1} parent=0
    _
  %s14 = ssub.s32 1, %s12
  %s15 = scalar_select 0, %s14, %s12
  $region1: #{trash_forward.1} parent=0
    #allocation3 [shape = 'u8[1024]{0}', space=vmem, size = 0x400, scoped, tag = 'output window, operand 0, single buffered']
    #allocation4 [shape = 's32[1]{0}', space=sflag, size = 0x4, scoped, tag = 'scoped memory for trash_forward.1']
    %16 = vsyncpa [#allocation4], 0
    // Predicated region
    $region2: #{trash_forward.1} parent=1 // pred_check
      _
    $region3: #{trash_forward.1} parent=1 // pred_check_branch
      %18 = sbr.rel (0) target = $region5
    $region4: #{trash_forward.1} parent=1 // pred_region
      _
    $region5: #{trash_forward.1} parent=1 // pred_fallthru
      _
    // Predicated region
    $region6: #{trash_forward.1} parent=1 // pred_check
      _
    $region7: #{trash_forward.1} parent=1 // pred_check_branch
      %20 = sbr.rel (0) target = $region9
    $region8: #{trash_forward.1} parent=1 // pred_region
      _
    $region9: #{trash_forward.1} parent=1 // pred_fallthru
      _
    // Predicated region
    $region10: #{trash_forward.1} parent=1 // pred_check
      _
    $region11: #{trash_forward.1} parent=1 // pred_check_branch
      %22 = sbr.rel (0) target = $region13
    $region12: #{trash_forward.1} parent=1 // pred_region
      _
    $region13: #{trash_forward.1} parent=1 // pred_fallthru
      _
    // Predicated region
    $region14: #{trash_forward.1} parent=1 // pred_check
      _
    $region15: #{trash_forward.1} parent=1 // pred_check_branch
      %24 = sbr.rel (0) target = $region17
    $region16: #{trash_forward.1} parent=1 // pred_region
      _
    $region17: #{trash_forward.1} parent=1 // pred_fallthru
      _
    // Predicated region
    $region18: #{trash_forward.1} parent=1 // pred_check
      _
    $region19: #{trash_forward.1} parent=1 // pred_check_branch
      %26 = sbr.rel (0) target = $region21
    $region20: #{trash_forward.1} parent=1 // pred_region
      _
    $region21: #{trash_forward.1} parent=1 // pred_fallthru
      _
    // Predicated region
    $region22: #{trash_forward.1} parent=1 // pred_check
      _
    $region23: #{trash_forward.1} parent=1 // pred_check_branch
      %28 = sbr.rel (0) target = $region25
    $region24: #{trash_forward.1} parent=1 // pred_region
      _
    $region25: #{trash_forward.1} parent=1 // pred_fallthru
      _
    // Predicated region
    $region26: #{trash_forward.1} parent=1 // pred_check
      _
    $region27: #{trash_forward.1} parent=1 // pred_check_branch
      %30 = sbr.rel (0) target = $region29
    $region28: #{trash_forward.1} parent=1 // pred_region
      _
    $region29: #{trash_forward.1} parent=1 // pred_fallthru
      _
    // Predicated region
    $region30: #{trash_forward.1} parent=1 // pred_check
      _
    $region31: #{trash_forward.1} parent=1 // pred_check_branch
      %32 = sbr.rel (0) target = $region33
    $region32: #{trash_forward.1} parent=1 // pred_region
      _
    $region33: #{trash_forward.1} parent=1 // pred_fallthru
      _
    // Predicated region
    $region34: #{trash_forward.1} parent=1 // pred_check
      _
    $region35: #{trash_forward.1} parent=1 // pred_check_branch
      %34 = sbr.rel (0) target = $region37
    $region36: #{trash_forward.1} parent=1 // pred_region
      _
    $region37: #{trash_forward.1} parent=1 // pred_fallthru
      _
    // Predicated region
    $region38: #{trash_forward.1} parent=1 // pred_check
      _
    $region39: #{trash_forward.1} parent=1 // pred_check_branch
      %36 = sbr.rel (0) target = $region41
    $region40: #{trash_forward.1} parent=1 // pred_region
      _
    $region41: #{trash_forward.1} parent=1 // pred_fallthru
      _
    // Predicated region
    $region42: #{trash_forward.1} parent=1 // pred_check
      _
    $region43: #{trash_forward.1} parent=1 // pred_check_branch
      %38 = sbr.rel (0) target = $region45
    $region44: #{trash_forward.1} parent=1 // pred_region
      _
    $region45: #{trash_forward.1} parent=1 // pred_fallthru
      _
    %v39 = vld [vmem:[%s0] sm:$0xff]
    %v40 = vld [vmem:[%s0 + $0x8] sm:$0xff]
    %v41 = vld [vmem:[%s0 + $0x10] sm:$0xff]
    %v42 = vld [vmem:[%s0 + $0x18] sm:$0x7f]
    %v43 = vld [vmem:[%s0 + $0x20] sm:$0x7f]
    %v44 = vld [vmem:[%s0 + $0x28] sm:$0x7f]
    %v45 = vld [vmem:[%s1] sm:$0xff]
    %v46 = vld [vmem:[%s1 + $0x8] sm:$0xff]
    %v47 = vld [vmem:[%s1 + $0x10] sm:$0xff]
    %v48 = vld [vmem:[%s1 + $0x18] sm:$0xff]
    %v49 = vld [vmem:[%s1 + $0x20] sm:$0xff]
    %v50 = vld [vmem:[%s1 + $0x28] sm:$0xff]
    %v51 = vld [vmem:[%s1 + $0x30] sm:$0xff]
    %v52 = vld [vmem:[%s1 + $0x38] sm:$0xff]
    %v53 = vld [vmem:[%s1 + $0x40] sm:$0xff]
    %v54 = vld [vmem:[%s1 + $0x48] sm:$0xff]
    %v55 = vld [vmem:[%s1 + $0x50] sm:$0xff]
    %v56 = vld [vmem:[%s1 + $0x58] sm:$0xff]
    %v57 = vld [vmem:[%s1 + $0x60] sm:$0xff]
    %v58 = vld [vmem:[%s1 + $0x68] sm:$0xff]
    %v59 = vld [vmem:[%s1 + $0x70] sm:$0xff]
    %v60 = vld [vmem:[%s1 + $0x78] sm:$0xff]
    %v61 = vld [vmem:[%s1 + $0x80] sm:$0xff]
    %v62 = vld [vmem:[%s1 + $0x88] sm:$0xff]
    %v63 = vld [vmem:[%s1 + $0x90] sm:$0xff]
    %v64 = vld [vmem:[%s1 + $0x98] sm:$0xff]
    %v65 = vld [vmem:[%s1 + $0xa0] sm:$0xff]
    %v66 = vld [vmem:[%s1 + $0xa8] sm:$0xff]
    %v67 = vld [vmem:[%s1 + $0xb0] sm:$0xff]
    %v68 = vld [vmem:[%s1 + $0xb8] sm:$0xff]
    %v69 = vld [vmem:[%s1 + $0xc0] sm:$0xff]
    %v70 = vld [vmem:[%s1 + $0xc8] sm:$0xff]
    %v71 = vld [vmem:[%s1 + $0xd0] sm:$0xff]
    %v72 = vld [vmem:[%s1 + $0xd8] sm:$0xff]
    %v73 = vld [vmem:[%s1 + $0xe0] sm:$0xff]
    %v74 = vld [vmem:[%s1 + $0xe8] sm:$0xff]
    %v75 = vld [vmem:[%s1 + $0xf0] sm:$0xff]
    %v76 = vld [vmem:[%s1 + $0xf8] sm:$0xff]
    %v77 = vld [vmem:[%s1 + $0x100] sm:$0xff]
    %v78 = vld [vmem:[%s1 + $0x108] sm:$0xff]
    %v79 = vld [vmem:[%s1 + $0x110] sm:$0xff]
    %v80 = vld [vmem:[%s1 + $0x118] sm:$0xff]
    %v81 = vld [vmem:[%s1 + $0x120] sm:$0xff]
    %v82 = vld [vmem:[%s1 + $0x128] sm:$0xff]
    %v83 = vld [vmem:[%s1 + $0x130] sm:$0xff]
    %v84 = vld [vmem:[%s1 + $0x138] sm:$0xff]
    %v85 = vld [vmem:[%s1 + $0x140] sm:$0xff]
    %v86 = vld [vmem:[%s1 + $0x148] sm:$0xff]
    %v87 = vld [vmem:[%s1 + $0x150] sm:$0xff]
    %v88 = vld [vmem:[%s1 + $0x158] sm:$0xff]
    %v89 = vld [vmem:[%s1 + $0x160] sm:$0xff]
    %v90 = vld [vmem:[%s1 + $0x168] sm:$0xff]
    %v91 = vld [vmem:[%s1 + $0x170] sm:$0xff]
    %v92 = vld [vmem:[%s1 + $0x178] sm:$0xff]
    %v93 = vld [vmem:[%s1 + $0x180] sm:$0xff]
    %v94 = vld [vmem:[%s1 + $0x188] sm:$0xff]
    %v95 = vld [vmem:[%s1 + $0x190] sm:$0xff]
    %v96 = vld [vmem:[%s1 + $0x198] sm:$0xff]
    %v97 = vld [vmem:[%s1 + $0x1a0] sm:$0xff]
    %v98 = vld [vmem:[%s1 + $0x1a8] sm:$0xff]
    %v99 = vld [vmem:[%s1 + $0x1b0] sm:$0xff]
    %v100 = vld [vmem:[%s1 + $0x1b8] sm:$0xff]
    %v101 = vld [vmem:[%s1 + $0x1c0] sm:$0xff]
    %v102 = vld [vmem:[%s1 + $0x1c8] sm:$0xff]
    %v103 = vld [vmem:[%s1 + $0x1d0] sm:$0xff]
    %v104 = vld [vmem:[%s1 + $0x1d8] sm:$0xff]
    %v105 = vld [vmem:[%s1 + $0x1e0] sm:$0xff]
    %v106 = vld [vmem:[%s1 + $0x1e8] sm:$0xff]
    %v107 = vld [vmem:[%s1 + $0x1f0] sm:$0xff]
    %v108 = vld [vmem:[%s1 + $0x1f8] sm:$0xff]
    %v109 = vld [vmem:[%s1 + $0x200] sm:$0xff]
    %v110 = vld [vmem:[%s1 + $0x208] sm:$0xff]
    %v111 = vld [vmem:[%s1 + $0x210] sm:$0xff]
    %v112 = vld [vmem:[%s1 + $0x218] sm:$0xff]
    %v113 = vld [vmem:[%s1 + $0x220] sm:$0xff]
    %v114 = vld [vmem:[%s1 + $0x228] sm:$0xff]
    %v115 = vld [vmem:[%s1 + $0x230] sm:$0xff]
    %v116 = vld [vmem:[%s1 + $0x238] sm:$0xff]
    %v117 = vld [vmem:[%s1 + $0x240] sm:$0xff]
    %v118 = vld [vmem:[%s1 + $0x248] sm:$0xff]
    %v119 = vld [vmem:[%s1 + $0x250] sm:$0xff]
    %v120 = vld [vmem:[%s1 + $0x258] sm:$0xff]
    %v121 = vld [vmem:[%s1 + $0x260] sm:$0xff]
    %v122 = vld [vmem:[%s1 + $0x268] sm:$0xff]
    %v123 = vld [vmem:[%s1 + $0x270] sm:$0xff]
    %v124 = vld [vmem:[%s1 + $0x278] sm:$0xff]
    %v125 = vld [vmem:[%s1 + $0x280] sm:$0xff]
    %v126 = vld [vmem:[%s1 + $0x288] sm:$0xff]
    %v127 = vld [vmem:[%s1 + $0x290] sm:$0xff]
    %v128 = vld [vmem:[%s1 + $0x298] sm:$0xff]
    %v129 = vld [vmem:[%s1 + $0x2a0] sm:$0xff]
    %v130 = vld [vmem:[%s1 + $0x2a8] sm:$0xff]
    %v131 = vld [vmem:[%s1 + $0x2b0] sm:$0xff]
    %v132 = vld [vmem:[%s1 + $0x2b8] sm:$0xff]
    %v133 = vld [vmem:[%s1 + $0x2c0] sm:$0xff]
    %v134 = vld [vmem:[%s1 + $0x2c8] sm:$0xff]
    %v135 = vld [vmem:[%s1 + $0x2d0] sm:$0xff]
    %v136 = vld [vmem:[%s1 + $0x2d8] sm:$0xff]
    %v137 = vld [vmem:[%s1 + $0x2e0] sm:$0xff]
    %v138 = vld [vmem:[%s1 + $0x2e8] sm:$0xff]
    %v139 = vld [vmem:[%s1 + $0x2f0] sm:$0xff]
    %v140 = vld [vmem:[%s1 + $0x2f8] sm:$0xff]
    %v141 = vld [vmem:[%s0] sm:$0xfe]
    %v142 = vld [vmem:[%s0 + $0x8] sm:$0xfe]
    %v143 = vld [vmem:[%s0 + $0x10] sm:$0xfe]
    %v144 = vld [vmem:[%s0 + $0x18] sm:$0xff]
    %v145 = vld [vmem:[%s0 + $0x20] sm:$0xff]
    %v146 = vld [vmem:[%s0 + $0x28] sm:$0xff]
    %s147 = scalar_lea.vmem %s1, 768
    %v148 = vld [vmem:[%s147] sm:$0xff]
    %v149 = vld [vmem:[%s147 + $0x8] sm:$0xff]
    %v150 = vld [vmem:[%s147 + $0x10] sm:$0xff]
    %v151 = vld [vmem:[%s147 + $0x18] sm:$0xff]
    %v152 = vld [vmem:[%s147 + $0x20] sm:$0xff]
    %v153 = vld [vmem:[%s147 + $0x28] sm:$0xff]
    %v154 = vld [vmem:[%s147 + $0x30] sm:$0xff]
    %v155 = vld [vmem:[%s147 + $0x38] sm:$0xff]
    %v156 = vld [vmem:[%s147 + $0x40] sm:$0xff]
    %v157 = vld [vmem:[%s147 + $0x48] sm:$0xff]
    %v158 = vld [vmem:[%s147 + $0x50] sm:$0xff]
    %v159 = vld [vmem:[%s147 + $0x58] sm:$0xff]
    %v160 = vld [vmem:[%s147 + $0x60] sm:$0xff]
    %v161 = vld [vmem:[%s147 + $0x68] sm:$0xff]
    %v162 = vld [vmem:[%s147 + $0x70] sm:$0xff]
    %v163 = vld [vmem:[%s147 + $0x78] sm:$0xff]
    %v164 = vld [vmem:[%s147 + $0x80] sm:$0xff]
    %v165 = vld [vmem:[%s147 + $0x88] sm:$0xff]
    %v166 = vld [vmem:[%s147 + $0x90] sm:$0xff]
    %v167 = vld [vmem:[%s147 + $0x98] sm:$0xff]
    %v168 = vld [vmem:[%s147 + $0xa0] sm:$0xff]
    %v169 = vld [vmem:[%s147 + $0xa8] sm:$0xff]
    %v170 = vld [vmem:[%s147 + $0xb0] sm:$0xff]
    %v171 = vld [vmem:[%s147 + $0xb8] sm:$0xff]
    %v172 = vld [vmem:[%s147 + $0xc0] sm:$0xff]
    %v173 = vld [vmem:[%s147 + $0xc8] sm:$0xff]
    %v174 = vld [vmem:[%s147 + $0xd0] sm:$0xff]
    %v175 = vld [vmem:[%s147 + $0xd8] sm:$0xff]
    %v176 = vld [vmem:[%s147 + $0xe0] sm:$0xff]
    %v177 = vld [vmem:[%s147 + $0xe8] sm:$0xff]
    %v178 = vld [vmem:[%s147 + $0xf0] sm:$0xff]
    %v179 = vld [vmem:[%s147 + $0xf8] sm:$0xff]
    %v180 = vld [vmem:[%s147 + $0x100] sm:$0xff]
    %v181 = vld [vmem:[%s147 + $0x108] sm:$0xff]
    %v182 = vld [vmem:[%s147 + $0x110] sm:$0xff]
    %v183 = vld [vmem:[%s147 + $0x118] sm:$0xff]
    %v184 = vld [vmem:[%s147 + $0x120] sm:$0xff]
    %v185 = vld [vmem:[%s147 + $0x128] sm:$0xff]
    %v186 = vld [vmem:[%s147 + $0x130] sm:$0xff]
    %v187 = vld [vmem:[%s147 + $0x138] sm:$0xff]
    %v188 = vld [vmem:[%s147 + $0x140] sm:$0xff]
    %v189 = vld [vmem:[%s147 + $0x148] sm:$0xff]
    %v190 = vld [vmem:[%s147 + $0x150] sm:$0xff]
    %v191 = vld [vmem:[%s147 + $0x158] sm:$0xff]
    %v192 = vld [vmem:[%s147 + $0x160] sm:$0xff]
    %v193 = vld [vmem:[%s147 + $0x168] sm:$0xff]
    %v194 = vld [vmem:[%s147 + $0x170] sm:$0xff]
    %v195 = vld [vmem:[%s147 + $0x178] sm:$0xff]
    %v196 = vld [vmem:[%s147 + $0x180] sm:$0xff]
    %v197 = vld [vmem:[%s147 + $0x188] sm:$0xff]
    %v198 = vld [vmem:[%s147 + $0x190] sm:$0xff]
    %v199 = vld [vmem:[%s147 + $0x198] sm:$0xff]
    %v200 = vld [vmem:[%s147 + $0x1a0] sm:$0xff]
    %v201 = vld [vmem:[%s147 + $0x1a8] sm:$0xff]
    %v202 = vld [vmem:[%s147 + $0x1b0] sm:$0xff]
    %v203 = vld [vmem:[%s147 + $0x1b8] sm:$0xff]
    %v204 = vld [vmem:[%s147 + $0x1c0] sm:$0xff]
    %v205 = vld [vmem:[%s147 + $0x1c8] sm:$0xff]
    %v206 = vld [vmem:[%s147 + $0x1d0] sm:$0xff]
    %v207 = vld [vmem:[%s147 + $0x1d8] sm:$0xff]
    %v208 = vld [vmem:[%s147 + $0x1e0] sm:$0xff]
    %v209 = vld [vmem:[%s147 + $0x1e8] sm:$0xff]
    %v210 = vld [vmem:[%s147 + $0x1f0] sm:$0xff]
    %v211 = vld [vmem:[%s147 + $0x1f8] sm:$0xff]
    %v212 = vld [vmem:[%s147 + $0x200] sm:$0xff]
    %v213 = vld [vmem:[%s147 + $0x208] sm:$0xff]
    %v214 = vld [vmem:[%s147 + $0x210] sm:$0xff]
    %v215 = vld [vmem:[%s147 + $0x218] sm:$0xff]
    %v216 = vld [vmem:[%s147 + $0x220] sm:$0xff]
    %v217 = vld [vmem:[%s147 + $0x228] sm:$0xff]
    %v218 = vld [vmem:[%s147 + $0x230] sm:$0xff]
    %v219 = vld [vmem:[%s147 + $0x238] sm:$0xff]
    %v220 = vld [vmem:[%s147 + $0x240] sm:$0xff]
    %v221 = vld [vmem:[%s147 + $0x248] sm:$0xff]
    %v222 = vld [vmem:[%s147 + $0x250] sm:$0xff]
    %v223 = vld [vmem:[%s147 + $0x258] sm:$0xff]
    %v224 = vld [vmem:[%s147 + $0x260] sm:$0xff]
    %v225 = vld [vmem:[%s147 + $0x268] sm:$0xff]
    %v226 = vld [vmem:[%s147 + $0x270] sm:$0xff]
    %v227 = vld [vmem:[%s147 + $0x278] sm:$0xff]
    %v228 = vld [vmem:[%s147 + $0x280] sm:$0xff]
    %v229 = vld [vmem:[%s147 + $0x288] sm:$0xff]
    %v230 = vld [vmem:[%s147 + $0x290] sm:$0xff]
    %v231 = vld [vmem:[%s147 + $0x298] sm:$0xff]
    %v232 = vld [vmem:[%s147 + $0x2a0] sm:$0xff]
    %v233 = vld [vmem:[%s147 + $0x2a8] sm:$0xff]
    %v234 = vld [vmem:[%s147 + $0x2b0] sm:$0xff]
    %v235 = vld [vmem:[%s147 + $0x2b8] sm:$0xff]
    %v236 = vld [vmem:[%s147 + $0x2c0] sm:$0xff]
    %v237 = vld [vmem:[%s147 + $0x2c8] sm:$0xff]
    %v238 = vld [vmem:[%s147 + $0x2d0] sm:$0xff]
    %v239 = vld [vmem:[%s147 + $0x2d8] sm:$0xff]
    %v240 = vld [vmem:[%s147 + $0x2e0] sm:$0xff]
    %v241 = vld [vmem:[%s147 + $0x2e8] sm:$0xff]
    %v242 = vld [vmem:[%s147 + $0x2f0] sm:$0xff]
    %v243 = vld [vmem:[%s147 + $0x2f8] sm:$0xff]
    %vm250 = vcmask 1046528
    %v251 = vrot.slane %v141, 1
    %v252 = vrot.slane %v144, 1
    %v253 = vsel %vm250, %v251, %v252
    %v254 = vrot.slane %v142, 1
    %v255 = vrot.slane %v145, 1
    %v256 = vsel %vm250, %v254, %v255
    %v257 = vrot.slane %v143, 1
    %v258 = vrot.slane %v146, 1
    %v259 = vsel %vm250, %v257, %v258
    %266 = vmatprep.subr.mxu0 %v149
    %267 = vmatpush1.msra.mxu0 %v148
    %268 = vmatprep.subr.mxu0 %v151
    %269 = vmatpush1.msra.mxu0 %v150
    %270 = vmatprep.subr.mxu0 %v153
    %271 = vmatpush1.msra.mxu0 %v152
    %272 = vmatprep.subr.mxu0 %v155
    %273 = vmatpush1.msra.mxu0 %v154
    %274 = vmatprep.subr.mxu0 %v157
    %275 = vmatpush1.msra.mxu0 %v156
    %276 = vmatprep.subr.mxu0 %v159
    %277 = vmatpush1.msra.mxu0 %v158
    %278 = vmatprep.subr.mxu0 %v161
    %279 = vmatpush1.msra.mxu0 %v160
    %280 = vmatprep.subr.mxu0 %v163
    %281 = vmatpush1.msra.mxu0 %v162
    %282 = vmatprep.subr.mxu0 %v165
    %283 = vmatpush1.msra.mxu0 %v164
    %284 = vmatprep.subr.mxu0 %v167
    %285 = vmatpush1.msra.mxu0 %v166
    %286 = vmatprep.subr.mxu0 %v169
    %287 = vmatpush1.msra.mxu0 %v168
    %288 = vmatprep.subr.mxu0 %v171
    %289 = vmatpush1.msra.mxu0 %v170
    %290 = vmatprep.subr.mxu0 %v173
    %291 = vmatpush1.msra.mxu0 %v172
    %292 = vmatprep.subr.mxu0 %v175
    %293 = vmatpush1.msra.mxu0 %v174
    %294 = vmatprep.subr.mxu0 %v177
    %295 = vmatpush1.msra.mxu0 %v176
    %296 = vmatprep.subr.mxu0 %v179
    %297 = vmatpush1.msra.mxu0 %v178
    %298 = vmatprep.subr.mxu0 %v181
    %299 = vmatpush1.msra.mxu0 %v180
    %300 = vmatprep.subr.mxu0 %v183
    %301 = vmatpush1.msra.mxu0 %v182
    %302 = vmatprep.subr.mxu0 %v185
    %303 = vmatpush1.msra.mxu0 %v184
    %304 = vmatprep.subr.mxu0 %v187
    %305 = vmatpush1.msra.mxu0 %v186
    %306 = vmatprep.subr.mxu0 %v189
    %307 = vmatpush1.msra.mxu0 %v188
    %308 = vmatprep.subr.mxu0 %v191
    %309 = vmatpush1.msra.mxu0 %v190
    %310 = vmatprep.subr.mxu0 %v193
    %311 = vmatpush1.msra.mxu0 %v192
    %312 = vmatprep.subr.mxu0 %v195
    %313 = vmatpush1.msra.mxu0 %v194
    %314 = vmatprep.subr.mxu0 %v197
    %315 = vmatpush1.msra.mxu0 %v196
    %316 = vmatprep.subr.mxu0 %v199
    %317 = vmatpush1.msra.mxu0 %v198
    %318 = vmatprep.subr.mxu0 %v201
    %319 = vmatpush1.msra.mxu0 %v200
    %320 = vmatprep.subr.mxu0 %v203
    %321 = vmatpush1.msra.mxu0 %v202
    %322 = vmatprep.subr.mxu0 %v205
    %323 = vmatpush1.msra.mxu0 %v204
    %324 = vmatprep.subr.mxu0 %v207
    %325 = vmatpush1.msra.mxu0 %v206
    %326 = vmatprep.subr.mxu0 %v209
    %327 = vmatpush1.msra.mxu0 %v208
    %328 = vmatprep.subr.mxu0 %v211
    %329 = vmatpush1.msra.mxu0 %v210
    %330 = vmatprep.mubr.f32.mxu0 %v256
    %331 = vmatmul.mubr.f32.gmra.mrb[0].mxu0 %v253
    %v332 = vpop.f32.mrb[0].mxu0
    %v333 = vadd.f32 0.0, %v332
    %v334 = vpop.f32.mrb[0].mxu0
    %v335 = vadd.f32 0.0, %v334
    %336 = vmatprep.mubr.f32.mxu0 %v255
    %337 = vmatmul.mubr.f32.gmra.mrb[0].mxu0 %v252
    %v338 = vpop.f32.mrb[0].mxu0
    %v339 = vadd.f32 0.0, %v338
    %v340 = vpop.f32.mrb[0].mxu0
    %v341 = vadd.f32 0.0, %v340
    %342 = vdwg.mxu0
    %343 = vmatprep.subr.mxu0 %v213
    %344 = vmatpush1.msra.mxu0 %v212
    %345 = vmatprep.subr.mxu0 %v215
    %346 = vmatpush1.msra.mxu0 %v214
    %347 = vmatprep.subr.mxu0 %v217
    %348 = vmatpush1.msra.mxu0 %v216
    %349 = vmatprep.subr.mxu0 %v219
    %350 = vmatpush1.msra.mxu0 %v218
    %351 = vmatprep.subr.mxu0 %v221
    %352 = vmatpush1.msra.mxu0 %v220
    %353 = vmatprep.subr.mxu0 %v223
    %354 = vmatpush1.msra.mxu0 %v222
    %355 = vmatprep.subr.mxu0 %v225
    %356 = vmatpush1.msra.mxu0 %v224
    %357 = vmatprep.subr.mxu0 %v227
    %358 = vmatpush1.msra.mxu0 %v226
    %359 = vmatprep.subr.mxu0 %v229
    %360 = vmatpush1.msra.mxu0 %v228
    %361 = vmatprep.subr.mxu0 %v231
    %362 = vmatpush1.msra.mxu0 %v230
    %363 = vmatprep.subr.mxu0 %v233
    %364 = vmatpush1.msra.mxu0 %v232
    %365 = vmatprep.subr.mxu0 %v235
    %366 = vmatpush1.msra.mxu0 %v234
    %367 = vmatprep.subr.mxu0 %v237
    %368 = vmatpush1.msra.mxu0 %v236
    %369 = vmatprep.subr.mxu0 %v239
    %370 = vmatpush1.msra.mxu0 %v238
    %371 = vmatprep.subr.mxu0 %v241
    %372 = vmatpush1.msra.mxu0 %v240
    %373 = vmatprep.subr.mxu0 %v243
    %374 = vmatpush1.msra.mxu0 %v242
    %375 = vmatprep.subr.mxu0 0.0
    %376 = vmatpush1.msra.mxu0 0.0
    %377 = vmatprep.subr.mxu0 0.0
    %378 = vmatpush1.msra.mxu0 0.0
    %379 = vmatprep.subr.mxu0 0.0
    %380 = vmatpush1.msra.mxu0 0.0
    %381 = vmatprep.subr.mxu0 0.0
    %382 = vmatpush1.msra.mxu0 0.0
    %383 = vmatprep.subr.mxu0 0.0
    %384 = vmatpush1.msra.mxu0 0.0
    %385 = vmatprep.subr.mxu0 0.0
    %386 = vmatpush1.msra.mxu0 0.0
    %387 = vmatprep.subr.mxu0 0.0
    %388 = vmatpush1.msra.mxu0 0.0
    %389 = vmatprep.subr.mxu0 0.0
    %390 = vmatpush1.msra.mxu0 0.0
    %391 = vmatprep.subr.mxu0 0.0
    %392 = vmatpush1.msra.mxu0 0.0
    %393 = vmatprep.subr.mxu0 0.0
    %394 = vmatpush1.msra.mxu0 0.0
    %395 = vmatprep.subr.mxu0 0.0
    %396 = vmatpush1.msra.mxu0 0.0
    %397 = vmatprep.subr.mxu0 0.0
    %398 = vmatpush1.msra.mxu0 0.0
    %399 = vmatprep.subr.mxu0 0.0
    %400 = vmatpush1.msra.mxu0 0.0
    %401 = vmatprep.subr.mxu0 0.0
    %402 = vmatpush1.msra.mxu0 0.0
    %403 = vmatprep.subr.mxu0 0.0
    %404 = vmatpush1.msra.mxu0 0.0
    %405 = vmatprep.subr.mxu0 0.0
    %406 = vmatpush1.msra.mxu0 0.0
    %407 = vmatprep.mubr.f32.mxu0 0.0
    %408 = vmatmul.mubr.f32.gmra.mrb[0].mxu0 %v259
    %v409 = vpop.f32.mrb[0].mxu0
    %v410 = vadd.f32 %v333, %v409
    %v411 = vpop.f32.mrb[0].mxu0
    %v412 = vadd.f32 %v335, %v411
    %413 = vmatprep.mubr.f32.mxu0 0.0
    %414 = vmatmul.mubr.f32.gmra.mrb[0].mxu0 %v258
    %v415 = vpop.f32.mrb[0].mxu0
    %v416 = vadd.f32 %v339, %v415
    %v417 = vpop.f32.mrb[0].mxu0
    %v418 = vadd.f32 %v341, %v417
    %419 = vdwg.mxu0
    %420 = vmatprep.subr.mxu0 %v46
    %421 = vmatpush1.msra.mxu0 %v45
    %422 = vmatprep.subr.mxu0 %v48
    %423 = vmatpush1.msra.mxu0 %v47
    %424 = vmatprep.subr.mxu0 %v50
    %425 = vmatpush1.msra.mxu0 %v49
    %426 = vmatprep.subr.mxu0 %v52
    %427 = vmatpush1.msra.mxu0 %v51
    %428 = vmatprep.subr.mxu0 %v54
    %429 = vmatpush1.msra.mxu0 %v53
    %430 = vmatprep.subr.mxu0 %v56
    %431 = vmatpush1.msra.mxu0 %v55
    %432 = vmatprep.subr.mxu0 %v58
    %433 = vmatpush1.msra.mxu0 %v57
    %434 = vmatprep.subr.mxu0 %v60
    %435 = vmatpush1.msra.mxu0 %v59
    %436 = vmatprep.subr.mxu0 %v62
    %437 = vmatpush1.msra.mxu0 %v61
    %438 = vmatprep.subr.mxu0 %v64
    %439 = vmatpush1.msra.mxu0 %v63
    %440 = vmatprep.subr.mxu0 %v66
    %441 = vmatpush1.msra.mxu0 %v65
    %442 = vmatprep.subr.mxu0 %v68
    %443 = vmatpush1.msra.mxu0 %v67
    %444 = vmatprep.subr.mxu0 %v70
    %445 = vmatpush1.msra.mxu0 %v69
    %446 = vmatprep.subr.mxu0 %v72
    %447 = vmatpush1.msra.mxu0 %v71
    %448 = vmatprep.subr.mxu0 %v74
    %449 = vmatpush1.msra.mxu0 %v73
    %450 = vmatprep.subr.mxu0 %v76
    %451 = vmatpush1.msra.mxu0 %v75
    %452 = vmatprep.subr.mxu0 %v78
    %453 = vmatpush1.msra.mxu0 %v77
    %454 = vmatprep.subr.mxu0 %v80
    %455 = vmatpush1.msra.mxu0 %v79
    %456 = vmatprep.subr.mxu0 %v82
    %457 = vmatpush1.msra.mxu0 %v81
    %458 = vmatprep.subr.mxu0 %v84
    %459 = vmatpush1.msra.mxu0 %v83
    %460 = vmatprep.subr.mxu0 %v86
    %461 = vmatpush1.msra.mxu0 %v85
    %462 = vmatprep.subr.mxu0 %v88
    %463 = vmatpush1.msra.mxu0 %v87
    %464 = vmatprep.subr.mxu0 %v90
    %465 = vmatpush1.msra.mxu0 %v89
    %466 = vmatprep.subr.mxu0 %v92
    %467 = vmatpush1.msra.mxu0 %v91
    %468 = vmatprep.subr.mxu0 %v94
    %469 = vmatpush1.msra.mxu0 %v93
    %470 = vmatprep.subr.mxu0 %v96
    %471 = vmatpush1.msra.mxu0 %v95
    %472 = vmatprep.subr.mxu0 %v98
    %473 = vmatpush1.msra.mxu0 %v97
    %474 = vmatprep.subr.mxu0 %v100
    %475 = vmatpush1.msra.mxu0 %v99
    %476 = vmatprep.subr.mxu0 %v102
    %477 = vmatpush1.msra.mxu0 %v101
    %478 = vmatprep.subr.mxu0 %v104
    %479 = vmatpush1.msra.mxu0 %v103
    %480 = vmatprep.subr.mxu0 %v106
    %481 = vmatpush1.msra.mxu0 %v105
    %482 = vmatprep.subr.mxu0 %v108
    %483 = vmatpush1.msra.mxu0 %v107
    %484 = vmatprep.mubr.f32.mxu0 %v40
    %485 = vmatmul.mubr.f32.gmra.mrb[0].mxu0 %v39
    %v486 = vpop.f32.mrb[0].mxu0
    %v487 = vadd.f32 %v410, %v486
    %v488 = vpop.f32.mrb[0].mxu0
    %v489 = vadd.f32 %v412, %v488
    %490 = vmatprep.mubr.f32.mxu0 %v43
    %491 = vmatmul.mubr.f32.gmra.mrb[0].mxu0 %v42
    %v492 = vpop.f32.mrb[0].mxu0
    %v493 = vadd.f32 %v416, %v492
    %v494 = vpop.f32.mrb[0].mxu0
    %v495 = vadd.f32 %v418, %v494
    %496 = vdwg.mxu0
    %497 = vmatprep.subr.mxu0 %v110
    %498 = vmatpush1.msra.mxu0 %v109
    %499 = vmatprep.subr.mxu0 %v112
    %500 = vmatpush1.msra.mxu0 %v111
    %501 = vmatprep.subr.mxu0 %v114
    %502 = vmatpush1.msra.mxu0 %v113
    %503 = vmatprep.subr.mxu0 %v116
    %504 = vmatpush1.msra.mxu0 %v115
    %505 = vmatprep.subr.mxu0 %v118
    %506 = vmatpush1.msra.mxu0 %v117
    %507 = vmatprep.subr.mxu0 %v120
    %508 = vmatpush1.msra.mxu0 %v119
    %509 = vmatprep.subr.mxu0 %v122
    %510 = vmatpush1.msra.mxu0 %v121
    %511 = vmatprep.subr.mxu0 %v124
    %512 = vmatpush1.msra.mxu0 %v123
    %513 = vmatprep.subr.mxu0 %v126
    %514 = vmatpush1.msra.mxu0 %v125
    %515 = vmatprep.subr.mxu0 %v128
    %516 = vmatpush1.msra.mxu0 %v127
    %517 = vmatprep.subr.mxu0 %v130
    %518 = vmatpush1.msra.mxu0 %v129
    %519 = vmatprep.subr.mxu0 %v132
    %520 = vmatpush1.msra.mxu0 %v131
    %521 = vmatprep.subr.mxu0 %v134
    %522 = vmatpush1.msra.mxu0 %v133
    %523 = vmatprep.subr.mxu0 %v136
    %524 = vmatpush1.msra.mxu0 %v135
    %525 = vmatprep.subr.mxu0 %v138
    %526 = vmatpush1.msra.mxu0 %v137
    %527 = vmatprep.subr.mxu0 %v140
    %528 = vmatpush1.msra.mxu0 %v139
    %529 = vmatprep.subr.mxu0 0.0
    %530 = vmatpush1.msra.mxu0 0.0
    %531 = vmatprep.subr.mxu0 0.0
    %532 = vmatpush1.msra.mxu0 0.0
    %533 = vmatprep.subr.mxu0 0.0
    %534 = vmatpush1.msra.mxu0 0.0
    %535 = vmatprep.subr.mxu0 0.0
    %536 = vmatpush1.msra.mxu0 0.0
    %537 = vmatprep.subr.mxu0 0.0
    %538 = vmatpush1.msra.mxu0 0.0
    %539 = vmatprep.subr.mxu0 0.0
    %540 = vmatpush1.msra.mxu0 0.0
    %541 = vmatprep.subr.mxu0 0.0
    %542 = vmatpush1.msra.mxu0 0.0
    %543 = vmatprep.subr.mxu0 0.0
    %544 = vmatpush1.msra.mxu0 0.0
    %545 = vmatprep.subr.mxu0 0.0
    %546 = vmatpush1.msra.mxu0 0.0
    %547 = vmatprep.subr.mxu0 0.0
    %548 = vmatpush1.msra.mxu0 0.0
    %549 = vmatprep.subr.mxu0 0.0
    %550 = vmatpush1.msra.mxu0 0.0
    %551 = vmatprep.subr.mxu0 0.0
    %552 = vmatpush1.msra.mxu0 0.0
    %553 = vmatprep.subr.mxu0 0.0
    %554 = vmatpush1.msra.mxu0 0.0
    %555 = vmatprep.subr.mxu0 0.0
    %556 = vmatpush1.msra.mxu0 0.0
    %557 = vmatprep.subr.mxu0 0.0
    %558 = vmatpush1.msra.mxu0 0.0
    %559 = vmatprep.subr.mxu0 0.0
    %560 = vmatpush1.msra.mxu0 0.0
    %561 = vmatprep.mubr.f32.mxu0 0.0
    %562 = vmatmul.mubr.f32.gmra.mrb[0].mxu0 %v41
    %v563 = vpop.f32.mrb[0].mxu0
    %v564 = vadd.f32 %v487, %v563
    %v565 = vpop.f32.mrb[0].mxu0
    %v566 = vadd.f32 %v489, %v565
    %567 = vmatprep.mubr.f32.mxu0 0.0
    %568 = vmatmul.mubr.f32.gmra.mrb[0].mxu0 %v44
    %v569 = vpop.f32.mrb[0].mxu0
    %v570 = vadd.f32 %v493, %v569
    %v571 = vpop.f32.mrb[0].mxu0
    %v572 = vadd.f32 %v495, %v571
    %573 = vdwg.mxu0
    %s574 = scalar_lea.vmem %s1, 1536
    %v575 = vld [vmem:[%s574] sm:$0xff]
    %v576 = vld [vmem:[%s574 + $0x8] sm:$0xff]
    %v577 = vld [vmem:[%s574 + $0x10] sm:$0xff]
    %v578 = vld [vmem:[%s574 + $0x18] sm:$0xff]
    %v579 = vld [vmem:[%s574 + $0x20] sm:$0xff]
    %v580 = vld [vmem:[%s574 + $0x28] sm:$0xff]
    %v581 = vld [vmem:[%s574 + $0x30] sm:$0xff]
    %v582 = vld [vmem:[%s574 + $0x38] sm:$0xff]
    %v583 = vld [vmem:[%s574 + $0x40] sm:$0xff]
    %v584 = vld [vmem:[%s574 + $0x48] sm:$0xff]
    %v585 = vld [vmem:[%s574 + $0x50] sm:$0xff]
    %v586 = vld [vmem:[%s574 + $0x58] sm:$0xff]
    %v587 = vld [vmem:[%s574 + $0x60] sm:$0xff]
    %v588 = vld [vmem:[%s574 + $0x68] sm:$0xff]
    %v589 = vld [vmem:[%s574 + $0x70] sm:$0xff]
    %v590 = vld [vmem:[%s574 + $0x78] sm:$0xff]
    %v591 = vld [vmem:[%s574 + $0x80] sm:$0xff]
    %v592 = vld [vmem:[%s574 + $0x88] sm:$0xff]
    %v593 = vld [vmem:[%s574 + $0x90] sm:$0xff]
    %v594 = vld [vmem:[%s574 + $0x98] sm:$0xff]
    %v595 = vld [vmem:[%s574 + $0xa0] sm:$0xff]
    %v596 = vld [vmem:[%s574 + $0xa8] sm:$0xff]
    %v597 = vld [vmem:[%s574 + $0xb0] sm:$0xff]
    %v598 = vld [vmem:[%s574 + $0xb8] sm:$0xff]
    %v599 = vld [vmem:[%s574 + $0xc0] sm:$0xff]
    %v600 = vld [vmem:[%s574 + $0xc8] sm:$0xff]
    %v601 = vld [vmem:[%s574 + $0xd0] sm:$0xff]
    %v602 = vld [vmem:[%s574 + $0xd8] sm:$0xff]
    %v603 = vld [vmem:[%s574 + $0xe0] sm:$0xff]
    %v604 = vld [vmem:[%s574 + $0xe8] sm:$0xff]
    %v605 = vld [vmem:[%s574 + $0xf0] sm:$0xff]
    %v606 = vld [vmem:[%s574 + $0xf8] sm:$0xff]
    %v607 = vld [vmem:[%s574 + $0x100] sm:$0xff]
    %v608 = vld [vmem:[%s574 + $0x108] sm:$0xff]
    %v609 = vld [vmem:[%s574 + $0x110] sm:$0xff]
    %v610 = vld [vmem:[%s574 + $0x118] sm:$0xff]
    %v611 = vld [vmem:[%s574 + $0x120] sm:$0xff]
    %v612 = vld [vmem:[%s574 + $0x128] sm:$0xff]
    %v613 = vld [vmem:[%s574 + $0x130] sm:$0xff]
    %v614 = vld [vmem:[%s574 + $0x138] sm:$0xff]
    %v615 = vld [vmem:[%s574 + $0x140] sm:$0xff]
    %v616 = vld [vmem:[%s574 + $0x148] sm:$0xff]
    %v617 = vld [vmem:[%s574 + $0x150] sm:$0xff]
    %v618 = vld [vmem:[%s574 + $0x158] sm:$0xff]
    %v619 = vld [vmem:[%s574 + $0x160] sm:$0xff]
    %v620 = vld [vmem:[%s574 + $0x168] sm:$0xff]
    %v621 = vld [vmem:[%s574 + $0x170] sm:$0xff]
    %v622 = vld [vmem:[%s574 + $0x178] sm:$0xff]
    %v623 = vld [vmem:[%s574 + $0x180] sm:$0xff]
    %v624 = vld [vmem:[%s574 + $0x188] sm:$0xff]
    %v625 = vld [vmem:[%s574 + $0x190] sm:$0xff]
    %v626 = vld [vmem:[%s574 + $0x198] sm:$0xff]
    %v627 = vld [vmem:[%s574 + $0x1a0] sm:$0xff]
    %v628 = vld [vmem:[%s574 + $0x1a8] sm:$0xff]
    %v629 = vld [vmem:[%s574 + $0x1b0] sm:$0xff]
    %v630 = vld [vmem:[%s574 + $0x1b8] sm:$0xff]
    %v631 = vld [vmem:[%s574 + $0x1c0] sm:$0xff]
    %v632 = vld [vmem:[%s574 + $0x1c8] sm:$0xff]
    %v633 = vld [vmem:[%s574 + $0x1d0] sm:$0xff]
    %v634 = vld [vmem:[%s574 + $0x1d8] sm:$0xff]
    %v635 = vld [vmem:[%s574 + $0x1e0] sm:$0xff]
    %v636 = vld [vmem:[%s574 + $0x1e8] sm:$0xff]
    %v637 = vld [vmem:[%s574 + $0x1f0] sm:$0xff]
    %v638 = vld [vmem:[%s574 + $0x1f8] sm:$0xff]
    %v639 = vld [vmem:[%s574 + $0x200] sm:$0xff]
    %v640 = vld [vmem:[%s574 + $0x208] sm:$0xff]
    %v641 = vld [vmem:[%s574 + $0x210] sm:$0xff]
    %v642 = vld [vmem:[%s574 + $0x218] sm:$0xff]
    %v643 = vld [vmem:[%s574 + $0x220] sm:$0xff]
    %v644 = vld [vmem:[%s574 + $0x228] sm:$0xff]
    %v645 = vld [vmem:[%s574 + $0x230] sm:$0xff]
    %v646 = vld [vmem:[%s574 + $0x238] sm:$0xff]
    %v647 = vld [vmem:[%s574 + $0x240] sm:$0xff]
    %v648 = vld [vmem:[%s574 + $0x248] sm:$0xff]
    %v649 = vld [vmem:[%s574 + $0x250] sm:$0xff]
    %v650 = vld [vmem:[%s574 + $0x258] sm:$0xff]
    %v651 = vld [vmem:[%s574 + $0x260] sm:$0xff]
    %v652 = vld [vmem:[%s574 + $0x268] sm:$0xff]
    %v653 = vld [vmem:[%s574 + $0x270] sm:$0xff]
    %v654 = vld [vmem:[%s574 + $0x278] sm:$0xff]
    %v655 = vld [vmem:[%s574 + $0x280] sm:$0xff]
    %v656 = vld [vmem:[%s574 + $0x288] sm:$0xff]
    %v657 = vld [vmem:[%s574 + $0x290] sm:$0xff]
    %v658 = vld [vmem:[%s574 + $0x298] sm:$0xff]
    %v659 = vld [vmem:[%s574 + $0x2a0] sm:$0xff]
    %v660 = vld [vmem:[%s574 + $0x2a8] sm:$0xff]
    %v661 = vld [vmem:[%s574 + $0x2b0] sm:$0xff]
    %v662 = vld [vmem:[%s574 + $0x2b8] sm:$0xff]
    %v663 = vld [vmem:[%s574 + $0x2c0] sm:$0xff]
    %v664 = vld [vmem:[%s574 + $0x2c8] sm:$0xff]
    %v665 = vld [vmem:[%s574 + $0x2d0] sm:$0xff]
    %v666 = vld [vmem:[%s574 + $0x2d8] sm:$0xff]
    %v667 = vld [vmem:[%s574 + $0x2e0] sm:$0xff]
    %v668 = vld [vmem:[%s574 + $0x2e8] sm:$0xff]
    %v669 = vld [vmem:[%s574 + $0x2f0] sm:$0xff]
    %v670 = vld [vmem:[%s574 + $0x2f8] sm:$0xff]
    %s671 = scalar_lea.vmem %s1, 2304
    %v672 = vld [vmem:[%s671] sm:$0xff]
    %v673 = vld [vmem:[%s671 + $0x8] sm:$0xff]
    %v674 = vld [vmem:[%s671 + $0x10] sm:$0xff]
    %v675 = vld [vmem:[%s671 + $0x18] sm:$0xff]
    %v676 = vld [vmem:[%s671 + $0x20] sm:$0xff]
    %v677 = vld [vmem:[%s671 + $0x28] sm:$0xff]
    %v678 = vld [vmem:[%s671 + $0x30] sm:$0xff]
    %v679 = vld [vmem:[%s671 + $0x38] sm:$0xff]
    %v680 = vld [vmem:[%s671 + $0x40] sm:$0xff]
    %v681 = vld [vmem:[%s671 + $0x48] sm:$0xff]
    %v682 = vld [vmem:[%s671 + $0x50] sm:$0xff]
    %v683 = vld [vmem:[%s671 + $0x58] sm:$0xff]
    %v684 = vld [vmem:[%s671 + $0x60] sm:$0xff]
    %v685 = vld [vmem:[%s671 + $0x68] sm:$0xff]
    %v686 = vld [vmem:[%s671 + $0x70] sm:$0xff]
    %v687 = vld [vmem:[%s671 + $0x78] sm:$0xff]
    %v688 = vld [vmem:[%s671 + $0x80] sm:$0xff]
    %v689 = vld [vmem:[%s671 + $0x88] sm:$0xff]
    %v690 = vld [vmem:[%s671 + $0x90] sm:$0xff]
    %v691 = vld [vmem:[%s671 + $0x98] sm:$0xff]
    %v692 = vld [vmem:[%s671 + $0xa0] sm:$0xff]
    %v693 = vld [vmem:[%s671 + $0xa8] sm:$0xff]
    %v694 = vld [vmem:[%s671 + $0xb0] sm:$0xff]
    %v695 = vld [vmem:[%s671 + $0xb8] sm:$0xff]
    %v696 = vld [vmem:[%s671 + $0xc0] sm:$0xff]
    %v697 = vld [vmem:[%s671 + $0xc8] sm:$0xff]
    %v698 = vld [vmem:[%s671 + $0xd0] sm:$0xff]
    %v699 = vld [vmem:[%s671 + $0xd8] sm:$0xff]
    %v700 = vld [vmem:[%s671 + $0xe0] sm:$0xff]
    %v701 = vld [vmem:[%s671 + $0xe8] sm:$0xff]
    %v702 = vld [vmem:[%s671 + $0xf0] sm:$0xff]
    %v703 = vld [vmem:[%s671 + $0xf8] sm:$0xff]
    %v704 = vld [vmem:[%s671 + $0x100] sm:$0xff]
    %v705 = vld [vmem:[%s671 + $0x108] sm:$0xff]
    %v706 = vld [vmem:[%s671 + $0x110] sm:$0xff]
    %v707 = vld [vmem:[%s671 + $0x118] sm:$0xff]
    %v708 = vld [vmem:[%s671 + $0x120] sm:$0xff]
    %v709 = vld [vmem:[%s671 + $0x128] sm:$0xff]
    %v710 = vld [vmem:[%s671 + $0x130] sm:$0xff]
    %v711 = vld [vmem:[%s671 + $0x138] sm:$0xff]
    %v712 = vld [vmem:[%s671 + $0x140] sm:$0xff]
    %v713 = vld [vmem:[%s671 + $0x148] sm:$0xff]
    %v714 = vld [vmem:[%s671 + $0x150] sm:$0xff]
    %v715 = vld [vmem:[%s671 + $0x158] sm:$0xff]
    %v716 = vld [vmem:[%s671 + $0x160] sm:$0xff]
    %v717 = vld [vmem:[%s671 + $0x168] sm:$0xff]
    %v718 = vld [vmem:[%s671 + $0x170] sm:$0xff]
    %v719 = vld [vmem:[%s671 + $0x178] sm:$0xff]
    %v720 = vld [vmem:[%s671 + $0x180] sm:$0xff]
    %v721 = vld [vmem:[%s671 + $0x188] sm:$0xff]
    %v722 = vld [vmem:[%s671 + $0x190] sm:$0xff]
    %v723 = vld [vmem:[%s671 + $0x198] sm:$0xff]
    %v724 = vld [vmem:[%s671 + $0x1a0] sm:$0xff]
    %v725 = vld [vmem:[%s671 + $0x1a8] sm:$0xff]
    %v726 = vld [vmem:[%s671 + $0x1b0] sm:$0xff]
    %v727 = vld [vmem:[%s671 + $0x1b8] sm:$0xff]
    %v728 = vld [vmem:[%s671 + $0x1c0] sm:$0xff]
    %v729 = vld [vmem:[%s671 + $0x1c8] sm:$0xff]
    %v730 = vld [vmem:[%s671 + $0x1d0] sm:$0xff]
    %v731 = vld [vmem:[%s671 + $0x1d8] sm:$0xff]
    %v732 = vld [vmem:[%s671 + $0x1e0] sm:$0xff]
    %v733 = vld [vmem:[%s671 + $0x1e8] sm:$0xff]
    %v734 = vld [vmem:[%s671 + $0x1f0] sm:$0xff]
    %v735 = vld [vmem:[%s671 + $0x1f8] sm:$0xff]
    %v736 = vld [vmem:[%s671 + $0x200] sm:$0xff]
    %v737 = vld [vmem:[%s671 + $0x208] sm:$0xff]
    %v738 = vld [vmem:[%s671 + $0x210] sm:$0xff]
    %v739 = vld [vmem:[%s671 + $0x218] sm:$0xff]
    %v740 = vld [vmem:[%s671 + $0x220] sm:$0xff]
    %v741 = vld [vmem:[%s671 + $0x228] sm:$0xff]
    %v742 = vld [vmem:[%s671 + $0x230] sm:$0xff]
    %v743 = vld [vmem:[%s671 + $0x238] sm:$0xff]
    %v744 = vld [vmem:[%s671 + $0x240] sm:$0xff]
    %v745 = vld [vmem:[%s671 + $0x248] sm:$0xff]
    %v746 = vld [vmem:[%s671 + $0x250] sm:$0xff]
    %v747 = vld [vmem:[%s671 + $0x258] sm:$0xff]
    %v748 = vld [vmem:[%s671 + $0x260] sm:$0xff]
    %v749 = vld [vmem:[%s671 + $0x268] sm:$0xff]
    %v750 = vld [vmem:[%s671 + $0x270] sm:$0xff]
    %v751 = vld [vmem:[%s671 + $0x278] sm:$0xff]
    %v752 = vld [vmem:[%s671 + $0x280] sm:$0xff]
    %v753 = vld [vmem:[%s671 + $0x288] sm:$0xff]
    %v754 = vld [vmem:[%s671 + $0x290] sm:$0xff]
    %v755 = vld [vmem:[%s671 + $0x298] sm:$0xff]
    %v756 = vld [vmem:[%s671 + $0x2a0] sm:$0xff]
    %v757 = vld [vmem:[%s671 + $0x2a8] sm:$0xff]
    %v758 = vld [vmem:[%s671 + $0x2b0] sm:$0xff]
    %v759 = vld [vmem:[%s671 + $0x2b8] sm:$0xff]
    %v760 = vld [vmem:[%s671 + $0x2c0] sm:$0xff]
    %v761 = vld [vmem:[%s671 + $0x2c8] sm:$0xff]
    %v762 = vld [vmem:[%s671 + $0x2d0] sm:$0xff]
    %v763 = vld [vmem:[%s671 + $0x2d8] sm:$0xff]
    %v764 = vld [vmem:[%s671 + $0x2e0] sm:$0xff]
    %v765 = vld [vmem:[%s671 + $0x2e8] sm:$0xff]
    %v766 = vld [vmem:[%s671 + $0x2f0] sm:$0xff]
    %v767 = vld [vmem:[%s671 + $0x2f8] sm:$0xff]
    %768 = vmatprep.subr.mxu0 %v673
    %769 = vmatpush1.msra.mxu0 %v672
    %770 = vmatprep.subr.mxu0 %v675
    %771 = vmatpush1.msra.mxu0 %v674
    %772 = vmatprep.subr.mxu0 %v677
    %773 = vmatpush1.msra.mxu0 %v676
    %774 = vmatprep.subr.mxu0 %v679
    %775 = vmatpush1.msra.mxu0 %v678
    %776 = vmatprep.subr.mxu0 %v681
    %777 = vmatpush1.msra.mxu0 %v680
    %778 = vmatprep.subr.mxu0 %v683
    %779 = vmatpush1.msra.mxu0 %v682
    %780 = vmatprep.subr.mxu0 %v685
    %781 = vmatpush1.msra.mxu0 %v684
    %782 = vmatprep.subr.mxu0 %v687
    %783 = vmatpush1.msra.mxu0 %v686
    %784 = vmatprep.subr.mxu0 %v689
    %785 = vmatpush1.msra.mxu0 %v688
    %786 = vmatprep.subr.mxu0 %v691
    %787 = vmatpush1.msra.mxu0 %v690
    %788 = vmatprep.subr.mxu0 %v693
    %789 = vmatpush1.msra.mxu0 %v692
    %790 = vmatprep.subr.mxu0 %v695
    %791 = vmatpush1.msra.mxu0 %v694
    %792 = vmatprep.subr.mxu0 %v697
    %793 = vmatpush1.msra.mxu0 %v696
    %794 = vmatprep.subr.mxu0 %v699
    %795 = vmatpush1.msra.mxu0 %v698
    %796 = vmatprep.subr.mxu0 %v701
    %797 = vmatpush1.msra.mxu0 %v700
    %798 = vmatprep.subr.mxu0 %v703
    %799 = vmatpush1.msra.mxu0 %v702
    %800 = vmatprep.subr.mxu0 %v705
    %801 = vmatpush1.msra.mxu0 %v704
    %802 = vmatprep.subr.mxu0 %v707
    %803 = vmatpush1.msra.mxu0 %v706
    %804 = vmatprep.subr.mxu0 %v709
    %805 = vmatpush1.msra.mxu0 %v708
    %806 = vmatprep.subr.mxu0 %v711
    %807 = vmatpush1.msra.mxu0 %v710
    %808 = vmatprep.subr.mxu0 %v713
    %809 = vmatpush1.msra.mxu0 %v712
    %810 = vmatprep.subr.mxu0 %v715
    %811 = vmatpush1.msra.mxu0 %v714
    %812 = vmatprep.subr.mxu0 %v717
    %813 = vmatpush1.msra.mxu0 %v716
    %814 = vmatprep.subr.mxu0 %v719
    %815 = vmatpush1.msra.mxu0 %v718
    %816 = vmatprep.subr.mxu0 %v721
    %817 = vmatpush1.msra.mxu0 %v720
    %818 = vmatprep.subr.mxu0 %v723
    %819 = vmatpush1.msra.mxu0 %v722
    %820 = vmatprep.subr.mxu0 %v725
    %821 = vmatpush1.msra.mxu0 %v724
    %822 = vmatprep.subr.mxu0 %v727
    %823 = vmatpush1.msra.mxu0 %v726
    %824 = vmatprep.subr.mxu0 %v729
    %825 = vmatpush1.msra.mxu0 %v728
    %826 = vmatprep.subr.mxu0 %v731
    %827 = vmatpush1.msra.mxu0 %v730
    %828 = vmatprep.subr.mxu0 %v733
    %829 = vmatpush1.msra.mxu0 %v732
    %830 = vmatprep.subr.mxu0 %v735
    %831 = vmatpush1.msra.mxu0 %v734
    %832 = vmatprep.mubr.f32.mxu0 %v256
    %833 = vmatmul.mubr.f32.gmra.mrb[0].mxu0 %v253
    %v834 = vpop.f32.mrb[0].mxu0
    %v835 = vadd.f32 0.0, %v834
    %v836 = vpop.f32.mrb[0].mxu0
    %v837 = vadd.f32 0.0, %v836
    %838 = vmatprep.mubr.f32.mxu0 %v255
    %839 = vmatmul.mubr.f32.gmra.mrb[0].mxu0 %v252
    %v840 = vpop.f32.mrb[0].mxu0
    %v841 = vadd.f32 0.0, %v840
    %v842 = vpop.f32.mrb[0].mxu0
    %v843 = vadd.f32 0.0, %v842
    %844 = vdwg.mxu0
    %845 = vmatprep.subr.mxu0 %v737
    %846 = vmatpush1.msra.mxu0 %v736
    %847 = vmatprep.subr.mxu0 %v739
    %848 = vmatpush1.msra.mxu0 %v738
    %849 = vmatprep.subr.mxu0 %v741
    %850 = vmatpush1.msra.mxu0 %v740
    %851 = vmatprep.subr.mxu0 %v743
    %852 = vmatpush1.msra.mxu0 %v742
    %853 = vmatprep.subr.mxu0 %v745
    %854 = vmatpush1.msra.mxu0 %v744
    %855 = vmatprep.subr.mxu0 %v747
    %856 = vmatpush1.msra.mxu0 %v746
    %857 = vmatprep.subr.mxu0 %v749
    %858 = vmatpush1.msra.mxu0 %v748
    %859 = vmatprep.subr.mxu0 %v751
    %860 = vmatpush1.msra.mxu0 %v750
    %861 = vmatprep.subr.mxu0 %v753
    %862 = vmatpush1.msra.mxu0 %v752
    %863 = vmatprep.subr.mxu0 %v755
    %864 = vmatpush1.msra.mxu0 %v754
    %865 = vmatprep.subr.mxu0 %v757
    %866 = vmatpush1.msra.mxu0 %v756
    %867 = vmatprep.subr.mxu0 %v759
    %868 = vmatpush1.msra.mxu0 %v758
    %869 = vmatprep.subr.mxu0 %v761
    %870 = vmatpush1.msra.mxu0 %v760
    %871 = vmatprep.subr.mxu0 %v763
    %872 = vmatpush1.msra.mxu0 %v762
    %873 = vmatprep.subr.mxu0 %v765
    %874 = vmatpush1.msra.mxu0 %v764
    %875 = vmatprep.subr.mxu0 %v767
    %876 = vmatpush1.msra.mxu0 %v766
    %877 = vmatprep.subr.mxu0 0.0
    %878 = vmatpush1.msra.mxu0 0.0
    %879 = vmatprep.subr.mxu0 0.0
    %880 = vmatpush1.msra.mxu0 0.0
    %881 = vmatprep.subr.mxu0 0.0
    %882 = vmatpush1.msra.mxu0 0.0
    %883 = vmatprep.subr.mxu0 0.0
    %884 = vmatpush1.msra.mxu0 0.0
    %885 = vmatprep.subr.mxu0 0.0
    %886 = vmatpush1.msra.mxu0 0.0
    %887 = vmatprep.subr.mxu0 0.0
    %888 = vmatpush1.msra.mxu0 0.0
    %889 = vmatprep.subr.mxu0 0.0
    %890 = vmatpush1.msra.mxu0 0.0
    %891 = vmatprep.subr.mxu0 0.0
    %892 = vmatpush1.msra.mxu0 0.0
    %893 = vmatprep.subr.mxu0 0.0
    %894 = vmatpush1.msra.mxu0 0.0
    %895 = vmatprep.subr.mxu0 0.0
    %896 = vmatpush1.msra.mxu0 0.0
    %897 = vmatprep.subr.mxu0 0.0
    %898 = vmatpush1.msra.mxu0 0.0
    %899 = vmatprep.subr.mxu0 0.0
    %900 = vmatpush1.msra.mxu0 0.0
    %901 = vmatprep.subr.mxu0 0.0
    %902 = vmatpush1.msra.mxu0 0.0
    %903 = vmatprep.subr.mxu0 0.0
    %904 = vmatpush1.msra.mxu0 0.0
    %905 = vmatprep.subr.mxu0 0.0
    %906 = vmatpush1.msra.mxu0 0.0
    %907 = vmatprep.subr.mxu0 0.0
    %908 = vmatpush1.msra.mxu0 0.0
    %909 = vmatprep.mubr.f32.mxu0 0.0
    %910 = vmatmul.mubr.f32.gmra.mrb[0].mxu0 %v259
    %v911 = vpop.f32.mrb[0].mxu0
    %v912 = vadd.f32 %v835, %v911
    %v913 = vpop.f32.mrb[0].mxu0
    %v914 = vadd.f32 %v837, %v913
    %915 = vmatprep.mubr.f32.mxu0 0.0
    %916 = vmatmul.mubr.f32.gmra.mrb[0].mxu0 %v258
    %v917 = vpop.f32.mrb[0].mxu0
    %v918 = vadd.f32 %v841, %v917
    %v919 = vpop.f32.mrb[0].mxu0
    %v920 = vadd.f32 %v843, %v919
    %921 = vdwg.mxu0
    %922 = vmatprep.subr.mxu0 %v576
    %923 = vmatpush1.msra.mxu0 %v575
    %924 = vmatprep.subr.mxu0 %v578
    %925 = vmatpush1.msra.mxu0 %v577
    %926 = vmatprep.subr.mxu0 %v580
    %927 = vmatpush1.msra.mxu0 %v579
    %928 = vmatprep.subr.mxu0 %v582
    %929 = vmatpush1.msra.mxu0 %v581
    %930 = vmatprep.subr.mxu0 %v584
    %931 = vmatpush1.msra.mxu0 %v583
    %932 = vmatprep.subr.mxu0 %v586
    %933 = vmatpush1.msra.mxu0 %v585
    %934 = vmatprep.subr.mxu0 %v588
    %935 = vmatpush1.msra.mxu0 %v587
    %936 = vmatprep.subr.mxu0 %v590
    %937 = vmatpush1.msra.mxu0 %v589
    %938 = vmatprep.subr.mxu0 %v592
    %939 = vmatpush1.msra.mxu0 %v591
    %940 = vmatprep.subr.mxu0 %v594
    %941 = vmatpush1.msra.mxu0 %v593
    %942 = vmatprep.subr.mxu0 %v596
    %943 = vmatpush1.msra.mxu0 %v595
    %944 = vmatprep.subr.mxu0 %v598
    %945 = vmatpush1.msra.mxu0 %v597
    %946 = vmatprep.subr.mxu0 %v600
    %947 = vmatpush1.msra.mxu0 %v599
    %948 = vmatprep.subr.mxu0 %v602
    %949 = vmatpush1.msra.mxu0 %v601
    %950 = vmatprep.subr.mxu0 %v604
    %951 = vmatpush1.msra.mxu0 %v603
    %952 = vmatprep.subr.mxu0 %v606
    %953 = vmatpush1.msra.mxu0 %v605
    %954 = vmatprep.subr.mxu0 %v608
    %955 = vmatpush1.msra.mxu0 %v607
    %956 = vmatprep.subr.mxu0 %v610
    %957 = vmatpush1.msra.mxu0 %v609
    %958 = vmatprep.subr.mxu0 %v612
    %959 = vmatpush1.msra.mxu0 %v611
    %960 = vmatprep.subr.mxu0 %v614
    %961 = vmatpush1.msra.mxu0 %v613
    %962 = vmatprep.subr.mxu0 %v616
    %963 = vmatpush1.msra.mxu0 %v615
    %964 = vmatprep.subr.mxu0 %v618
    %965 = vmatpush1.msra.mxu0 %v617
    %966 = vmatprep.subr.mxu0 %v620
    %967 = vmatpush1.msra.mxu0 %v619
    %968 = vmatprep.subr.mxu0 %v622
    %969 = vmatpush1.msra.mxu0 %v621
    %970 = vmatprep.subr.mxu0 %v624
    %971 = vmatpush1.msra.mxu0 %v623
    %972 = vmatprep.subr.mxu0 %v626
    %973 = vmatpush1.msra.mxu0 %v625
    %974 = vmatprep.subr.mxu0 %v628
    %975 = vmatpush1.msra.mxu0 %v627
    %976 = vmatprep.subr.mxu0 %v630
    %977 = vmatpush1.msra.mxu0 %v629
    %978 = vmatprep.subr.mxu0 %v632
    %979 = vmatpush1.msra.mxu0 %v631
    %980 = vmatprep.subr.mxu0 %v634
    %981 = vmatpush1.msra.mxu0 %v633
    %982 = vmatprep.subr.mxu0 %v636
    %983 = vmatpush1.msra.mxu0 %v635
    %984 = vmatprep.subr.mxu0 %v638
    %985 = vmatpush1.msra.mxu0 %v637
    %986 = vmatprep.mubr.f32.mxu0 %v40
    %987 = vmatmul.mubr.f32.gmra.mrb[0].mxu0 %v39
    %v988 = vpop.f32.mrb[0].mxu0
    %v989 = vadd.f32 %v912, %v988
    %v990 = vpop.f32.mrb[0].mxu0
    %v991 = vadd.f32 %v914, %v990
    %992 = vmatprep.mubr.f32.mxu0 %v43
    %993 = vmatmul.mubr.f32.gmra.mrb[0].mxu0 %v42
    %v994 = vpop.f32.mrb[0].mxu0
    %v995 = vadd.f32 %v918, %v994
    %v996 = vpop.f32.mrb[0].mxu0
    %v997 = vadd.f32 %v920, %v996
    %998 = vdwg.mxu0
    %999 = vmatprep.subr.mxu0 %v640
    %1000 = vmatpush1.msra.mxu0 %v639
    %1001 = vmatprep.subr.mxu0 %v642
    %1002 = vmatpush1.msra.mxu0 %v641
    %1003 = vmatprep.subr.mxu0 %v644
    %1004 = vmatpush1.msra.mxu0 %v643
    %1005 = vmatprep.subr.mxu0 %v646
    %1006 = vmatpush1.msra.mxu0 %v645
    %1007 = vmatprep.subr.mxu0 %v648
    %1008 = vmatpush1.msra.mxu0 %v647
    %1009 = vmatprep.subr.mxu0 %v650
    %1010 = vmatpush1.msra.mxu0 %v649
    %1011 = vmatprep.subr.mxu0 %v652
    %1012 = vmatpush1.msra.mxu0 %v651
    %1013 = vmatprep.subr.mxu0 %v654
    %1014 = vmatpush1.msra.mxu0 %v653
    %1015 = vmatprep.subr.mxu0 %v656
    %1016 = vmatpush1.msra.mxu0 %v655
    %1017 = vmatprep.subr.mxu0 %v658
    %1018 = vmatpush1.msra.mxu0 %v657
    %1019 = vmatprep.subr.mxu0 %v660
    %1020 = vmatpush1.msra.mxu0 %v659
    %1021 = vmatprep.subr.mxu0 %v662
    %1022 = vmatpush1.msra.mxu0 %v661
    %1023 = vmatprep.subr.mxu0 %v664
    %1024 = vmatpush1.msra.mxu0 %v663
    %1025 = vmatprep.subr.mxu0 %v666
    %1026 = vmatpush1.msra.mxu0 %v665
    %1027 = vmatprep.subr.mxu0 %v668
    %1028 = vmatpush1.msra.mxu0 %v667
    %1029 = vmatprep.subr.mxu0 %v670
    %1030 = vmatpush1.msra.mxu0 %v669
    %1031 = vmatprep.subr.mxu0 0.0
    %1032 = vmatpush1.msra.mxu0 0.0
    %1033 = vmatprep.subr.mxu0 0.0
    %1034 = vmatpush1.msra.mxu0 0.0
    %1035 = vmatprep.subr.mxu0 0.0
    %1036 = vmatpush1.msra.mxu0 0.0
    %1037 = vmatprep.subr.mxu0 0.0
    %1038 = vmatpush1.msra.mxu0 0.0
    %1039 = vmatprep.subr.mxu0 0.0
    %1040 = vmatpush1.msra.mxu0 0.0
    %1041 = vmatprep.subr.mxu0 0.0
    %1042 = vmatpush1.msra.mxu0 0.0
    %1043 = vmatprep.subr.mxu0 0.0
    %1044 = vmatpush1.msra.mxu0 0.0
    %1045 = vmatprep.subr.mxu0 0.0
    %1046 = vmatpush1.msra.mxu0 0.0
    %1047 = vmatprep.subr.mxu0 0.0
    %1048 = vmatpush1.msra.mxu0 0.0
    %1049 = vmatprep.subr.mxu0 0.0
    %1050 = vmatpush1.msra.mxu0 0.0
    %1051 = vmatprep.subr.mxu0 0.0
    %1052 = vmatpush1.msra.mxu0 0.0
    %1053 = vmatprep.subr.mxu0 0.0
    %1054 = vmatpush1.msra.mxu0 0.0
    %1055 = vmatprep.subr.mxu0 0.0
    %1056 = vmatpush1.msra.mxu0 0.0
    %1057 = vmatprep.subr.mxu0 0.0
    %1058 = vmatpush1.msra.mxu0 0.0
    %1059 = vmatprep.subr.mxu0 0.0
    %1060 = vmatpush1.msra.mxu0 0.0
    %1061 = vmatprep.subr.mxu0 0.0
    %1062 = vmatpush1.msra.mxu0 0.0
    %1063 = vmatprep.mubr.f32.mxu0 0.0
    %1064 = vmatmul.mubr.f32.gmra.mrb[0].mxu0 %v41
    %v1065 = vpop.f32.mrb[0].mxu0
    %v1066 = vadd.f32 %v989, %v1065
    %v1067 = vpop.f32.mrb[0].mxu0
    %v1068 = vadd.f32 %v991, %v1067
    %1069 = vmatprep.mubr.f32.mxu0 0.0
    %1070 = vmatmul.mubr.f32.gmra.mrb[0].mxu0 %v44
    %v1071 = vpop.f32.mrb[0].mxu0
    %v1072 = vadd.f32 %v995, %v1071
    %v1073 = vpop.f32.mrb[0].mxu0
    %v1074 = vadd.f32 %v997, %v1073
    %1075 = vdwg.mxu0
    %v1076 = vmax.f32 %v564, %v1066
    %v1077 = vmax.f32 %v566, %v1068
    %v1078 = vmax.f32 %v570, %v1072
    %v1079 = vmax.f32 %v572, %v1074
    %s1080 = scalar_lea.vmem %s1, 3072
    %v1081 = vld [vmem:[%s1080] sm:$0xff]
    %v1082 = vld [vmem:[%s1080 + $0x8] sm:$0xff]
    %v1083 = vld [vmem:[%s1080 + $0x10] sm:$0xff]
    %v1084 = vld [vmem:[%s1080 + $0x18] sm:$0xff]
    %v1085 = vld [vmem:[%s1080 + $0x20] sm:$0xff]
    %v1086 = vld [vmem:[%s1080 + $0x28] sm:$0xff]
    %v1087 = vld [vmem:[%s1080 + $0x30] sm:$0xff]
    %v1088 = vld [vmem:[%s1080 + $0x38] sm:$0xff]
    %v1089 = vld [vmem:[%s1080 + $0x40] sm:$0xff]
    %v1090 = vld [vmem:[%s1080 + $0x48] sm:$0xff]
    %v1091 = vld [vmem:[%s1080 + $0x50] sm:$0xff]
    %v1092 = vld [vmem:[%s1080 + $0x58] sm:$0xff]
    %v1093 = vld [vmem:[%s1080 + $0x60] sm:$0xff]
    %v1094 = vld [vmem:[%s1080 + $0x68] sm:$0xff]
    %v1095 = vld [vmem:[%s1080 + $0x70] sm:$0xff]
    %v1096 = vld [vmem:[%s1080 + $0x78] sm:$0xff]
    %v1097 = vld [vmem:[%s1080 + $0x80] sm:$0xff]
    %v1098 = vld [vmem:[%s1080 + $0x88] sm:$0xff]
    %v1099 = vld [vmem:[%s1080 + $0x90] sm:$0xff]
    %v1100 = vld [vmem:[%s1080 + $0x98] sm:$0xff]
    %v1101 = vld [vmem:[%s1080 + $0xa0] sm:$0xff]
    %v1102 = vld [vmem:[%s1080 + $0xa8] sm:$0xff]
    %v1103 = vld [vmem:[%s1080 + $0xb0] sm:$0xff]
    %v1104 = vld [vmem:[%s1080 + $0xb8] sm:$0xff]
    %v1105 = vld [vmem:[%s1080 + $0xc0] sm:$0xff]
    %v1106 = vld [vmem:[%s1080 + $0xc8] sm:$0xff]
    %v1107 = vld [vmem:[%s1080 + $0xd0] sm:$0xff]
    %v1108 = vld [vmem:[%s1080 + $0xd8] sm:$0xff]
    %v1109 = vld [vmem:[%s1080 + $0xe0] sm:$0xff]
    %v1110 = vld [vmem:[%s1080 + $0xe8] sm:$0xff]
    %v1111 = vld [vmem:[%s1080 + $0xf0] sm:$0xff]
    %v1112 = vld [vmem:[%s1080 + $0xf8] sm:$0xff]
    %v1113 = vld [vmem:[%s1080 + $0x100] sm:$0xff]
    %v1114 = vld [vmem:[%s1080 + $0x108] sm:$0xff]
    %v1115 = vld [vmem:[%s1080 + $0x110] sm:$0xff]
    %v1116 = vld [vmem:[%s1080 + $0x118] sm:$0xff]
    %v1117 = vld [vmem:[%s1080 + $0x120] sm:$0xff]
    %v1118 = vld [vmem:[%s1080 + $0x128] sm:$0xff]
    %v1119 = vld [vmem:[%s1080 + $0x130] sm:$0xff]
    %v1120 = vld [vmem:[%s1080 + $0x138] sm:$0xff]
    %v1121 = vld [vmem:[%s1080 + $0x140] sm:$0xff]
    %v1122 = vld [vmem:[%s1080 + $0x148] sm:$0xff]
    %v1123 = vld [vmem:[%s1080 + $0x150] sm:$0xff]
    %v1124 = vld [vmem:[%s1080 + $0x158] sm:$0xff]
    %v1125 = vld [vmem:[%s1080 + $0x160] sm:$0xff]
    %v1126 = vld [vmem:[%s1080 + $0x168] sm:$0xff]
    %v1127 = vld [vmem:[%s1080 + $0x170] sm:$0xff]
    %v1128 = vld [vmem:[%s1080 + $0x178] sm:$0xff]
    %v1129 = vld [vmem:[%s1080 + $0x180] sm:$0xff]
    %v1130 = vld [vmem:[%s1080 + $0x188] sm:$0xff]
    %v1131 = vld [vmem:[%s1080 + $0x190] sm:$0xff]
    %v1132 = vld [vmem:[%s1080 + $0x198] sm:$0xff]
    %v1133 = vld [vmem:[%s1080 + $0x1a0] sm:$0xff]
    %v1134 = vld [vmem:[%s1080 + $0x1a8] sm:$0xff]
    %v1135 = vld [vmem:[%s1080 + $0x1b0] sm:$0xff]
    %v1136 = vld [vmem:[%s1080 + $0x1b8] sm:$0xff]
    %v1137 = vld [vmem:[%s1080 + $0x1c0] sm:$0xff]
    %v1138 = vld [vmem:[%s1080 + $0x1c8] sm:$0xff]
    %v1139 = vld [vmem:[%s1080 + $0x1d0] sm:$0xff]
    %v1140 = vld [vmem:[%s1080 + $0x1d8] sm:$0xff]
    %v1141 = vld [vmem:[%s1080 + $0x1e0] sm:$0xff]
    %v1142 = vld [vmem:[%s1080 + $0x1e8] sm:$0xff]
    %v1143 = vld [vmem:[%s1080 + $0x1f0] sm:$0xff]
    %v1144 = vld [vmem:[%s1080 + $0x1f8] sm:$0xff]
    %v1145 = vld [vmem:[%s1080 + $0x200] sm:$0xff]
    %v1146 = vld [vmem:[%s1080 + $0x208] sm:$0xff]
    %v1147 = vld [vmem:[%s1080 + $0x210] sm:$0xff]
    %v1148 = vld [vmem:[%s1080 + $0x218] sm:$0xff]
    %v1149 = vld [vmem:[%s1080 + $0x220] sm:$0xff]
    %v1150 = vld [vmem:[%s1080 + $0x228] sm:$0xff]
    %v1151 = vld [vmem:[%s1080 + $0x230] sm:$0xff]
    %v1152 = vld [vmem:[%s1080 + $0x238] sm:$0xff]
    %v1153 = vld [vmem:[%s1080 + $0x240] sm:$0xff]
    %v1154 = vld [vmem:[%s1080 + $0x248] sm:$0xff]
    %v1155 = vld [vmem:[%s1080 + $0x250] sm:$0xff]
    %v1156 = vld [vmem:[%s1080 + $0x258] sm:$0xff]
    %v1157 = vld [vmem:[%s1080 + $0x260] sm:$0xff]
    %v1158 = vld [vmem:[%s1080 + $0x268] sm:$0xff]
    %v1159 = vld [vmem:[%s1080 + $0x270] sm:$0xff]
    %v1160 = vld [vmem:[%s1080 + $0x278] sm:$0xff]
    %v1161 = vld [vmem:[%s1080 + $0x280] sm:$0xff]
    %v1162 = vld [vmem:[%s1080 + $0x288] sm:$0xff]
    %v1163 = vld [vmem:[%s1080 + $0x290] sm:$0xff]
    %v1164 = vld [vmem:[%s1080 + $0x298] sm:$0xff]
    %v1165 = vld [vmem:[%s1080 + $0x2a0] sm:$0xff]
    %v1166 = vld [vmem:[%s1080 + $0x2a8] sm:$0xff]
    %v1167 = vld [vmem:[%s1080 + $0x2b0] sm:$0xff]
    %v1168 = vld [vmem:[%s1080 + $0x2b8] sm:$0xff]
    %v1169 = vld [vmem:[%s1080 + $0x2c0] sm:$0xff]
    %v1170 = vld [vmem:[%s1080 + $0x2c8] sm:$0xff]
    %v1171 = vld [vmem:[%s1080 + $0x2d0] sm:$0xff]
    %v1172 = vld [vmem:[%s1080 + $0x2d8] sm:$0xff]
    %v1173 = vld [vmem:[%s1080 + $0x2e0] sm:$0xff]
    %v1174 = vld [vmem:[%s1080 + $0x2e8] sm:$0xff]
    %v1175 = vld [vmem:[%s1080 + $0x2f0] sm:$0xff]
    %v1176 = vld [vmem:[%s1080 + $0x2f8] sm:$0xff]
    %s1177 = scalar_lea.vmem %s1, 3840
    %v1178 = vld [vmem:[%s1177] sm:$0xff]
    %v1179 = vld [vmem:[%s1177 + $0x8] sm:$0xff]
    %v1180 = vld [vmem:[%s1177 + $0x10] sm:$0xff]
    %v1181 = vld [vmem:[%s1177 + $0x18] sm:$0xff]
    %v1182 = vld [vmem:[%s1177 + $0x20] sm:$0xff]
    %v1183 = vld [vmem:[%s1177 + $0x28] sm:$0xff]
    %v1184 = vld [vmem:[%s1177 + $0x30] sm:$0xff]
    %v1185 = vld [vmem:[%s1177 + $0x38] sm:$0xff]
    %v1186 = vld [vmem:[%s1177 + $0x40] sm:$0xff]
    %v1187 = vld [vmem:[%s1177 + $0x48] sm:$0xff]
    %v1188 = vld [vmem:[%s1177 + $0x50] sm:$0xff]
    %v1189 = vld [vmem:[%s1177 + $0x58] sm:$0xff]
    %v1190 = vld [vmem:[%s1177 + $0x60] sm:$0xff]
    %v1191 = vld [vmem:[%s1177 + $0x68] sm:$0xff]
    %v1192 = vld [vmem:[%s1177 + $0x70] sm:$0xff]
    %v1193 = vld [vmem:[%s1177 + $0x78] sm:$0xff]
    %v1194 = vld [vmem:[%s1177 + $0x80] sm:$0xff]
    %v1195 = vld [vmem:[%s1177 + $0x88] sm:$0xff]
    %v1196 = vld [vmem:[%s1177 + $0x90] sm:$0xff]
    %v1197 = vld [vmem:[%s1177 + $0x98] sm:$0xff]
    %v1198 = vld [vmem:[%s1177 + $0xa0] sm:$0xff]
    %v1199 = vld [vmem:[%s1177 + $0xa8] sm:$0xff]
    %v1200 = vld [vmem:[%s1177 + $0xb0] sm:$0xff]
    %v1201 = vld [vmem:[%s1177 + $0xb8] sm:$0xff]
    %v1202 = vld [vmem:[%s1177 + $0xc0] sm:$0xff]
    %v1203 = vld [vmem:[%s1177 + $0xc8] sm:$0xff]
    %v1204 = vld [vmem:[%s1177 + $0xd0] sm:$0xff]
    %v1205 = vld [vmem:[%s1177 + $0xd8] sm:$0xff]
    %v1206 = vld [vmem:[%s1177 + $0xe0] sm:$0xff]
    %v1207 = vld [vmem:[%s1177 + $0xe8] sm:$0xff]
    %v1208 = vld [vmem:[%s1177 + $0xf0] sm:$0xff]
    %v1209 = vld [vmem:[%s1177 + $0xf8] sm:$0xff]
    %v1210 = vld [vmem:[%s1177 + $0x100] sm:$0xff]
    %v1211 = vld [vmem:[%s1177 + $0x108] sm:$0xff]
    %v1212 = vld [vmem:[%s1177 + $0x110] sm:$0xff]
    %v1213 = vld [vmem:[%s1177 + $0x118] sm:$0xff]
    %v1214 = vld [vmem:[%s1177 + $0x120] sm:$0xff]
    %v1215 = vld [vmem:[%s1177 + $0x128] sm:$0xff]
    %v1216 = vld [vmem:[%s1177 + $0x130] sm:$0xff]
    %v1217 = vld [vmem:[%s1177 + $0x138] sm:$0xff]
    %v1218 = vld [vmem:[%s1177 + $0x140] sm:$0xff]
    %v1219 = vld [vmem:[%s1177 + $0x148] sm:$0xff]
    %v1220 = vld [vmem:[%s1177 + $0x150] sm:$0xff]
    %v1221 = vld [vmem:[%s1177 + $0x158] sm:$0xff]
    %v1222 = vld [vmem:[%s1177 + $0x160] sm:$0xff]
    %v1223 = vld [vmem:[%s1177 + $0x168] sm:$0xff]
    %v1224 = vld [vmem:[%s1177 + $0x170] sm:$0xff]
    %v1225 = vld [vmem:[%s1177 + $0x178] sm:$0xff]
    %v1226 = vld [vmem:[%s1177 + $0x180] sm:$0xff]
    %v1227 = vld [vmem:[%s1177 + $0x188] sm:$0xff]
    %v1228 = vld [vmem:[%s1177 + $0x190] sm:$0xff]
    %v1229 = vld [vmem:[%s1177 + $0x198] sm:$0xff]
    %v1230 = vld [vmem:[%s1177 + $0x1a0] sm:$0xff]
    %v1231 = vld [vmem:[%s1177 + $0x1a8] sm:$0xff]
    %v1232 = vld [vmem:[%s1177 + $0x1b0] sm:$0xff]
    %v1233 = vld [vmem:[%s1177 + $0x1b8] sm:$0xff]
    %v1234 = vld [vmem:[%s1177 + $0x1c0] sm:$0xff]
    %v1235 = vld [vmem:[%s1177 + $0x1c8] sm:$0xff]
    %v1236 = vld [vmem:[%s1177 + $0x1d0] sm:$0xff]
    %v1237 = vld [vmem:[%s1177 + $0x1d8] sm:$0xff]
    %v1238 = vld [vmem:[%s1177 + $0x1e0] sm:$0xff]
    %v1239 = vld [vmem:[%s1177 + $0x1e8] sm:$0xff]
    %v1240 = vld [vmem:[%s1177 + $0x1f0] sm:$0xff]
    %v1241 = vld [vmem:[%s1177 + $0x1f8] sm:$0xff]
    %v1242 = vld [vmem:[%s1177 + $0x200] sm:$0xff]
    %v1243 = vld [vmem:[%s1177 + $0x208] sm:$0xff]
    %v1244 = vld [vmem:[%s1177 + $0x210] sm:$0xff]
    %v1245 = vld [vmem:[%s1177 + $0x218] sm:$0xff]
    %v1246 = vld [vmem:[%s1177 + $0x220] sm:$0xff]
    %v1247 = vld [vmem:[%s1177 + $0x228] sm:$0xff]
    %v1248 = vld [vmem:[%s1177 + $0x230] sm:$0xff]
    %v1249 = vld [vmem:[%s1177 + $0x238] sm:$0xff]
    %v1250 = vld [vmem:[%s1177 + $0x240] sm:$0xff]
    %v1251 = vld [vmem:[%s1177 + $0x248] sm:$0xff]
    %v1252 = vld [vmem:[%s1177 + $0x250] sm:$0xff]
    %v1253 = vld [vmem:[%s1177 + $0x258] sm:$0xff]
    %v1254 = vld [vmem:[%s1177 + $0x260] sm:$0xff]
    %v1255 = vld [vmem:[%s1177 + $0x268] sm:$0xff]
    %v1256 = vld [vmem:[%s1177 + $0x270] sm:$0xff]
    %v1257 = vld [vmem:[%s1177 + $0x278] sm:$0xff]
    %v1258 = vld [vmem:[%s1177 + $0x280] sm:$0xff]
    %v1259 = vld [vmem:[%s1177 + $0x288] sm:$0xff]
    %v1260 = vld [vmem:[%s1177 + $0x290] sm:$0xff]
    %v1261 = vld [vmem:[%s1177 + $0x298] sm:$0xff]
    %v1262 = vld [vmem:[%s1177 + $0x2a0] sm:$0xff]
    %v1263 = vld [vmem:[%s1177 + $0x2a8] sm:$0xff]
    %v1264 = vld [vmem:[%s1177 + $0x2b0] sm:$0xff]
    %v1265 = vld [vmem:[%s1177 + $0x2b8] sm:$0xff]
    %v1266 = vld [vmem:[%s1177 + $0x2c0] sm:$0xff]
    %v1267 = vld [vmem:[%s1177 + $0x2c8] sm:$0xff]
    %v1268 = vld [vmem:[%s1177 + $0x2d0] sm:$0xff]
    %v1269 = vld [vmem:[%s1177 + $0x2d8] sm:$0xff]
    %v1270 = vld [vmem:[%s1177 + $0x2e0] sm:$0xff]
    %v1271 = vld [vmem:[%s1177 + $0x2e8] sm:$0xff]
    %v1272 = vld [vmem:[%s1177 + $0x2f0] sm:$0xff]
    %v1273 = vld [vmem:[%s1177 + $0x2f8] sm:$0xff]
    %1274 = vmatprep.subr.mxu0 %v1179
    %1275 = vmatpush1.msra.mxu0 %v1178
    %1276 = vmatprep.subr.mxu0 %v1181
    %1277 = vmatpush1.msra.mxu0 %v1180
    %1278 = vmatprep.subr.mxu0 %v1183
    %1279 = vmatpush1.msra.mxu0 %v1182
    %1280 = vmatprep.subr.mxu0 %v1185
    %1281 = vmatpush1.msra.mxu0 %v1184
    %1282 = vmatprep.subr.mxu0 %v1187
    %1283 = vmatpush1.msra.mxu0 %v1186
    %1284 = vmatprep.subr.mxu0 %v1189
    %1285 = vmatpush1.msra.mxu0 %v1188
    %1286 = vmatprep.subr.mxu0 %v1191
    %1287 = vmatpush1.msra.mxu0 %v1190
    %1288 = vmatprep.subr.mxu0 %v1193
    %1289 = vmatpush1.msra.mxu0 %v1192
    %1290 = vmatprep.subr.mxu0 %v1195
    %1291 = vmatpush1.msra.mxu0 %v1194
    %1292 = vmatprep.subr.mxu0 %v1197
    %1293 = vmatpush1.msra.mxu0 %v1196
    %1294 = vmatprep.subr.mxu0 %v1199
    %1295 = vmatpush1.msra.mxu0 %v1198
    %1296 = vmatprep.subr.mxu0 %v1201
    %1297 = vmatpush1.msra.mxu0 %v1200
    %1298 = vmatprep.subr.mxu0 %v1203
    %1299 = vmatpush1.msra.mxu0 %v1202
    %1300 = vmatprep.subr.mxu0 %v1205
    %1301 = vmatpush1.msra.mxu0 %v1204
    %1302 = vmatprep.subr.mxu0 %v1207
    %1303 = vmatpush1.msra.mxu0 %v1206
    %1304 = vmatprep.subr.mxu0 %v1209
    %1305 = vmatpush1.msra.mxu0 %v1208
    %1306 = vmatprep.subr.mxu0 %v1211
    %1307 = vmatpush1.msra.mxu0 %v1210
    %1308 = vmatprep.subr.mxu0 %v1213
    %1309 = vmatpush1.msra.mxu0 %v1212
    %1310 = vmatprep.subr.mxu0 %v1215
    %1311 = vmatpush1.msra.mxu0 %v1214
    %1312 = vmatprep.subr.mxu0 %v1217
    %1313 = vmatpush1.msra.mxu0 %v1216
    %1314 = vmatprep.subr.mxu0 %v1219
    %1315 = vmatpush1.msra.mxu0 %v1218
    %1316 = vmatprep.subr.mxu0 %v1221
    %1317 = vmatpush1.msra.mxu0 %v1220
    %1318 = vmatprep.subr.mxu0 %v1223
    %1319 = vmatpush1.msra.mxu0 %v1222
    %1320 = vmatprep.subr.mxu0 %v1225
    %1321 = vmatpush1.msra.mxu0 %v1224
    %1322 = vmatprep.subr.mxu0 %v1227
    %1323 = vmatpush1.msra.mxu0 %v1226
    %1324 = vmatprep.subr.mxu0 %v1229
    %1325 = vmatpush1.msra.mxu0 %v1228
    %1326 = vmatprep.subr.mxu0 %v1231
    %1327 = vmatpush1.msra.mxu0 %v1230
    %1328 = vmatprep.subr.mxu0 %v1233
    %1329 = vmatpush1.msra.mxu0 %v1232
    %1330 = vmatprep.subr.mxu0 %v1235
    %1331 = vmatpush1.msra.mxu0 %v1234
    %1332 = vmatprep.subr.mxu0 %v1237
    %1333 = vmatpush1.msra.mxu0 %v1236
    %1334 = vmatprep.subr.mxu0 %v1239
    %1335 = vmatpush1.msra.mxu0 %v1238
    %1336 = vmatprep.subr.mxu0 %v1241
    %1337 = vmatpush1.msra.mxu0 %v1240
    %1338 = vmatprep.mubr.f32.mxu0 %v256
    %1339 = vmatmul.mubr.f32.gmra.mrb[0].mxu0 %v253
    %v1340 = vpop.f32.mrb[0].mxu0
    %v1341 = vadd.f32 0.0, %v1340
    %v1342 = vpop.f32.mrb[0].mxu0
    %v1343 = vadd.f32 0.0, %v1342
    %1344 = vmatprep.mubr.f32.mxu0 %v255
    %1345 = vmatmul.mubr.f32.gmra.mrb[0].mxu0 %v252
    %v1346 = vpop.f32.mrb[0].mxu0
    %v1347 = vadd.f32 0.0, %v1346
    %v1348 = vpop.f32.mrb[0].mxu0
    %v1349 = vadd.f32 0.0, %v1348
    %1350 = vdwg.mxu0
    %1351 = vmatprep.subr.mxu0 %v1243
    %1352 = vmatpush1.msra.mxu0 %v1242
    %1353 = vmatprep.subr.mxu0 %v1245
    %1354 = vmatpush1.msra.mxu0 %v1244
    %1355 = vmatprep.subr.mxu0 %v1247
    %1356 = vmatpush1.msra.mxu0 %v1246
    %1357 = vmatprep.subr.mxu0 %v1249
    %1358 = vmatpush1.msra.mxu0 %v1248
    %1359 = vmatprep.subr.mxu0 %v1251
    %1360 = vmatpush1.msra.mxu0 %v1250
    %1361 = vmatprep.subr.mxu0 %v1253
    %1362 = vmatpush1.msra.mxu0 %v1252
    %1363 = vmatprep.subr.mxu0 %v1255
    %1364 = vmatpush1.msra.mxu0 %v1254
    %1365 = vmatprep.subr.mxu0 %v1257
    %1366 = vmatpush1.msra.mxu0 %v1256
    %1367 = vmatprep.subr.mxu0 %v1259
    %1368 = vmatpush1.msra.mxu0 %v1258
    %1369 = vmatprep.subr.mxu0 %v1261
    %1370 = vmatpush1.msra.mxu0 %v1260
    %1371 = vmatprep.subr.mxu0 %v1263
    %1372 = vmatpush1.msra.mxu0 %v1262
    %1373 = vmatprep.subr.mxu0 %v1265
    %1374 = vmatpush1.msra.mxu0 %v1264
    %1375 = vmatprep.subr.mxu0 %v1267
    %1376 = vmatpush1.msra.mxu0 %v1266
    %1377 = vmatprep.subr.mxu0 %v1269
    %1378 = vmatpush1.msra.mxu0 %v1268
    %1379 = vmatprep.subr.mxu0 %v1271
    %1380 = vmatpush1.msra.mxu0 %v1270
    %1381 = vmatprep.subr.mxu0 %v1273
    %1382 = vmatpush1.msra.mxu0 %v1272
    %1383 = vmatprep.subr.mxu0 0.0
    %1384 = vmatpush1.msra.mxu0 0.0
    %1385 = vmatprep.subr.mxu0 0.0
    %1386 = vmatpush1.msra.mxu0 0.0
    %1387 = vmatprep.subr.mxu0 0.0
    %1388 = vmatpush1.msra.mxu0 0.0
    %1389 = vmatprep.subr.mxu0 0.0
    %1390 = vmatpush1.msra.mxu0 0.0
    %1391 = vmatprep.subr.mxu0 0.0
    %1392 = vmatpush1.msra.mxu0 0.0
    %1393 = vmatprep.subr.mxu0 0.0
    %1394 = vmatpush1.msra.mxu0 0.0
    %1395 = vmatprep.subr.mxu0 0.0
    %1396 = vmatpush1.msra.mxu0 0.0
    %1397 = vmatprep.subr.mxu0 0.0
    %1398 = vmatpush1.msra.mxu0 0.0
    %1399 = vmatprep.subr.mxu0 0.0
    %1400 = vmatpush1.msra.mxu0 0.0
    %1401 = vmatprep.subr.mxu0 0.0
    %1402 = vmatpush1.msra.mxu0 0.0
    %1403 = vmatprep.subr.mxu0 0.0
    %1404 = vmatpush1.msra.mxu0 0.0
    %1405 = vmatprep.subr.mxu0 0.0
    %1406 = vmatpush1.msra.mxu0 0.0
    %1407 = vmatprep.subr.mxu0 0.0
    %1408 = vmatpush1.msra.mxu0 0.0
    %1409 = vmatprep.subr.mxu0 0.0
    %1410 = vmatpush1.msra.mxu0 0.0
    %1411 = vmatprep.subr.mxu0 0.0
    %1412 = vmatpush1.msra.mxu0 0.0
    %1413 = vmatprep.subr.mxu0 0.0
    %1414 = vmatpush1.msra.mxu0 0.0
    %1415 = vmatprep.mubr.f32.mxu0 0.0
    %1416 = vmatmul.mubr.f32.gmra.mrb[0].mxu0 %v259
    %v1417 = vpop.f32.mrb[0].mxu0
    %v1418 = vadd.f32 %v1341, %v1417
    %v1419 = vpop.f32.mrb[0].mxu0
    %v1420 = vadd.f32 %v1343, %v1419
    %1421 = vmatprep.mubr.f32.mxu0 0.0
    %1422 = vmatmul.mubr.f32.gmra.mrb[0].mxu0 %v258
    %v1423 = vpop.f32.mrb[0].mxu0
    %v1424 = vadd.f32 %v1347, %v1423
    %v1425 = vpop.f32.mrb[0].mxu0
    %v1426 = vadd.f32 %v1349, %v1425
    %1427 = vdwg.mxu0
    %1428 = vmatprep.subr.mxu0 %v1082
    %1429 = vmatpush1.msra.mxu0 %v1081
    %1430 = vmatprep.subr.mxu0 %v1084
    %1431 = vmatpush1.msra.mxu0 %v1083
    %1432 = vmatprep.subr.mxu0 %v1086
    %1433 = vmatpush1.msra.mxu0 %v1085
    %1434 = vmatprep.subr.mxu0 %v1088
    %1435 = vmatpush1.msra.mxu0 %v1087
    %1436 = vmatprep.subr.mxu0 %v1090
    %1437 = vmatpush1.msra.mxu0 %v1089
    %1438 = vmatprep.subr.mxu0 %v1092
    %1439 = vmatpush1.msra.mxu0 %v1091
    %1440 = vmatprep.subr.mxu0 %v1094
    %1441 = vmatpush1.msra.mxu0 %v1093
    %1442 = vmatprep.subr.mxu0 %v1096
    %1443 = vmatpush1.msra.mxu0 %v1095
    %1444 = vmatprep.subr.mxu0 %v1098
    %1445 = vmatpush1.msra.mxu0 %v1097
    %1446 = vmatprep.subr.mxu0 %v1100
    %1447 = vmatpush1.msra.mxu0 %v1099
    %1448 = vmatprep.subr.mxu0 %v1102
    %1449 = vmatpush1.msra.mxu0 %v1101
    %1450 = vmatprep.subr.mxu0 %v1104
    %1451 = vmatpush1.msra.mxu0 %v1103
    %1452 = vmatprep.subr.mxu0 %v1106
    %1453 = vmatpush1.msra.mxu0 %v1105
    %1454 = vmatprep.subr.mxu0 %v1108
    %1455 = vmatpush1.msra.mxu0 %v1107
    %1456 = vmatprep.subr.mxu0 %v1110
    %1457 = vmatpush1.msra.mxu0 %v1109
    %1458 = vmatprep.subr.mxu0 %v1112
    %1459 = vmatpush1.msra.mxu0 %v1111
    %1460 = vmatprep.subr.mxu0 %v1114
    %1461 = vmatpush1.msra.mxu0 %v1113
    %1462 = vmatprep.subr.mxu0 %v1116
    %1463 = vmatpush1.msra.mxu0 %v1115
    %1464 = vmatprep.subr.mxu0 %v1118
    %1465 = vmatpush1.msra.mxu0 %v1117
    %1466 = vmatprep.subr.mxu0 %v1120
    %1467 = vmatpush1.msra.mxu0 %v1119
    %1468 = vmatprep.subr.mxu0 %v1122
    %1469 = vmatpush1.msra.mxu0 %v1121
    %1470 = vmatprep.subr.mxu0 %v1124
    %1471 = vmatpush1.msra.mxu0 %v1123
    %1472 = vmatprep.subr.mxu0 %v1126
    %1473 = vmatpush1.msra.mxu0 %v1125
    %1474 = vmatprep.subr.mxu0 %v1128
    %1475 = vmatpush1.msra.mxu0 %v1127
    %1476 = vmatprep.subr.mxu0 %v1130
    %1477 = vmatpush1.msra.mxu0 %v1129
    %1478 = vmatprep.subr.mxu0 %v1132
    %1479 = vmatpush1.msra.mxu0 %v1131
    %1480 = vmatprep.subr.mxu0 %v1134
    %1481 = vmatpush1.msra.mxu0 %v1133
    %1482 = vmatprep.subr.mxu0 %v1136
    %1483 = vmatpush1.msra.mxu0 %v1135
    %1484 = vmatprep.subr.mxu0 %v1138
    %1485 = vmatpush1.msra.mxu0 %v1137
    %1486 = vmatprep.subr.mxu0 %v1140
    %1487 = vmatpush1.msra.mxu0 %v1139
    %1488 = vmatprep.subr.mxu0 %v1142
    %1489 = vmatpush1.msra.mxu0 %v1141
    %1490 = vmatprep.subr.mxu0 %v1144
    %1491 = vmatpush1.msra.mxu0 %v1143
    %1492 = vmatprep.mubr.f32.mxu0 %v40
    %1493 = vmatmul.mubr.f32.gmra.mrb[0].mxu0 %v39
    %v1494 = vpop.f32.mrb[0].mxu0
    %v1495 = vadd.f32 %v1418, %v1494
    %v1496 = vpop.f32.mrb[0].mxu0
    %v1497 = vadd.f32 %v1420, %v1496
    %1498 = vmatprep.mubr.f32.mxu0 %v43
    %1499 = vmatmul.mubr.f32.gmra.mrb[0].mxu0 %v42
    %v1500 = vpop.f32.mrb[0].mxu0
    %v1501 = vadd.f32 %v1424, %v1500
    %v1502 = vpop.f32.mrb[0].mxu0
    %v1503 = vadd.f32 %v1426, %v1502
    %1504 = vdwg.mxu0
    %1505 = vmatprep.subr.mxu0 %v1146
    %1506 = vmatpush1.msra.mxu0 %v1145
    %1507 = vmatprep.subr.mxu0 %v1148
    %1508 = vmatpush1.msra.mxu0 %v1147
    %1509 = vmatprep.subr.mxu0 %v1150
    %1510 = vmatpush1.msra.mxu0 %v1149
    %1511 = vmatprep.subr.mxu0 %v1152
    %1512 = vmatpush1.msra.mxu0 %v1151
    %1513 = vmatprep.subr.mxu0 %v1154
    %1514 = vmatpush1.msra.mxu0 %v1153
    %1515 = vmatprep.subr.mxu0 %v1156
    %1516 = vmatpush1.msra.mxu0 %v1155
    %1517 = vmatprep.subr.mxu0 %v1158
    %1518 = vmatpush1.msra.mxu0 %v1157
    %1519 = vmatprep.subr.mxu0 %v1160
    %1520 = vmatpush1.msra.mxu0 %v1159
    %1521 = vmatprep.subr.mxu0 %v1162
    %1522 = vmatpush1.msra.mxu0 %v1161
    %1523 = vmatprep.subr.mxu0 %v1164
    %1524 = vmatpush1.msra.mxu0 %v1163
    %1525 = vmatprep.subr.mxu0 %v1166
    %1526 = vmatpush1.msra.mxu0 %v1165
    %1527 = vmatprep.subr.mxu0 %v1168
    %1528 = vmatpush1.msra.mxu0 %v1167
    %1529 = vmatprep.subr.mxu0 %v1170
    %1530 = vmatpush1.msra.mxu0 %v1169
    %1531 = vmatprep.subr.mxu0 %v1172
    %1532 = vmatpush1.msra.mxu0 %v1171
    %1533 = vmatprep.subr.mxu0 %v1174
    %1534 = vmatpush1.msra.mxu0 %v1173
    %1535 = vmatprep.subr.mxu0 %v1176
    %1536 = vmatpush1.msra.mxu0 %v1175
    %1537 = vmatprep.subr.mxu0 0.0
    %1538 = vmatpush1.msra.mxu0 0.0
    %1539 = vmatprep.subr.mxu0 0.0
    %1540 = vmatpush1.msra.mxu0 0.0
    %1541 = vmatprep.subr.mxu0 0.0
    %1542 = vmatpush1.msra.mxu0 0.0
    %1543 = vmatprep.subr.mxu0 0.0
    %1544 = vmatpush1.msra.mxu0 0.0
    %1545 = vmatprep.subr.mxu0 0.0
    %1546 = vmatpush1.msra.mxu0 0.0
    %1547 = vmatprep.subr.mxu0 0.0
    %1548 = vmatpush1.msra.mxu0 0.0
    %1549 = vmatprep.subr.mxu0 0.0
    %1550 = vmatpush1.msra.mxu0 0.0
    %1551 = vmatprep.subr.mxu0 0.0
    %1552 = vmatpush1.msra.mxu0 0.0
    %1553 = vmatprep.subr.mxu0 0.0
    %1554 = vmatpush1.msra.mxu0 0.0
    %1555 = vmatprep.subr.mxu0 0.0
    %1556 = vmatpush1.msra.mxu0 0.0
    %1557 = vmatprep.subr.mxu0 0.0
    %1558 = vmatpush1.msra.mxu0 0.0
    %1559 = vmatprep.subr.mxu0 0.0
    %1560 = vmatpush1.msra.mxu0 0.0
    %1561 = vmatprep.subr.mxu0 0.0
    %1562 = vmatpush1.msra.mxu0 0.0
    %1563 = vmatprep.subr.mxu0 0.0
    %1564 = vmatpush1.msra.mxu0 0.0
    %1565 = vmatprep.subr.mxu0 0.0
    %1566 = vmatpush1.msra.mxu0 0.0
    %1567 = vmatprep.subr.mxu0 0.0
    %1568 = vmatpush1.msra.mxu0 0.0
    %1569 = vmatprep.mubr.f32.mxu0 0.0
    %1570 = vmatmul.mubr.f32.gmra.mrb[0].mxu0 %v41
    %v1571 = vpop.f32.mrb[0].mxu0
    %v1572 = vadd.f32 %v1495, %v1571
    %v1573 = vpop.f32.mrb[0].mxu0
    %v1574 = vadd.f32 %v1497, %v1573
    %1575 = vmatprep.mubr.f32.mxu0 0.0
    %1576 = vmatmul.mubr.f32.gmra.mrb[0].mxu0 %v44
    %v1577 = vpop.f32.mrb[0].mxu0
    %v1578 = vadd.f32 %v1501, %v1577
    %v1579 = vpop.f32.mrb[0].mxu0
    %v1580 = vadd.f32 %v1503, %v1579
    %1581 = vdwg.mxu0
    %v1582 = vmax.f32 %v1076, %v1572
    %v1583 = vmax.f32 %v1077, %v1574
    %v1584 = vmax.f32 %v1078, %v1578
    %v1585 = vmax.f32 %v1079, %v1580
    %s1586 = scalar_lea.vmem %s1, 4608
    %v1587 = vld [vmem:[%s1586] sm:$0xff]
    %v1588 = vld [vmem:[%s1586 + $0x8] sm:$0xff]
    %v1589 = vld [vmem:[%s1586 + $0x10] sm:$0xff]
    %v1590 = vld [vmem:[%s1586 + $0x18] sm:$0xff]
    %v1591 = vld [vmem:[%s1586 + $0x20] sm:$0xff]
    %v1592 = vld [vmem:[%s1586 + $0x28] sm:$0xff]
    %v1593 = vld [vmem:[%s1586 + $0x30] sm:$0xff]
    %v1594 = vld [vmem:[%s1586 + $0x38] sm:$0xff]
    %v1595 = vld [vmem:[%s1586 + $0x40] sm:$0xff]
    %v1596 = vld [vmem:[%s1586 + $0x48] sm:$0xff]
    %v1597 = vld [vmem:[%s1586 + $0x50] sm:$0xff]
    %v1598 = vld [vmem:[%s1586 + $0x58] sm:$0xff]
    %v1599 = vld [vmem:[%s1586 + $0x60] sm:$0xff]
    %v1600 = vld [vmem:[%s1586 + $0x68] sm:$0xff]
    %v1601 = vld [vmem:[%s1586 + $0x70] sm:$0xff]
    %v1602 = vld [vmem:[%s1586 + $0x78] sm:$0xff]
    %v1603 = vld [vmem:[%s1586 + $0x80] sm:$0xff]
    %v1604 = vld [vmem:[%s1586 + $0x88] sm:$0xff]
    %v1605 = vld [vmem:[%s1586 + $0x90] sm:$0xff]
    %v1606 = vld [vmem:[%s1586 + $0x98] sm:$0xff]
    %v1607 = vld [vmem:[%s1586 + $0xa0] sm:$0xff]
    %v1608 = vld [vmem:[%s1586 + $0xa8] sm:$0xff]
    %v1609 = vld [vmem:[%s1586 + $0xb0] sm:$0xff]
    %v1610 = vld [vmem:[%s1586 + $0xb8] sm:$0xff]
    %v1611 = vld [vmem:[%s1586 + $0xc0] sm:$0xff]
    %v1612 = vld [vmem:[%s1586 + $0xc8] sm:$0xff]
    %v1613 = vld [vmem:[%s1586 + $0xd0] sm:$0xff]
    %v1614 = vld [vmem:[%s1586 + $0xd8] sm:$0xff]
    %v1615 = vld [vmem:[%s1586 + $0xe0] sm:$0xff]
    %v1616 = vld [vmem:[%s1586 + $0xe8] sm:$0xff]
    %v1617 = vld [vmem:[%s1586 + $0xf0] sm:$0xff]
    %v1618 = vld [vmem:[%s1586 + $0xf8] sm:$0xff]
    %v1619 = vld [vmem:[%s1586 + $0x100] sm:$0xff]
    %v1620 = vld [vmem:[%s1586 + $0x108] sm:$0xff]
    %v1621 = vld [vmem:[%s1586 + $0x110] sm:$0xff]
    %v1622 = vld [vmem:[%s1586 + $0x118] sm:$0xff]
    %v1623 = vld [vmem:[%s1586 + $0x120] sm:$0xff]
    %v1624 = vld [vmem:[%s1586 + $0x128] sm:$0xff]
    %v1625 = vld [vmem:[%s1586 + $0x130] sm:$0xff]
    %v1626 = vld [vmem:[%s1586 + $0x138] sm:$0xff]
    %v1627 = vld [vmem:[%s1586 + $0x140] sm:$0xff]
    %v1628 = vld [vmem:[%s1586 + $0x148] sm:$0xff]
    %v1629 = vld [vmem:[%s1586 + $0x150] sm:$0xff]
    %v1630 = vld [vmem:[%s1586 + $0x158] sm:$0xff]
    %v1631 = vld [vmem:[%s1586 + $0x160] sm:$0xff]
    %v1632 = vld [vmem:[%s1586 + $0x168] sm:$0xff]
    %v1633 = vld [vmem:[%s1586 + $0x170] sm:$0xff]
    %v1634 = vld [vmem:[%s1586 + $0x178] sm:$0xff]
    %v1635 = vld [vmem:[%s1586 + $0x180] sm:$0xff]
    %v1636 = vld [vmem:[%s1586 + $0x188] sm:$0xff]
    %v1637 = vld [vmem:[%s1586 + $0x190] sm:$0xff]
    %v1638 = vld [vmem:[%s1586 + $0x198] sm:$0xff]
    %v1639 = vld [vmem:[%s1586 + $0x1a0] sm:$0xff]
    %v1640 = vld [vmem:[%s1586 + $0x1a8] sm:$0xff]
    %v1641 = vld [vmem:[%s1586 + $0x1b0] sm:$0xff]
    %v1642 = vld [vmem:[%s1586 + $0x1b8] sm:$0xff]
    %v1643 = vld [vmem:[%s1586 + $0x1c0] sm:$0xff]
    %v1644 = vld [vmem:[%s1586 + $0x1c8] sm:$0xff]
    %v1645 = vld [vmem:[%s1586 + $0x1d0] sm:$0xff]
    %v1646 = vld [vmem:[%s1586 + $0x1d8] sm:$0xff]
    %v1647 = vld [vmem:[%s1586 + $0x1e0] sm:$0xff]
    %v1648 = vld [vmem:[%s1586 + $0x1e8] sm:$0xff]
    %v1649 = vld [vmem:[%s1586 + $0x1f0] sm:$0xff]
    %v1650 = vld [vmem:[%s1586 + $0x1f8] sm:$0xff]
    %v1651 = vld [vmem:[%s1586 + $0x200] sm:$0xff]
    %v1652 = vld [vmem:[%s1586 + $0x208] sm:$0xff]
    %v1653 = vld [vmem:[%s1586 + $0x210] sm:$0xff]
    %v1654 = vld [vmem:[%s1586 + $0x218] sm:$0xff]
    %v1655 = vld [vmem:[%s1586 + $0x220] sm:$0xff]
    %v1656 = vld [vmem:[%s1586 + $0x228] sm:$0xff]
    %v1657 = vld [vmem:[%s1586 + $0x230] sm:$0xff]
    %v1658 = vld [vmem:[%s1586 + $0x238] sm:$0xff]
    %v1659 = vld [vmem:[%s1586 + $0x240] sm:$0xff]
    %v1660 = vld [vmem:[%s1586 + $0x248] sm:$0xff]
    %v1661 = vld [vmem:[%s1586 + $0x250] sm:$0xff]
    %v1662 = vld [vmem:[%s1586 + $0x258] sm:$0xff]
    %v1663 = vld [vmem:[%s1586 + $0x260] sm:$0xff]
    %v1664 = vld [vmem:[%s1586 + $0x268] sm:$0xff]
    %v1665 = vld [vmem:[%s1586 + $0x270] sm:$0xff]
    %v1666 = vld [vmem:[%s1586 + $0x278] sm:$0xff]
    %v1667 = vld [vmem:[%s1586 + $0x280] sm:$0xff]
    %v1668 = vld [vmem:[%s1586 + $0x288] sm:$0xff]
    %v1669 = vld [vmem:[%s1586 + $0x290] sm:$0xff]
    %v1670 = vld [vmem:[%s1586 + $0x298] sm:$0xff]
    %v1671 = vld [vmem:[%s1586 + $0x2a0] sm:$0xff]
    %v1672 = vld [vmem:[%s1586 + $0x2a8] sm:$0xff]
    %v1673 = vld [vmem:[%s1586 + $0x2b0] sm:$0xff]
    %v1674 = vld [vmem:[%s1586 + $0x2b8] sm:$0xff]
    %v1675 = vld [vmem:[%s1586 + $0x2c0] sm:$0xff]
    %v1676 = vld [vmem:[%s1586 + $0x2c8] sm:$0xff]
    %v1677 = vld [vmem:[%s1586 + $0x2d0] sm:$0xff]
    %v1678 = vld [vmem:[%s1586 + $0x2d8] sm:$0xff]
    %v1679 = vld [vmem:[%s1586 + $0x2e0] sm:$0xff]
    %v1680 = vld [vmem:[%s1586 + $0x2e8] sm:$0xff]
    %v1681 = vld [vmem:[%s1586 + $0x2f0] sm:$0xff]
    %v1682 = vld [vmem:[%s1586 + $0x2f8] sm:$0xff]
    %s1683 = scalar_lea.vmem %s1, 5376
    %v1684 = vld [vmem:[%s1683] sm:$0xff]
    %v1685 = vld [vmem:[%s1683 + $0x8] sm:$0xff]
    %v1686 = vld [vmem:[%s1683 + $0x10] sm:$0xff]
    %v1687 = vld [vmem:[%s1683 + $0x18] sm:$0xff]
    %v1688 = vld [vmem:[%s1683 + $0x20] sm:$0xff]
    %v1689 = vld [vmem:[%s1683 + $0x28] sm:$0xff]
    %v1690 = vld [vmem:[%s1683 + $0x30] sm:$0xff]
    %v1691 = vld [vmem:[%s1683 + $0x38] sm:$0xff]
    %v1692 = vld [vmem:[%s1683 + $0x40] sm:$0xff]
    %v1693 = vld [vmem:[%s1683 + $0x48] sm:$0xff]
    %v1694 = vld [vmem:[%s1683 + $0x50] sm:$0xff]
    %v1695 = vld [vmem:[%s1683 + $0x58] sm:$0xff]
    %v1696 = vld [vmem:[%s1683 + $0x60] sm:$0xff]
    %v1697 = vld [vmem:[%s1683 + $0x68] sm:$0xff]
    %v1698 = vld [vmem:[%s1683 + $0x70] sm:$0xff]
    %v1699 = vld [vmem:[%s1683 + $0x78] sm:$0xff]
    %v1700 = vld [vmem:[%s1683 + $0x80] sm:$0xff]
    %v1701 = vld [vmem:[%s1683 + $0x88] sm:$0xff]
    %v1702 = vld [vmem:[%s1683 + $0x90] sm:$0xff]
    %v1703 = vld [vmem:[%s1683 + $0x98] sm:$0xff]
    %v1704 = vld [vmem:[%s1683 + $0xa0] sm:$0xff]
    %v1705 = vld [vmem:[%s1683 + $0xa8] sm:$0xff]
    %v1706 = vld [vmem:[%s1683 + $0xb0] sm:$0xff]
    %v1707 = vld [vmem:[%s1683 + $0xb8] sm:$0xff]
    %v1708 = vld [vmem:[%s1683 + $0xc0] sm:$0xff]
    %v1709 = vld [vmem:[%s1683 + $0xc8] sm:$0xff]
    %v1710 = vld [vmem:[%s1683 + $0xd0] sm:$0xff]
    %v1711 = vld [vmem:[%s1683 + $0xd8] sm:$0xff]
    %v1712 = vld [vmem:[%s1683 + $0xe0] sm:$0xff]
    %v1713 = vld [vmem:[%s1683 + $0xe8] sm:$0xff]
    %v1714 = vld [vmem:[%s1683 + $0xf0] sm:$0xff]
    %v1715 = vld [vmem:[%s1683 + $0xf8] sm:$0xff]
    %v1716 = vld [vmem:[%s1683 + $0x100] sm:$0xff]
    %v1717 = vld [vmem:[%s1683 + $0x108] sm:$0xff]
    %v1718 = vld [vmem:[%s1683 + $0x110] sm:$0xff]
    %v1719 = vld [vmem:[%s1683 + $0x118] sm:$0xff]
    %v1720 = vld [vmem:[%s1683 + $0x120] sm:$0xff]
    %v1721 = vld [vmem:[%s1683 + $0x128] sm:$0xff]
    %v1722 = vld [vmem:[%s1683 + $0x130] sm:$0xff]
    %v1723 = vld [vmem:[%s1683 + $0x138] sm:$0xff]
    %v1724 = vld [vmem:[%s1683 + $0x140] sm:$0xff]
    %v1725 = vld [vmem:[%s1683 + $0x148] sm:$0xff]
    %v1726 = vld [vmem:[%s1683 + $0x150] sm:$0xff]
    %v1727 = vld [vmem:[%s1683 + $0x158] sm:$0xff]
    %v1728 = vld [vmem:[%s1683 + $0x160] sm:$0xff]
    %v1729 = vld [vmem:[%s1683 + $0x168] sm:$0xff]
    %v1730 = vld [vmem:[%s1683 + $0x170] sm:$0xff]
    %v1731 = vld [vmem:[%s1683 + $0x178] sm:$0xff]
    %v1732 = vld [vmem:[%s1683 + $0x180] sm:$0xff]
    %v1733 = vld [vmem:[%s1683 + $0x188] sm:$0xff]
    %v1734 = vld [vmem:[%s1683 + $0x190] sm:$0xff]
    %v1735 = vld [vmem:[%s1683 + $0x198] sm:$0xff]
    %v1736 = vld [vmem:[%s1683 + $0x1a0] sm:$0xff]
    %v1737 = vld [vmem:[%s1683 + $0x1a8] sm:$0xff]
    %v1738 = vld [vmem:[%s1683 + $0x1b0] sm:$0xff]
    %v1739 = vld [vmem:[%s1683 + $0x1b8] sm:$0xff]
    %v1740 = vld [vmem:[%s1683 + $0x1c0] sm:$0xff]
    %v1741 = vld [vmem:[%s1683 + $0x1c8] sm:$0xff]
    %v1742 = vld [vmem:[%s1683 + $0x1d0] sm:$0xff]
    %v1743 = vld [vmem:[%s1683 + $0x1d8] sm:$0xff]
    %v1744 = vld [vmem:[%s1683 + $0x1e0] sm:$0xff]
    %v1745 = vld [vmem:[%s1683 + $0x1e8] sm:$0xff]
    %v1746 = vld [vmem:[%s1683 + $0x1f0] sm:$0xff]
    %v1747 = vld [vmem:[%s1683 + $0x1f8] sm:$0xff]
    %v1748 = vld [vmem:[%s1683 + $0x200] sm:$0xff]
    %v1749 = vld [vmem:[%s1683 + $0x208] sm:$0xff]
    %v1750 = vld [vmem:[%s1683 + $0x210] sm:$0xff]
    %v1751 = vld [vmem:[%s1683 + $0x218] sm:$0xff]
    %v1752 = vld [vmem:[%s1683 + $0x220] sm:$0xff]
    %v1753 = vld [vmem:[%s1683 + $0x228] sm:$0xff]
    %v1754 = vld [vmem:[%s1683 + $0x230] sm:$0xff]
    %v1755 = vld [vmem:[%s1683 + $0x238] sm:$0xff]
    %v1756 = vld [vmem:[%s1683 + $0x240] sm:$0xff]
    %v1757 = vld [vmem:[%s1683 + $0x248] sm:$0xff]
    %v1758 = vld [vmem:[%s1683 + $0x250] sm:$0xff]
    %v1759 = vld [vmem:[%s1683 + $0x258] sm:$0xff]
    %v1760 = vld [vmem:[%s1683 + $0x260] sm:$0xff]
    %v1761 = vld [vmem:[%s1683 + $0x268] sm:$0xff]
    %v1762 = vld [vmem:[%s1683 + $0x270] sm:$0xff]
    %v1763 = vld [vmem:[%s1683 + $0x278] sm:$0xff]
    %v1764 = vld [vmem:[%s1683 + $0x280] sm:$0xff]
    %v1765 = vld [vmem:[%s1683 + $0x288] sm:$0xff]
    %v1766 = vld [vmem:[%s1683 + $0x290] sm:$0xff]
    %v1767 = vld [vmem:[%s1683 + $0x298] sm:$0xff]
    %v1768 = vld [vmem:[%s1683 + $0x2a0] sm:$0xff]
    %v1769 = vld [vmem:[%s1683 + $0x2a8] sm:$0xff]
    %v1770 = vld [vmem:[%s1683 + $0x2b0] sm:$0xff]
    %v1771 = vld [vmem:[%s1683 + $0x2b8] sm:$0xff]
    %v1772 = vld [vmem:[%s1683 + $0x2c0] sm:$0xff]
    %v1773 = vld [vmem:[%s1683 + $0x2c8] sm:$0xff]
    %v1774 = vld [vmem:[%s1683 + $0x2d0] sm:$0xff]
    %v1775 = vld [vmem:[%s1683 + $0x2d8] sm:$0xff]
    %v1776 = vld [vmem:[%s1683 + $0x2e0] sm:$0xff]
    %v1777 = vld [vmem:[%s1683 + $0x2e8] sm:$0xff]
    %v1778 = vld [vmem:[%s1683 + $0x2f0] sm:$0xff]
    %v1779 = vld [vmem:[%s1683 + $0x2f8] sm:$0xff]
    %1780 = vmatprep.subr.mxu0 %v1685
    %1781 = vmatpush1.msra.mxu0 %v1684
    %1782 = vmatprep.subr.mxu0 %v1687
    %1783 = vmatpush1.msra.mxu0 %v1686
    %1784 = vmatprep.subr.mxu0 %v1689
    %1785 = vmatpush1.msra.mxu0 %v1688
    %1786 = vmatprep.subr.mxu0 %v1691
    %1787 = vmatpush1.msra.mxu0 %v1690
    %1788 = vmatprep.subr.mxu0 %v1693
    %1789 = vmatpush1.msra.mxu0 %v1692
    %1790 = vmatprep.subr.mxu0 %v1695
    %1791 = vmatpush1.msra.mxu0 %v1694
    %1792 = vmatprep.subr.mxu0 %v1697
    %1793 = vmatpush1.msra.mxu0 %v1696
    %1794 = vmatprep.subr.mxu0 %v1699
    %1795 = vmatpush1.msra.mxu0 %v1698
    %1796 = vmatprep.subr.mxu0 %v1701
    %1797 = vmatpush1.msra.mxu0 %v1700
    %1798 = vmatprep.subr.mxu0 %v1703
    %1799 = vmatpush1.msra.mxu0 %v1702
    %1800 = vmatprep.subr.mxu0 %v1705
    %1801 = vmatpush1.msra.mxu0 %v1704
    %1802 = vmatprep.subr.mxu0 %v1707
    %1803 = vmatpush1.msra.mxu0 %v1706
    %1804 = vmatprep.subr.mxu0 %v1709
    %1805 = vmatpush1.msra.mxu0 %v1708
    %1806 = vmatprep.subr.mxu0 %v1711
    %1807 = vmatpush1.msra.mxu0 %v1710
    %1808 = vmatprep.subr.mxu0 %v1713
    %1809 = vmatpush1.msra.mxu0 %v1712
    %1810 = vmatprep.subr.mxu0 %v1715
    %1811 = vmatpush1.msra.mxu0 %v1714
    %1812 = vmatprep.subr.mxu0 %v1717
    %1813 = vmatpush1.msra.mxu0 %v1716
    %1814 = vmatprep.subr.mxu0 %v1719
    %1815 = vmatpush1.msra.mxu0 %v1718
    %1816 = vmatprep.subr.mxu0 %v1721
    %1817 = vmatpush1.msra.mxu0 %v1720
    %1818 = vmatprep.subr.mxu0 %v1723
    %1819 = vmatpush1.msra.mxu0 %v1722
    %1820 = vmatprep.subr.mxu0 %v1725
    %1821 = vmatpush1.msra.mxu0 %v1724
    %1822 = vmatprep.subr.mxu0 %v1727
    %1823 = vmatpush1.msra.mxu0 %v1726
    %1824 = vmatprep.subr.mxu0 %v1729
    %1825 = vmatpush1.msra.mxu0 %v1728
    %1826 = vmatprep.subr.mxu0 %v1731
    %1827 = vmatpush1.msra.mxu0 %v1730
    %1828 = vmatprep.subr.mxu0 %v1733
    %1829 = vmatpush1.msra.mxu0 %v1732
    %1830 = vmatprep.subr.mxu0 %v1735
    %1831 = vmatpush1.msra.mxu0 %v1734
    %1832 = vmatprep.subr.mxu0 %v1737
    %1833 = vmatpush1.msra.mxu0 %v1736
    %1834 = vmatprep.subr.mxu0 %v1739
    %1835 = vmatpush1.msra.mxu0 %v1738
    %1836 = vmatprep.subr.mxu0 %v1741
    %1837 = vmatpush1.msra.mxu0 %v1740
    %1838 = vmatprep.subr.mxu0 %v1743
    %1839 = vmatpush1.msra.mxu0 %v1742
    %1840 = vmatprep.subr.mxu0 %v1745
    %1841 = vmatpush1.msra.mxu0 %v1744
    %1842 = vmatprep.subr.mxu0 %v1747
    %1843 = vmatpush1.msra.mxu0 %v1746
    %1844 = vmatprep.mubr.f32.mxu0 %v256
    %1845 = vmatmul.mubr.f32.gmra.mrb[0].mxu0 %v253
    %v1846 = vpop.f32.mrb[0].mxu0
    %v1847 = vadd.f32 0.0, %v1846
    %v1848 = vpop.f32.mrb[0].mxu0
    %v1849 = vadd.f32 0.0, %v1848
    %1850 = vmatprep.mubr.f32.mxu0 %v255
    %1851 = vmatmul.mubr.f32.gmra.mrb[0].mxu0 %v252
    %v1852 = vpop.f32.mrb[0].mxu0
    %v1853 = vadd.f32 0.0, %v1852
    %v1854 = vpop.f32.mrb[0].mxu0
    %v1855 = vadd.f32 0.0, %v1854
    %1856 = vdwg.mxu0
    %1857 = vmatprep.subr.mxu0 %v1749
    %1858 = vmatpush1.msra.mxu0 %v1748
    %1859 = vmatprep.subr.mxu0 %v1751
    %1860 = vmatpush1.msra.mxu0 %v1750
    %1861 = vmatprep.subr.mxu0 %v1753
    %1862 = vmatpush1.msra.mxu0 %v1752
    %1863 = vmatprep.subr.mxu0 %v1755
    %1864 = vmatpush1.msra.mxu0 %v1754
    %1865 = vmatprep.subr.mxu0 %v1757
    %1866 = vmatpush1.msra.mxu0 %v1756
    %1867 = vmatprep.subr.mxu0 %v1759
    %1868 = vmatpush1.msra.mxu0 %v1758
    %1869 = vmatprep.subr.mxu0 %v1761
    %1870 = vmatpush1.msra.mxu0 %v1760
    %1871 = vmatprep.subr.mxu0 %v1763
    %1872 = vmatpush1.msra.mxu0 %v1762
    %1873 = vmatprep.subr.mxu0 %v1765
    %1874 = vmatpush1.msra.mxu0 %v1764
    %1875 = vmatprep.subr.mxu0 %v1767
    %1876 = vmatpush1.msra.mxu0 %v1766
    %1877 = vmatprep.subr.mxu0 %v1769
    %1878 = vmatpush1.msra.mxu0 %v1768
    %1879 = vmatprep.subr.mxu0 %v1771
    %1880 = vmatpush1.msra.mxu0 %v1770
    %1881 = vmatprep.subr.mxu0 %v1773
    %1882 = vmatpush1.msra.mxu0 %v1772
    %1883 = vmatprep.subr.mxu0 %v1775
    %1884 = vmatpush1.msra.mxu0 %v1774
    %1885 = vmatprep.subr.mxu0 %v1777
    %1886 = vmatpush1.msra.mxu0 %v1776
    %1887 = vmatprep.subr.mxu0 %v1779
    %1888 = vmatpush1.msra.mxu0 %v1778
    %1889 = vmatprep.subr.mxu0 0.0
    %1890 = vmatpush1.msra.mxu0 0.0
    %1891 = vmatprep.subr.mxu0 0.0
    %1892 = vmatpush1.msra.mxu0 0.0
    %1893 = vmatprep.subr.mxu0 0.0
    %1894 = vmatpush1.msra.mxu0 0.0
    %1895 = vmatprep.subr.mxu0 0.0
    %1896 = vmatpush1.msra.mxu0 0.0
    %1897 = vmatprep.subr.mxu0 0.0
    %1898 = vmatpush1.msra.mxu0 0.0
    %1899 = vmatprep.subr.mxu0 0.0
    %1900 = vmatpush1.msra.mxu0 0.0
    %1901 = vmatprep.subr.mxu0 0.0
    %1902 = vmatpush1.msra.mxu0 0.0
    %1903 = vmatprep.subr.mxu0 0.0
    %1904 = vmatpush1.msra.mxu0 0.0
    %1905 = vmatprep.subr.mxu0 0.0
    %1906 = vmatpush1.msra.mxu0 0.0
    %1907 = vmatprep.subr.mxu0 0.0
    %1908 = vmatpush1.msra.mxu0 0.0
    %1909 = vmatprep.subr.mxu0 0.0
    %1910 = vmatpush1.msra.mxu0 0.0
    %1911 = vmatprep.subr.mxu0 0.0
    %1912 = vmatpush1.msra.mxu0 0.0
    %1913 = vmatprep.subr.mxu0 0.0
    %1914 = vmatpush1.msra.mxu0 0.0
    %1915 = vmatprep.subr.mxu0 0.0
    %1916 = vmatpush1.msra.mxu0 0.0
    %1917 = vmatprep.subr.mxu0 0.0
    %1918 = vmatpush1.msra.mxu0 0.0
    %1919 = vmatprep.subr.mxu0 0.0
    %1920 = vmatpush1.msra.mxu0 0.0
    %1921 = vmatprep.mubr.f32.mxu0 0.0
    %1922 = vmatmul.mubr.f32.gmra.mrb[0].mxu0 %v259
    %v1923 = vpop.f32.mrb[0].mxu0
    %v1924 = vadd.f32 %v1847, %v1923
    %v1925 = vpop.f32.mrb[0].mxu0
    %v1926 = vadd.f32 %v1849, %v1925
    %1927 = vmatprep.mubr.f32.mxu0 0.0
    %1928 = vmatmul.mubr.f32.gmra.mrb[0].mxu0 %v258
    %v1929 = vpop.f32.mrb[0].mxu0
    %v1930 = vadd.f32 %v1853, %v1929
    %v1931 = vpop.f32.mrb[0].mxu0
    %v1932 = vadd.f32 %v1855, %v1931
    %1933 = vdwg.mxu0
    %1934 = vmatprep.subr.mxu0 %v1588
    %1935 = vmatpush1.msra.mxu0 %v1587
    %1936 = vmatprep.subr.mxu0 %v1590
    %1937 = vmatpush1.msra.mxu0 %v1589
    %1938 = vmatprep.subr.mxu0 %v1592
    %1939 = vmatpush1.msra.mxu0 %v1591
    %1940 = vmatprep.subr.mxu0 %v1594
    %1941 = vmatpush1.msra.mxu0 %v1593
    %1942 = vmatprep.subr.mxu0 %v1596
    %1943 = vmatpush1.msra.mxu0 %v1595
    %1944 = vmatprep.subr.mxu0 %v1598
    %1945 = vmatpush1.msra.mxu0 %v1597
    %1946 = vmatprep.subr.mxu0 %v1600
    %1947 = vmatpush1.msra.mxu0 %v1599
    %1948 = vmatprep.subr.mxu0 %v1602
    %1949 = vmatpush1.msra.mxu0 %v1601
    %1950 = vmatprep.subr.mxu0 %v1604
    %1951 = vmatpush1.msra.mxu0 %v1603
    %1952 = vmatprep.subr.mxu0 %v1606
    %1953 = vmatpush1.msra.mxu0 %v1605
    %1954 = vmatprep.subr.mxu0 %v1608
    %1955 = vmatpush1.msra.mxu0 %v1607
    %1956 = vmatprep.subr.mxu0 %v1610
    %1957 = vmatpush1.msra.mxu0 %v1609
    %1958 = vmatprep.subr.mxu0 %v1612
    %1959 = vmatpush1.msra.mxu0 %v1611
    %1960 = vmatprep.subr.mxu0 %v1614
    %1961 = vmatpush1.msra.mxu0 %v1613
    %1962 = vmatprep.subr.mxu0 %v1616
    %1963 = vmatpush1.msra.mxu0 %v1615
    %1964 = vmatprep.subr.mxu0 %v1618
    %1965 = vmatpush1.msra.mxu0 %v1617
    %1966 = vmatprep.subr.mxu0 %v1620
    %1967 = vmatpush1.msra.mxu0 %v1619
    %1968 = vmatprep.subr.mxu0 %v1622
    %1969 = vmatpush1.msra.mxu0 %v1621
    %1970 = vmatprep.subr.mxu0 %v1624
    %1971 = vmatpush1.msra.mxu0 %v1623
    %1972 = vmatprep.subr.mxu0 %v1626
    %1973 = vmatpush1.msra.mxu0 %v1625
    %1974 = vmatprep.subr.mxu0 %v1628
    %1975 = vmatpush1.msra.mxu0 %v1627
    %1976 = vmatprep.subr.mxu0 %v1630
    %1977 = vmatpush1.msra.mxu0 %v1629
    %1978 = vmatprep.subr.mxu0 %v1632
    %1979 = vmatpush1.msra.mxu0 %v1631
    %1980 = vmatprep.subr.mxu0 %v1634
    %1981 = vmatpush1.msra.mxu0 %v1633
    %1982 = vmatprep.subr.mxu0 %v1636
    %1983 = vmatpush1.msra.mxu0 %v1635
    %1984 = vmatprep.subr.mxu0 %v1638
    %1985 = vmatpush1.msra.mxu0 %v1637
    %1986 = vmatprep.subr.mxu0 %v1640
    %1987 = vmatpush1.msra.mxu0 %v1639
    %1988 = vmatprep.subr.mxu0 %v1642
    %1989 = vmatpush1.msra.mxu0 %v1641
    %1990 = vmatprep.subr.mxu0 %v1644
    %1991 = vmatpush1.msra.mxu0 %v1643
    %1992 = vmatprep.subr.mxu0 %v1646
    %1993 = vmatpush1.msra.mxu0 %v1645
    %1994 = vmatprep.subr.mxu0 %v1648
    %1995 = vmatpush1.msra.mxu0 %v1647
    %1996 = vmatprep.subr.mxu0 %v1650
    %1997 = vmatpush1.msra.mxu0 %v1649
    %1998 = vmatprep.mubr.f32.mxu0 %v40
    %1999 = vmatmul.mubr.f32.gmra.mrb[0].mxu0 %v39
    %v2000 = vpop.f32.mrb[0].mxu0
    %v2001 = vadd.f32 %v1924, %v2000
    %v2002 = vpop.f32.mrb[0].mxu0
    %v2003 = vadd.f32 %v1926, %v2002
    %2004 = vmatprep.mubr.f32.mxu0 %v43
    %2005 = vmatmul.mubr.f32.gmra.mrb[0].mxu0 %v42
    %v2006 = vpop.f32.mrb[0].mxu0
    %v2007 = vadd.f32 %v1930, %v2006
    %v2008 = vpop.f32.mrb[0].mxu0
    %v2009 = vadd.f32 %v1932, %v2008
    %2010 = vdwg.mxu0
    %2011 = vmatprep.subr.mxu0 %v1652
    %2012 = vmatpush1.msra.mxu0 %v1651
    %2013 = vmatprep.subr.mxu0 %v1654
    %2014 = vmatpush1.msra.mxu0 %v1653
    %2015 = vmatprep.subr.mxu0 %v1656
    %2016 = vmatpush1.msra.mxu0 %v1655
    %2017 = vmatprep.subr.mxu0 %v1658
    %2018 = vmatpush1.msra.mxu0 %v1657
    %2019 = vmatprep.subr.mxu0 %v1660
    %2020 = vmatpush1.msra.mxu0 %v1659
    %2021 = vmatprep.subr.mxu0 %v1662
    %2022 = vmatpush1.msra.mxu0 %v1661
    %2023 = vmatprep.subr.mxu0 %v1664
    %2024 = vmatpush1.msra.mxu0 %v1663
    %2025 = vmatprep.subr.mxu0 %v1666
    %2026 = vmatpush1.msra.mxu0 %v1665
    %2027 = vmatprep.subr.mxu0 %v1668
    %2028 = vmatpush1.msra.mxu0 %v1667
    %2029 = vmatprep.subr.mxu0 %v1670
    %2030 = vmatpush1.msra.mxu0 %v1669
    %2031 = vmatprep.subr.mxu0 %v1672
    %2032 = vmatpush1.msra.mxu0 %v1671
    %2033 = vmatprep.subr.mxu0 %v1674
    %2034 = vmatpush1.msra.mxu0 %v1673
    %2035 = vmatprep.subr.mxu0 %v1676
    %2036 = vmatpush1.msra.mxu0 %v1675
    %2037 = vmatprep.subr.mxu0 %v1678
    %2038 = vmatpush1.msra.mxu0 %v1677
    %2039 = vmatprep.subr.mxu0 %v1680
    %2040 = vmatpush1.msra.mxu0 %v1679
    %2041 = vmatprep.subr.mxu0 %v1682
    %2042 = vmatpush1.msra.mxu0 %v1681
    %2043 = vmatprep.subr.mxu0 0.0
    %2044 = vmatpush1.msra.mxu0 0.0
    %2045 = vmatprep.subr.mxu0 0.0
    %2046 = vmatpush1.msra.mxu0 0.0
    %2047 = vmatprep.subr.mxu0 0.0
    %2048 = vmatpush1.msra.mxu0 0.0
    %2049 = vmatprep.subr.mxu0 0.0
    %2050 = vmatpush1.msra.mxu0 0.0
    %2051 = vmatprep.subr.mxu0 0.0
    %2052 = vmatpush1.msra.mxu0 0.0
    %2053 = vmatprep.subr.mxu0 0.0
    %2054 = vmatpush1.msra.mxu0 0.0
    %2055 = vmatprep.subr.mxu0 0.0
    %2056 = vmatpush1.msra.mxu0 0.0
    %2057 = vmatprep.subr.mxu0 0.0
    %2058 = vmatpush1.msra.mxu0 0.0
    %2059 = vmatprep.subr.mxu0 0.0
    %2060 = vmatpush1.msra.mxu0 0.0
    %2061 = vmatprep.subr.mxu0 0.0
    %2062 = vmatpush1.msra.mxu0 0.0
    %2063 = vmatprep.subr.mxu0 0.0
    %2064 = vmatpush1.msra.mxu0 0.0
    %2065 = vmatprep.subr.mxu0 0.0
    %2066 = vmatpush1.msra.mxu0 0.0
    %2067 = vmatprep.subr.mxu0 0.0
    %2068 = vmatpush1.msra.mxu0 0.0
    %2069 = vmatprep.subr.mxu0 0.0
    %2070 = vmatpush1.msra.mxu0 0.0
    %2071 = vmatprep.subr.mxu0 0.0
    %2072 = vmatpush1.msra.mxu0 0.0
    %2073 = vmatprep.subr.mxu0 0.0
    %2074 = vmatpush1.msra.mxu0 0.0
    %2075 = vmatprep.mubr.f32.mxu0 0.0
    %2076 = vmatmul.mubr.f32.gmra.mrb[0].mxu0 %v41
    %v2077 = vpop.f32.mrb[0].mxu0
    %v2078 = vadd.f32 %v2001, %v2077
    %v2079 = vpop.f32.mrb[0].mxu0
    %v2080 = vadd.f32 %v2003, %v2079
    %2081 = vmatprep.mubr.f32.mxu0 0.0
    %2082 = vmatmul.mubr.f32.gmra.mrb[0].mxu0 %v44
    %v2083 = vpop.f32.mrb[0].mxu0
    %v2084 = vadd.f32 %v2007, %v2083
    %v2085 = vpop.f32.mrb[0].mxu0
    %v2086 = vadd.f32 %v2009, %v2085
    %2087 = vdwg.mxu0
    %v2088 = vmax.f32 %v1582, %v2078
    %v2089 = vmax.f32 %v1583, %v2080
    %v2090 = vmax.f32 %v1584, %v2084
    %v2091 = vmax.f32 %v1585, %v2086
    %v2092 = vld [vmem:[%s2] sm:$0x3]
    %v2094 = vlaneseq
    %v2095 = vshrl.u32 %v2094, 7
    %v2096 = vsub.s32 0, %v2095
    %v2097 = vrot.slane %v2092, %v2096
    %v2098 = vlaneseq
    %v2099 = vshrl.u32 %v2098, 7
    %v2100 = vsub.s32 1, %v2099
    %v2101 = vrot.slane %v2092, %v2100
    %v2104 = vadd.f32 %v2088, %v2097
    %v2105 = vadd.f32 %v2089, %v2101
    %v2106 = vadd.f32 %v2090, %v2097
    %v2107 = vadd.f32 %v2091, %v2101
    %v2108 = vmax.f32 %v2104, 0.0
    %v2109 = vmax.f32 %v2105, 0.0
    %v2110 = vmax.f32 %v2106, 0.0
    %v2111 = vmax.f32 %v2107, 0.0
    %2112 = vst [vmem:[#allocation2] sm:$0xff] %v2108
    %vm2113 = vcmask 326656
    %2114 = vst.msk [vmem:[#allocation2 + $0x8] sm:$0xff] %vm2113, %v2109
    %2115 = vst [vmem:[#allocation2 + $0x10] sm:$0x7f] %v2110
    %vm2116 = vcmask 325632
    %2117 = vst.msk [vmem:[#allocation2 + $0x18] sm:$0x7f] %vm2116, %v2111
    %v2118 = vlaneseq
    %vm2119 = vcmp.ge.s32.totalorder %v2118, 0
    %vm2120 = vcmp.lt.s32.totalorder %v2118, 168
    %vm2121 = vmand %vm2119, %vm2120
    %s2122 = scalar_lea.vmem [#allocation2], 23
    %2123 = vst.msk [vmem:[%s2122] ss:$8 sm:$0x3] %vm2121, 0.0
    %2124 = vst.msk [vmem:[%s2122] ss:$8 sm:$0x0] %vm2121, 0.0
    %v2125 = vld [vmem:[#allocation2] sm:$0xff]
    %v2126 = vld [vmem:[#allocation2 + $0x8] sm:$0xff]
    %v2127 = vld [vmem:[#allocation2 + $0x10] sm:$0x3f]
    %v2128 = vld [vmem:[#allocation2 + $0x18] sm:$0x3f]
    %v2129 = vld [vmem:[%s3] sm:$0xff]
    %v2130 = vld [vmem:[%s3 + $0x8] sm:$0xff]
    %v2131 = vld [vmem:[%s3 + $0x10] sm:$0xff]
    %v2132 = vld [vmem:[%s3 + $0x18] sm:$0xff]
    %v2133 = vld [vmem:[%s3 + $0x20] sm:$0xff]
    %v2134 = vld [vmem:[%s3 + $0x28] sm:$0xff]
    %v2135 = vld [vmem:[%s3 + $0x30] sm:$0xff]
    %v2136 = vld [vmem:[%s3 + $0x38] sm:$0xff]
    %v2137 = vld [vmem:[%s3 + $0x40] sm:$0xff]
    %v2138 = vld [vmem:[%s3 + $0x48] sm:$0xff]
    %v2139 = vld [vmem:[%s3 + $0x50] sm:$0xff]
    %v2140 = vld [vmem:[%s3 + $0x58] sm:$0xff]
    %v2141 = vld [vmem:[%s3 + $0x60] sm:$0xff]
    %v2142 = vld [vmem:[%s3 + $0x68] sm:$0xff]
    %v2143 = vld [vmem:[%s3 + $0x70] sm:$0xff]
    %v2144 = vld [vmem:[%s3 + $0x78] sm:$0xff]
    %v2145 = vld [vmem:[%s3 + $0x80] sm:$0xff]
    %v2146 = vld [vmem:[%s3 + $0x88] sm:$0xff]
    %v2147 = vld [vmem:[%s3 + $0x90] sm:$0xff]
    %v2148 = vld [vmem:[%s3 + $0x98] sm:$0xff]
    %v2149 = vld [vmem:[%s3 + $0xa0] sm:$0xff]
    %v2150 = vld [vmem:[#allocation2] sm:$0xfe]
    %v2151 = vld [vmem:[#allocation2 + $0x8] sm:$0xfe]
    %v2152 = vld [vmem:[#allocation2 + $0x10] sm:$0x7f]
    %v2153 = vld [vmem:[#allocation2 + $0x18] sm:$0x7f]
    %s2154 = scalar_lea.vmem %s3, 168
    %v2155 = vld [vmem:[%s2154] sm:$0xff]
    %v2156 = vld [vmem:[%s2154 + $0x8] sm:$0xff]
    %v2157 = vld [vmem:[%s2154 + $0x10] sm:$0xff]
    %v2158 = vld [vmem:[%s2154 + $0x18] sm:$0xff]
    %v2159 = vld [vmem:[%s2154 + $0x20] sm:$0xff]
    %v2160 = vld [vmem:[%s2154 + $0x28] sm:$0xff]
    %v2161 = vld [vmem:[%s2154 + $0x30] sm:$0xff]
    %v2162 = vld [vmem:[%s2154 + $0x38] sm:$0xff]
    %v2163 = vld [vmem:[%s2154 + $0x40] sm:$0xff]
    %v2164 = vld [vmem:[%s2154 + $0x48] sm:$0xff]
    %v2165 = vld [vmem:[%s2154 + $0x50] sm:$0xff]
    %v2166 = vld [vmem:[%s2154 + $0x58] sm:$0xff]
    %v2167 = vld [vmem:[%s2154 + $0x60] sm:$0xff]
    %v2168 = vld [vmem:[%s2154 + $0x68] sm:$0xff]
    %v2169 = vld [vmem:[%s2154 + $0x70] sm:$0xff]
    %v2170 = vld [vmem:[%s2154 + $0x78] sm:$0xff]
    %v2171 = vld [vmem:[%s2154 + $0x80] sm:$0xff]
    %v2172 = vld [vmem:[%s2154 + $0x88] sm:$0xff]
    %v2173 = vld [vmem:[%s2154 + $0x90] sm:$0xff]
    %v2174 = vld [vmem:[%s2154 + $0x98] sm:$0xff]
    %v2175 = vld [vmem:[%s2154 + $0xa0] sm:$0xff]
    %v2180 = vrot.slane %v2150, 1
    %v2181 = vrot.slane %v2152, 1
    %v2182 = vsel %vm250, %v2180, %v2181
    %v2183 = vrot.slane %v2151, 1
    %v2184 = vrot.slane %v2153, 1
    %v2185 = vsel %vm250, %v2183, %v2184
    %v2188 = vsel %vm2113, %v2185, 0
    %v2190 = vsel %vm2113, %v2184, 0
    %2192 = vmatprep.subr.mxu0 0.0
    %2193 = vmatpush1.msra.mxu0 %v2155
    %2194 = vmatprep.subr.mxu0 0.0
    %2195 = vmatpush1.msra.mxu0 %v2156
    %2196 = vmatprep.subr.mxu0 0.0
    %2197 = vmatpush1.msra.mxu0 %v2157
    %2198 = vmatprep.subr.mxu0 0.0
    %2199 = vmatpush1.msra.mxu0 %v2158
    %2200 = vmatprep.subr.mxu0 0.0
    %2201 = vmatpush1.msra.mxu0 %v2159
    %2202 = vmatprep.subr.mxu0 0.0
    %2203 = vmatpush1.msra.mxu0 %v2160
    %2204 = vmatprep.subr.mxu0 0.0
    %2205 = vmatpush1.msra.mxu0 %v2161
    %2206 = vmatprep.subr.mxu0 0.0
    %2207 = vmatpush1.msra.mxu0 %v2162
    %2208 = vmatprep.subr.mxu0 0.0
    %2209 = vmatpush1.msra.mxu0 %v2163
    %2210 = vmatprep.subr.mxu0 0.0
    %2211 = vmatpush1.msra.mxu0 %v2164
    %2212 = vmatprep.subr.mxu0 0.0
    %2213 = vmatpush1.msra.mxu0 %v2165
    %2214 = vmatprep.subr.mxu0 0.0
    %2215 = vmatpush1.msra.mxu0 %v2166
    %2216 = vmatprep.subr.mxu0 0.0
    %2217 = vmatpush1.msra.mxu0 %v2167
    %2218 = vmatprep.subr.mxu0 0.0
    %2219 = vmatpush1.msra.mxu0 %v2168
    %2220 = vmatprep.subr.mxu0 0.0
    %2221 = vmatpush1.msra.mxu0 %v2169
    %2222 = vmatprep.subr.mxu0 0.0
    %2223 = vmatpush1.msra.mxu0 %v2170
    %2224 = vmatprep.subr.mxu0 0.0
    %2225 = vmatpush1.msra.mxu0 %v2171
    %2226 = vmatprep.subr.mxu0 0.0
    %2227 = vmatpush1.msra.mxu0 %v2172
    %2228 = vmatprep.subr.mxu0 0.0
    %2229 = vmatpush1.msra.mxu0 %v2173
    %2230 = vmatprep.subr.mxu0 0.0
    %2231 = vmatpush1.msra.mxu0 %v2174
    %2232 = vmatprep.subr.mxu0 0.0
    %2233 = vmatpush1.msra.mxu0 %v2175
    %2234 = vmatprep.subr.mxu0 0.0
    %2235 = vmatpush1.msra.mxu0 0.0
    %2236 = vmatprep.subr.mxu0 0.0
    %2237 = vmatpush1.msra.mxu0 0.0
    %2238 = vmatprep.subr.mxu0 0.0
    %2239 = vmatpush1.msra.mxu0 0.0
    %2240 = vmatprep.subr.mxu0 0.0
    %2241 = vmatpush1.msra.mxu0 0.0
    %2242 = vmatprep.subr.mxu0 0.0
    %2243 = vmatpush1.msra.mxu0 0.0
    %2244 = vmatprep.subr.mxu0 0.0
    %2245 = vmatpush1.msra.mxu0 0.0
    %2246 = vmatprep.subr.mxu0 0.0
    %2247 = vmatpush1.msra.mxu0 0.0
    %2248 = vmatprep.subr.mxu0 0.0
    %2249 = vmatpush1.msra.mxu0 0.0
    %2250 = vmatprep.subr.mxu0 0.0
    %2251 = vmatpush1.msra.mxu0 0.0
    %2252 = vmatprep.subr.mxu0 0.0
    %2253 = vmatpush1.msra.mxu0 0.0
    %2254 = vmatprep.subr.mxu0 0.0
    %2255 = vmatpush1.msra.mxu0 0.0
    %2256 = vmatprep.mubr.f32.mxu0 %v2188
    %2257 = vmatmul.mubr.f32.gmra.mrb[0].mxu0 %v2182
    %v2258 = vpop.f32.mrb[0].mxu0
    %v2259 = vadd.f32 0.0, %v2258
    %v2260 = vpop.f32.mrb[0].mxu0
    %2261 = vmatprep.mubr.f32.mxu0 %v2190
    %2262 = vmatmul.mubr.f32.gmra.mrb[0].mxu0 %v2181
    %v2263 = vpop.f32.mrb[0].mxu0
    %v2264 = vadd.f32 0.0, %v2263
    %v2265 = vpop.f32.mrb[0].mxu0
    %2266 = vdwg.mxu0
    %v2268 = vsel %vm2113, %v2126, 0
    %v2271 = vsel %vm2113, %v2128, 0
    %2273 = vmatprep.subr.mxu0 0.0
    %2274 = vmatpush1.msra.mxu0 %v2129
    %2275 = vmatprep.subr.mxu0 0.0
    %2276 = vmatpush1.msra.mxu0 %v2130
    %2277 = vmatprep.subr.mxu0 0.0
    %2278 = vmatpush1.msra.mxu0 %v2131
    %2279 = vmatprep.subr.mxu0 0.0
    %2280 = vmatpush1.msra.mxu0 %v2132
    %2281 = vmatprep.subr.mxu0 0.0
    %2282 = vmatpush1.msra.mxu0 %v2133
    %2283 = vmatprep.subr.mxu0 0.0
    %2284 = vmatpush1.msra.mxu0 %v2134
    %2285 = vmatprep.subr.mxu0 0.0
    %2286 = vmatpush1.msra.mxu0 %v2135
    %2287 = vmatprep.subr.mxu0 0.0
    %2288 = vmatpush1.msra.mxu0 %v2136
    %2289 = vmatprep.subr.mxu0 0.0
    %2290 = vmatpush1.msra.mxu0 %v2137
    %2291 = vmatprep.subr.mxu0 0.0
    %2292 = vmatpush1.msra.mxu0 %v2138
    %2293 = vmatprep.subr.mxu0 0.0
    %2294 = vmatpush1.msra.mxu0 %v2139
    %2295 = vmatprep.subr.mxu0 0.0
    %2296 = vmatpush1.msra.mxu0 %v2140
    %2297 = vmatprep.subr.mxu0 0.0
    %2298 = vmatpush1.msra.mxu0 %v2141
    %2299 = vmatprep.subr.mxu0 0.0
    %2300 = vmatpush1.msra.mxu0 %v2142
    %2301 = vmatprep.subr.mxu0 0.0
    %2302 = vmatpush1.msra.mxu0 %v2143
    %2303 = vmatprep.subr.mxu0 0.0
    %2304 = vmatpush1.msra.mxu0 %v2144
    %2305 = vmatprep.subr.mxu0 0.0
    %2306 = vmatpush1.msra.mxu0 %v2145
    %2307 = vmatprep.subr.mxu0 0.0
    %2308 = vmatpush1.msra.mxu0 %v2146
    %2309 = vmatprep.subr.mxu0 0.0
    %2310 = vmatpush1.msra.mxu0 %v2147
    %2311 = vmatprep.subr.mxu0 0.0
    %2312 = vmatpush1.msra.mxu0 %v2148
    %2313 = vmatprep.subr.mxu0 0.0
    %2314 = vmatpush1.msra.mxu0 %v2149
    %2315 = vmatprep.subr.mxu0 0.0
    %2316 = vmatpush1.msra.mxu0 0.0
    %2317 = vmatprep.subr.mxu0 0.0
    %2318 = vmatpush1.msra.mxu0 0.0
    %2319 = vmatprep.subr.mxu0 0.0
    %2320 = vmatpush1.msra.mxu0 0.0
    %2321 = vmatprep.subr.mxu0 0.0
    %2322 = vmatpush1.msra.mxu0 0.0
    %2323 = vmatprep.subr.mxu0 0.0
    %2324 = vmatpush1.msra.mxu0 0.0
    %2325 = vmatprep.subr.mxu0 0.0
    %2326 = vmatpush1.msra.mxu0 0.0
    %2327 = vmatprep.subr.mxu0 0.0
    %2328 = vmatpush1.msra.mxu0 0.0
    %2329 = vmatprep.subr.mxu0 0.0
    %2330 = vmatpush1.msra.mxu0 0.0
    %2331 = vmatprep.subr.mxu0 0.0
    %2332 = vmatpush1.msra.mxu0 0.0
    %2333 = vmatprep.subr.mxu0 0.0
    %2334 = vmatpush1.msra.mxu0 0.0
    %2335 = vmatprep.subr.mxu0 0.0
    %2336 = vmatpush1.msra.mxu0 0.0
    %2337 = vmatprep.mubr.f32.mxu0 %v2268
    %2338 = vmatmul.mubr.f32.gmra.mrb[0].mxu0 %v2125
    %v2339 = vpop.f32.mrb[0].mxu0
    %v2340 = vadd.f32 %v2259, %v2339
    %v2341 = vpop.f32.mrb[0].mxu0
    %2342 = vmatprep.mubr.f32.mxu0 %v2271
    %2343 = vmatmul.mubr.f32.gmra.mrb[0].mxu0 %v2127
    %v2344 = vpop.f32.mrb[0].mxu0
    %v2345 = vadd.f32 %v2264, %v2344
    %v2346 = vpop.f32.mrb[0].mxu0
    %2347 = vdwg.mxu0
    %v2348 = vld [vmem:[#allocation2] sm:$0xfc]
    %v2349 = vld [vmem:[#allocation2 + $0x8] sm:$0xfc]
    %v2350 = vld [vmem:[#allocation2 + $0x10] sm:$0xff]
    %v2351 = vld [vmem:[#allocation2 + $0x18] sm:$0xff]
    %s2352 = scalar_lea.vmem %s3, 336
    %v2353 = vld [vmem:[%s2352] sm:$0xff]
    %v2354 = vld [vmem:[%s2352 + $0x8] sm:$0xff]
    %v2355 = vld [vmem:[%s2352 + $0x10] sm:$0xff]
    %v2356 = vld [vmem:[%s2352 + $0x18] sm:$0xff]
    %v2357 = vld [vmem:[%s2352 + $0x20] sm:$0xff]
    %v2358 = vld [vmem:[%s2352 + $0x28] sm:$0xff]
    %v2359 = vld [vmem:[%s2352 + $0x30] sm:$0xff]
    %v2360 = vld [vmem:[%s2352 + $0x38] sm:$0xff]
    %v2361 = vld [vmem:[%s2352 + $0x40] sm:$0xff]
    %v2362 = vld [vmem:[%s2352 + $0x48] sm:$0xff]
    %v2363 = vld [vmem:[%s2352 + $0x50] sm:$0xff]
    %v2364 = vld [vmem:[%s2352 + $0x58] sm:$0xff]
    %v2365 = vld [vmem:[%s2352 + $0x60] sm:$0xff]
    %v2366 = vld [vmem:[%s2352 + $0x68] sm:$0xff]
    %v2367 = vld [vmem:[%s2352 + $0x70] sm:$0xff]
    %v2368 = vld [vmem:[%s2352 + $0x78] sm:$0xff]
    %v2369 = vld [vmem:[%s2352 + $0x80] sm:$0xff]
    %v2370 = vld [vmem:[%s2352 + $0x88] sm:$0xff]
    %v2371 = vld [vmem:[%s2352 + $0x90] sm:$0xff]
    %v2372 = vld [vmem:[%s2352 + $0x98] sm:$0xff]
    %v2373 = vld [vmem:[%s2352 + $0xa0] sm:$0xff]
    %vm2378 = vcmask 1045504
    %v2379 = vrot.slane %v2348, 2
    %v2380 = vrot.slane %v2350, 2
    %v2381 = vsel %vm2378, %v2379, %v2380
    %v2382 = vrot.slane %v2349, 2
    %v2383 = vrot.slane %v2351, 2
    %v2384 = vsel %vm2378, %v2382, %v2383
    %v2387 = vsel %vm2113, %v2384, 0
    %v2389 = vsel %vm2113, %v2383, 0
    %2391 = vmatprep.subr.mxu0 0.0
    %2392 = vmatpush1.msra.mxu0 %v2353
    %2393 = vmatprep.subr.mxu0 0.0
    %2394 = vmatpush1.msra.mxu0 %v2354
    %2395 = vmatprep.subr.mxu0 0.0
    %2396 = vmatpush1.msra.mxu0 %v2355
    %2397 = vmatprep.subr.mxu0 0.0
    %2398 = vmatpush1.msra.mxu0 %v2356
    %2399 = vmatprep.subr.mxu0 0.0
    %2400 = vmatpush1.msra.mxu0 %v2357
    %2401 = vmatprep.subr.mxu0 0.0
    %2402 = vmatpush1.msra.mxu0 %v2358
    %2403 = vmatprep.subr.mxu0 0.0
    %2404 = vmatpush1.msra.mxu0 %v2359
    %2405 = vmatprep.subr.mxu0 0.0
    %2406 = vmatpush1.msra.mxu0 %v2360
    %2407 = vmatprep.subr.mxu0 0.0
    %2408 = vmatpush1.msra.mxu0 %v2361
    %2409 = vmatprep.subr.mxu0 0.0
    %2410 = vmatpush1.msra.mxu0 %v2362
    %2411 = vmatprep.subr.mxu0 0.0
    %2412 = vmatpush1.msra.mxu0 %v2363
    %2413 = vmatprep.subr.mxu0 0.0
    %2414 = vmatpush1.msra.mxu0 %v2364
    %2415 = vmatprep.subr.mxu0 0.0
    %2416 = vmatpush1.msra.mxu0 %v2365
    %2417 = vmatprep.subr.mxu0 0.0
    %2418 = vmatpush1.msra.mxu0 %v2366
    %2419 = vmatprep.subr.mxu0 0.0
    %2420 = vmatpush1.msra.mxu0 %v2367
    %2421 = vmatprep.subr.mxu0 0.0
    %2422 = vmatpush1.msra.mxu0 %v2368
    %2423 = vmatprep.subr.mxu0 0.0
    %2424 = vmatpush1.msra.mxu0 %v2369
    %2425 = vmatprep.subr.mxu0 0.0
    %2426 = vmatpush1.msra.mxu0 %v2370
    %2427 = vmatprep.subr.mxu0 0.0
    %2428 = vmatpush1.msra.mxu0 %v2371
    %2429 = vmatprep.subr.mxu0 0.0
    %2430 = vmatpush1.msra.mxu0 %v2372
    %2431 = vmatprep.subr.mxu0 0.0
    %2432 = vmatpush1.msra.mxu0 %v2373
    %2433 = vmatprep.subr.mxu0 0.0
    %2434 = vmatpush1.msra.mxu0 0.0
    %2435 = vmatprep.subr.mxu0 0.0
    %2436 = vmatpush1.msra.mxu0 0.0
    %2437 = vmatprep.subr.mxu0 0.0
    %2438 = vmatpush1.msra.mxu0 0.0
    %2439 = vmatprep.subr.mxu0 0.0
    %2440 = vmatpush1.msra.mxu0 0.0
    %2441 = vmatprep.subr.mxu0 0.0
    %2442 = vmatpush1.msra.mxu0 0.0
    %2443 = vmatprep.subr.mxu0 0.0
    %2444 = vmatpush1.msra.mxu0 0.0
    %2445 = vmatprep.subr.mxu0 0.0
    %2446 = vmatpush1.msra.mxu0 0.0
    %2447 = vmatprep.subr.mxu0 0.0
    %2448 = vmatpush1.msra.mxu0 0.0
    %2449 = vmatprep.subr.mxu0 0.0
    %2450 = vmatpush1.msra.mxu0 0.0
    %2451 = vmatprep.subr.mxu0 0.0
    %2452 = vmatpush1.msra.mxu0 0.0
    %2453 = vmatprep.subr.mxu0 0.0
    %2454 = vmatpush1.msra.mxu0 0.0
    %2455 = vmatprep.mubr.f32.mxu0 %v2387
    %2456 = vmatmul.mubr.f32.gmra.mrb[0].mxu0 %v2381
    %v2457 = vpop.f32.mrb[0].mxu0
    %v2458 = vadd.f32 0.0, %v2457
    %v2459 = vpop.f32.mrb[0].mxu0
    %2460 = vmatprep.mubr.f32.mxu0 %v2389
    %2461 = vmatmul.mubr.f32.gmra.mrb[0].mxu0 %v2380
    %v2462 = vpop.f32.mrb[0].mxu0
    %v2463 = vadd.f32 0.0, %v2462
    %v2464 = vpop.f32.mrb[0].mxu0
    %2465 = vdwg.mxu0
    %v2466 = vadd.f32 %v2340, %v2458
    %v2467 = vadd.f32 %v2345, %v2463
    %s2468 = scalar_lea.vmem %s3, 504
    %v2469 = vld [vmem:[%s2468] sm:$0xff]
    %v2470 = vld [vmem:[%s2468 + $0x8] sm:$0xff]
    %v2471 = vld [vmem:[%s2468 + $0x10] sm:$0xff]
    %v2472 = vld [vmem:[%s2468 + $0x18] sm:$0xff]
    %v2473 = vld [vmem:[%s2468 + $0x20] sm:$0xff]
    %v2474 = vld [vmem:[%s2468 + $0x28] sm:$0xff]
    %v2475 = vld [vmem:[%s2468 + $0x30] sm:$0xff]
    %v2476 = vld [vmem:[%s2468 + $0x38] sm:$0xff]
    %v2477 = vld [vmem:[%s2468 + $0x40] sm:$0xff]
    %v2478 = vld [vmem:[%s2468 + $0x48] sm:$0xff]
    %v2479 = vld [vmem:[%s2468 + $0x50] sm:$0xff]
    %v2480 = vld [vmem:[%s2468 + $0x58] sm:$0xff]
    %v2481 = vld [vmem:[%s2468 + $0x60] sm:$0xff]
    %v2482 = vld [vmem:[%s2468 + $0x68] sm:$0xff]
    %v2483 = vld [vmem:[%s2468 + $0x70] sm:$0xff]
    %v2484 = vld [vmem:[%s2468 + $0x78] sm:$0xff]
    %v2485 = vld [vmem:[%s2468 + $0x80] sm:$0xff]
    %v2486 = vld [vmem:[%s2468 + $0x88] sm:$0xff]
    %v2487 = vld [vmem:[%s2468 + $0x90] sm:$0xff]
    %v2488 = vld [vmem:[%s2468 + $0x98] sm:$0xff]
    %v2489 = vld [vmem:[%s2468 + $0xa0] sm:$0xff]
    %s2490 = scalar_lea.vmem %s3, 672
    %v2491 = vld [vmem:[%s2490] sm:$0xff]
    %v2492 = vld [vmem:[%s2490 + $0x8] sm:$0xff]
    %v2493 = vld [vmem:[%s2490 + $0x10] sm:$0xff]
    %v2494 = vld [vmem:[%s2490 + $0x18] sm:$0xff]
    %v2495 = vld [vmem:[%s2490 + $0x20] sm:$0xff]
    %v2496 = vld [vmem:[%s2490 + $0x28] sm:$0xff]
    %v2497 = vld [vmem:[%s2490 + $0x30] sm:$0xff]
    %v2498 = vld [vmem:[%s2490 + $0x38] sm:$0xff]
    %v2499 = vld [vmem:[%s2490 + $0x40] sm:$0xff]
    %v2500 = vld [vmem:[%s2490 + $0x48] sm:$0xff]
    %v2501 = vld [vmem:[%s2490 + $0x50] sm:$0xff]
    %v2502 = vld [vmem:[%s2490 + $0x58] sm:$0xff]
    %v2503 = vld [vmem:[%s2490 + $0x60] sm:$0xff]
    %v2504 = vld [vmem:[%s2490 + $0x68] sm:$0xff]
    %v2505 = vld [vmem:[%s2490 + $0x70] sm:$0xff]
    %v2506 = vld [vmem:[%s2490 + $0x78] sm:$0xff]
    %v2507 = vld [vmem:[%s2490 + $0x80] sm:$0xff]
    %v2508 = vld [vmem:[%s2490 + $0x88] sm:$0xff]
    %v2509 = vld [vmem:[%s2490 + $0x90] sm:$0xff]
    %v2510 = vld [vmem:[%s2490 + $0x98] sm:$0xff]
    %v2511 = vld [vmem:[%s2490 + $0xa0] sm:$0xff]
    %2512 = vmatprep.subr.mxu0 0.0
    %2513 = vmatpush1.msra.mxu0 %v2491
    %2514 = vmatprep.subr.mxu0 0.0
    %2515 = vmatpush1.msra.mxu0 %v2492
    %2516 = vmatprep.subr.mxu0 0.0
    %2517 = vmatpush1.msra.mxu0 %v2493
    %2518 = vmatprep.subr.mxu0 0.0
    %2519 = vmatpush1.msra.mxu0 %v2494
    %2520 = vmatprep.subr.mxu0 0.0
    %2521 = vmatpush1.msra.mxu0 %v2495
    %2522 = vmatprep.subr.mxu0 0.0
    %2523 = vmatpush1.msra.mxu0 %v2496
    %2524 = vmatprep.subr.mxu0 0.0
    %2525 = vmatpush1.msra.mxu0 %v2497
    %2526 = vmatprep.subr.mxu0 0.0
    %2527 = vmatpush1.msra.mxu0 %v2498
    %2528 = vmatprep.subr.mxu0 0.0
    %2529 = vmatpush1.msra.mxu0 %v2499
    %2530 = vmatprep.subr.mxu0 0.0
    %2531 = vmatpush1.msra.mxu0 %v2500
    %2532 = vmatprep.subr.mxu0 0.0
    %2533 = vmatpush1.msra.mxu0 %v2501
    %2534 = vmatprep.subr.mxu0 0.0
    %2535 = vmatpush1.msra.mxu0 %v2502
    %2536 = vmatprep.subr.mxu0 0.0
    %2537 = vmatpush1.msra.mxu0 %v2503
    %2538 = vmatprep.subr.mxu0 0.0
    %2539 = vmatpush1.msra.mxu0 %v2504
    %2540 = vmatprep.subr.mxu0 0.0
    %2541 = vmatpush1.msra.mxu0 %v2505
    %2542 = vmatprep.subr.mxu0 0.0
    %2543 = vmatpush1.msra.mxu0 %v2506
    %2544 = vmatprep.subr.mxu0 0.0
    %2545 = vmatpush1.msra.mxu0 %v2507
    %2546 = vmatprep.subr.mxu0 0.0
    %2547 = vmatpush1.msra.mxu0 %v2508
    %2548 = vmatprep.subr.mxu0 0.0
    %2549 = vmatpush1.msra.mxu0 %v2509
    %2550 = vmatprep.subr.mxu0 0.0
    %2551 = vmatpush1.msra.mxu0 %v2510
    %2552 = vmatprep.subr.mxu0 0.0
    %2553 = vmatpush1.msra.mxu0 %v2511
    %2554 = vmatprep.subr.mxu0 0.0
    %2555 = vmatpush1.msra.mxu0 0.0
    %2556 = vmatprep.subr.mxu0 0.0
    %2557 = vmatpush1.msra.mxu0 0.0
    %2558 = vmatprep.subr.mxu0 0.0
    %2559 = vmatpush1.msra.mxu0 0.0
    %2560 = vmatprep.subr.mxu0 0.0
    %2561 = vmatpush1.msra.mxu0 0.0
    %2562 = vmatprep.subr.mxu0 0.0
    %2563 = vmatpush1.msra.mxu0 0.0
    %2564 = vmatprep.subr.mxu0 0.0
    %2565 = vmatpush1.msra.mxu0 0.0
    %2566 = vmatprep.subr.mxu0 0.0
    %2567 = vmatpush1.msra.mxu0 0.0
    %2568 = vmatprep.subr.mxu0 0.0
    %2569 = vmatpush1.msra.mxu0 0.0
    %2570 = vmatprep.subr.mxu0 0.0
    %2571 = vmatpush1.msra.mxu0 0.0
    %2572 = vmatprep.subr.mxu0 0.0
    %2573 = vmatpush1.msra.mxu0 0.0
    %2574 = vmatprep.subr.mxu0 0.0
    %2575 = vmatpush1.msra.mxu0 0.0
    %2576 = vmatprep.mubr.f32.mxu0 %v2188
    %2577 = vmatmul.mubr.f32.gmra.mrb[0].mxu0 %v2182
    %v2578 = vpop.f32.mrb[0].mxu0
    %v2579 = vadd.f32 0.0, %v2578
    %v2580 = vpop.f32.mrb[0].mxu0
    %2581 = vmatprep.mubr.f32.mxu0 %v2190
    %2582 = vmatmul.mubr.f32.gmra.mrb[0].mxu0 %v2181
    %v2583 = vpop.f32.mrb[0].mxu0
    %v2584 = vadd.f32 0.0, %v2583
    %v2585 = vpop.f32.mrb[0].mxu0
    %2586 = vdwg.mxu0
    %2587 = vmatprep.subr.mxu0 0.0
    %2588 = vmatpush1.msra.mxu0 %v2469
    %2589 = vmatprep.subr.mxu0 0.0
    %2590 = vmatpush1.msra.mxu0 %v2470
    %2591 = vmatprep.subr.mxu0 0.0
    %2592 = vmatpush1.msra.mxu0 %v2471
    %2593 = vmatprep.subr.mxu0 0.0
    %2594 = vmatpush1.msra.mxu0 %v2472
    %2595 = vmatprep.subr.mxu0 0.0
    %2596 = vmatpush1.msra.mxu0 %v2473
    %2597 = vmatprep.subr.mxu0 0.0
    %2598 = vmatpush1.msra.mxu0 %v2474
    %2599 = vmatprep.subr.mxu0 0.0
    %2600 = vmatpush1.msra.mxu0 %v2475
    %2601 = vmatprep.subr.mxu0 0.0
    %2602 = vmatpush1.msra.mxu0 %v2476
    %2603 = vmatprep.subr.mxu0 0.0
    %2604 = vmatpush1.msra.mxu0 %v2477
    %2605 = vmatprep.subr.mxu0 0.0
    %2606 = vmatpush1.msra.mxu0 %v2478
    %2607 = vmatprep.subr.mxu0 0.0
    %2608 = vmatpush1.msra.mxu0 %v2479
    %2609 = vmatprep.subr.mxu0 0.0
    %2610 = vmatpush1.msra.mxu0 %v2480
    %2611 = vmatprep.subr.mxu0 0.0
    %2612 = vmatpush1.msra.mxu0 %v2481
    %2613 = vmatprep.subr.mxu0 0.0
    %2614 = vmatpush1.msra.mxu0 %v2482
    %2615 = vmatprep.subr.mxu0 0.0
    %2616 = vmatpush1.msra.mxu0 %v2483
    %2617 = vmatprep.subr.mxu0 0.0
    %2618 = vmatpush1.msra.mxu0 %v2484
    %2619 = vmatprep.subr.mxu0 0.0
    %2620 = vmatpush1.msra.mxu0 %v2485
    %2621 = vmatprep.subr.mxu0 0.0
    %2622 = vmatpush1.msra.mxu0 %v2486
    %2623 = vmatprep.subr.mxu0 0.0
    %2624 = vmatpush1.msra.mxu0 %v2487
    %2625 = vmatprep.subr.mxu0 0.0
    %2626 = vmatpush1.msra.mxu0 %v2488
    %2627 = vmatprep.subr.mxu0 0.0
    %2628 = vmatpush1.msra.mxu0 %v2489
    %2629 = vmatprep.subr.mxu0 0.0
    %2630 = vmatpush1.msra.mxu0 0.0
    %2631 = vmatprep.subr.mxu0 0.0
    %2632 = vmatpush1.msra.mxu0 0.0
    %2633 = vmatprep.subr.mxu0 0.0
    %2634 = vmatpush1.msra.mxu0 0.0
    %2635 = vmatprep.subr.mxu0 0.0
    %2636 = vmatpush1.msra.mxu0 0.0
    %2637 = vmatprep.subr.mxu0 0.0
    %2638 = vmatpush1.msra.mxu0 0.0
    %2639 = vmatprep.subr.mxu0 0.0
    %2640 = vmatpush1.msra.mxu0 0.0
    %2641 = vmatprep.subr.mxu0 0.0
    %2642 = vmatpush1.msra.mxu0 0.0
    %2643 = vmatprep.subr.mxu0 0.0
    %2644 = vmatpush1.msra.mxu0 0.0
    %2645 = vmatprep.subr.mxu0 0.0
    %2646 = vmatpush1.msra.mxu0 0.0
    %2647 = vmatprep.subr.mxu0 0.0
    %2648 = vmatpush1.msra.mxu0 0.0
    %2649 = vmatprep.subr.mxu0 0.0
    %2650 = vmatpush1.msra.mxu0 0.0
    %2651 = vmatprep.mubr.f32.mxu0 %v2268
    %2652 = vmatmul.mubr.f32.gmra.mrb[0].mxu0 %v2125
    %v2653 = vpop.f32.mrb[0].mxu0
    %v2654 = vadd.f32 %v2579, %v2653
    %v2655 = vpop.f32.mrb[0].mxu0
    %2656 = vmatprep.mubr.f32.mxu0 %v2271
    %2657 = vmatmul.mubr.f32.gmra.mrb[0].mxu0 %v2127
    %v2658 = vpop.f32.mrb[0].mxu0
    %v2659 = vadd.f32 %v2584, %v2658
    %v2660 = vpop.f32.mrb[0].mxu0
    %2661 = vdwg.mxu0
    %s2662 = scalar_lea.vmem %s3, 840
    %v2663 = vld [vmem:[%s2662] sm:$0xff]
    %v2664 = vld [vmem:[%s2662 + $0x8] sm:$0xff]
    %v2665 = vld [vmem:[%s2662 + $0x10] sm:$0xff]
    %v2666 = vld [vmem:[%s2662 + $0x18] sm:$0xff]
    %v2667 = vld [vmem:[%s2662 + $0x20] sm:$0xff]
    %v2668 = vld [vmem:[%s2662 + $0x28] sm:$0xff]
    %v2669 = vld [vmem:[%s2662 + $0x30] sm:$0xff]
    %v2670 = vld [vmem:[%s2662 + $0x38] sm:$0xff]
    %v2671 = vld [vmem:[%s2662 + $0x40] sm:$0xff]
    %v2672 = vld [vmem:[%s2662 + $0x48] sm:$0xff]
    %v2673 = vld [vmem:[%s2662 + $0x50] sm:$0xff]
    %v2674 = vld [vmem:[%s2662 + $0x58] sm:$0xff]
    %v2675 = vld [vmem:[%s2662 + $0x60] sm:$0xff]
    %v2676 = vld [vmem:[%s2662 + $0x68] sm:$0xff]
    %v2677 = vld [vmem:[%s2662 + $0x70] sm:$0xff]
    %v2678 = vld [vmem:[%s2662 + $0x78] sm:$0xff]
    %v2679 = vld [vmem:[%s2662 + $0x80] sm:$0xff]
    %v2680 = vld [vmem:[%s2662 + $0x88] sm:$0xff]
    %v2681 = vld [vmem:[%s2662 + $0x90] sm:$0xff]
    %v2682 = vld [vmem:[%s2662 + $0x98] sm:$0xff]
    %v2683 = vld [vmem:[%s2662 + $0xa0] sm:$0xff]
    %2684 = vmatprep.subr.mxu0 0.0
    %2685 = vmatpush1.msra.mxu0 %v2663
    %2686 = vmatprep.subr.mxu0 0.0
    %2687 = vmatpush1.msra.mxu0 %v2664
    %2688 = vmatprep.subr.mxu0 0.0
    %2689 = vmatpush1.msra.mxu0 %v2665
    %2690 = vmatprep.subr.mxu0 0.0
    %2691 = vmatpush1.msra.mxu0 %v2666
    %2692 = vmatprep.subr.mxu0 0.0
    %2693 = vmatpush1.msra.mxu0 %v2667
    %2694 = vmatprep.subr.mxu0 0.0
    %2695 = vmatpush1.msra.mxu0 %v2668
    %2696 = vmatprep.subr.mxu0 0.0
    %2697 = vmatpush1.msra.mxu0 %v2669
    %2698 = vmatprep.subr.mxu0 0.0
    %2699 = vmatpush1.msra.mxu0 %v2670
    %2700 = vmatprep.subr.mxu0 0.0
    %2701 = vmatpush1.msra.mxu0 %v2671
    %2702 = vmatprep.subr.mxu0 0.0
    %2703 = vmatpush1.msra.mxu0 %v2672
    %2704 = vmatprep.subr.mxu0 0.0
    %2705 = vmatpush1.msra.mxu0 %v2673
    %2706 = vmatprep.subr.mxu0 0.0
    %2707 = vmatpush1.msra.mxu0 %v2674
    %2708 = vmatprep.subr.mxu0 0.0
    %2709 = vmatpush1.msra.mxu0 %v2675
    %2710 = vmatprep.subr.mxu0 0.0
    %2711 = vmatpush1.msra.mxu0 %v2676
    %2712 = vmatprep.subr.mxu0 0.0
    %2713 = vmatpush1.msra.mxu0 %v2677
    %2714 = vmatprep.subr.mxu0 0.0
    %2715 = vmatpush1.msra.mxu0 %v2678
    %2716 = vmatprep.subr.mxu0 0.0
    %2717 = vmatpush1.msra.mxu0 %v2679
    %2718 = vmatprep.subr.mxu0 0.0
    %2719 = vmatpush1.msra.mxu0 %v2680
    %2720 = vmatprep.subr.mxu0 0.0
    %2721 = vmatpush1.msra.mxu0 %v2681
    %2722 = vmatprep.subr.mxu0 0.0
    %2723 = vmatpush1.msra.mxu0 %v2682
    %2724 = vmatprep.subr.mxu0 0.0
    %2725 = vmatpush1.msra.mxu0 %v2683
    %2726 = vmatprep.subr.mxu0 0.0
    %2727 = vmatpush1.msra.mxu0 0.0
    %2728 = vmatprep.subr.mxu0 0.0
    %2729 = vmatpush1.msra.mxu0 0.0
    %2730 = vmatprep.subr.mxu0 0.0
    %2731 = vmatpush1.msra.mxu0 0.0
    %2732 = vmatprep.subr.mxu0 0.0
    %2733 = vmatpush1.msra.mxu0 0.0
    %2734 = vmatprep.subr.mxu0 0.0
    %2735 = vmatpush1.msra.mxu0 0.0
    %2736 = vmatprep.subr.mxu0 0.0
    %2737 = vmatpush1.msra.mxu0 0.0
    %2738 = vmatprep.subr.mxu0 0.0
    %2739 = vmatpush1.msra.mxu0 0.0
    %2740 = vmatprep.subr.mxu0 0.0
    %2741 = vmatpush1.msra.mxu0 0.0
    %2742 = vmatprep.subr.mxu0 0.0
    %2743 = vmatpush1.msra.mxu0 0.0
    %2744 = vmatprep.subr.mxu0 0.0
    %2745 = vmatpush1.msra.mxu0 0.0
    %2746 = vmatprep.subr.mxu0 0.0
    %2747 = vmatpush1.msra.mxu0 0.0
    %2748 = vmatprep.mubr.f32.mxu0 %v2387
    %2749 = vmatmul.mubr.f32.gmra.mrb[0].mxu0 %v2381
    %v2750 = vpop.f32.mrb[0].mxu0
    %v2751 = vadd.f32 0.0, %v2750
    %v2752 = vpop.f32.mrb[0].mxu0
    %2753 = vmatprep.mubr.f32.mxu0 %v2389
    %2754 = vmatmul.mubr.f32.gmra.mrb[0].mxu0 %v2380
    %v2755 = vpop.f32.mrb[0].mxu0
    %v2756 = vadd.f32 0.0, %v2755
    %v2757 = vpop.f32.mrb[0].mxu0
    %2758 = vdwg.mxu0
    %v2759 = vadd.f32 %v2654, %v2751
    %v2760 = vadd.f32 %v2659, %v2756
    %v2761 = vmax.f32 %v2466, %v2759
    %v2762 = vmax.f32 %v2467, %v2760
    %s2763 = scalar_lea.vmem %s3, 1008
    %v2764 = vld [vmem:[%s2763] sm:$0xff]
    %v2765 = vld [vmem:[%s2763 + $0x8] sm:$0xff]
    %v2766 = vld [vmem:[%s2763 + $0x10] sm:$0xff]
    %v2767 = vld [vmem:[%s2763 + $0x18] sm:$0xff]
    %v2768 = vld [vmem:[%s2763 + $0x20] sm:$0xff]
    %v2769 = vld [vmem:[%s2763 + $0x28] sm:$0xff]
    %v2770 = vld [vmem:[%s2763 + $0x30] sm:$0xff]
    %v2771 = vld [vmem:[%s2763 + $0x38] sm:$0xff]
    %v2772 = vld [vmem:[%s2763 + $0x40] sm:$0xff]
    %v2773 = vld [vmem:[%s2763 + $0x48] sm:$0xff]
    %v2774 = vld [vmem:[%s2763 + $0x50] sm:$0xff]
    %v2775 = vld [vmem:[%s2763 + $0x58] sm:$0xff]
    %v2776 = vld [vmem:[%s2763 + $0x60] sm:$0xff]
    %v2777 = vld [vmem:[%s2763 + $0x68] sm:$0xff]
    %v2778 = vld [vmem:[%s2763 + $0x70] sm:$0xff]
    %v2779 = vld [vmem:[%s2763 + $0x78] sm:$0xff]
    %v2780 = vld [vmem:[%s2763 + $0x80] sm:$0xff]
    %v2781 = vld [vmem:[%s2763 + $0x88] sm:$0xff]
    %v2782 = vld [vmem:[%s2763 + $0x90] sm:$0xff]
    %v2783 = vld [vmem:[%s2763 + $0x98] sm:$0xff]
    %v2784 = vld [vmem:[%s2763 + $0xa0] sm:$0xff]
    %s2785 = scalar_lea.vmem %s3, 1176
    %v2786 = vld [vmem:[%s2785] sm:$0xff]
    %v2787 = vld [vmem:[%s2785 + $0x8] sm:$0xff]
    %v2788 = vld [vmem:[%s2785 + $0x10] sm:$0xff]
    %v2789 = vld [vmem:[%s2785 + $0x18] sm:$0xff]
    %v2790 = vld [vmem:[%s2785 + $0x20] sm:$0xff]
    %v2791 = vld [vmem:[%s2785 + $0x28] sm:$0xff]
    %v2792 = vld [vmem:[%s2785 + $0x30] sm:$0xff]
    %v2793 = vld [vmem:[%s2785 + $0x38] sm:$0xff]
    %v2794 = vld [vmem:[%s2785 + $0x40] sm:$0xff]
    %v2795 = vld [vmem:[%s2785 + $0x48] sm:$0xff]
    %v2796 = vld [vmem:[%s2785 + $0x50] sm:$0xff]
    %v2797 = vld [vmem:[%s2785 + $0x58] sm:$0xff]
    %v2798 = vld [vmem:[%s2785 + $0x60] sm:$0xff]
    %v2799 = vld [vmem:[%s2785 + $0x68] sm:$0xff]
    %v2800 = vld [vmem:[%s2785 + $0x70] sm:$0xff]
    %v2801 = vld [vmem:[%s2785 + $0x78] sm:$0xff]
    %v2802 = vld [vmem:[%s2785 + $0x80] sm:$0xff]
    %v2803 = vld [vmem:[%s2785 + $0x88] sm:$0xff]
    %v2804 = vld [vmem:[%s2785 + $0x90] sm:$0xff]
    %v2805 = vld [vmem:[%s2785 + $0x98] sm:$0xff]
    %v2806 = vld [vmem:[%s2785 + $0xa0] sm:$0xff]
    %2807 = vmatprep.subr.mxu0 0.0
    %2808 = vmatpush1.msra.mxu0 %v2786
    %2809 = vmatprep.subr.mxu0 0.0
    %2810 = vmatpush1.msra.mxu0 %v2787
    %2811 = vmatprep.subr.mxu0 0.0
    %2812 = vmatpush1.msra.mxu0 %v2788
    %2813 = vmatprep.subr.mxu0 0.0
    %2814 = vmatpush1.msra.mxu0 %v2789
    %2815 = vmatprep.subr.mxu0 0.0
    %2816 = vmatpush1.msra.mxu0 %v2790
    %2817 = vmatprep.subr.mxu0 0.0
    %2818 = vmatpush1.msra.mxu0 %v2791
    %2819 = vmatprep.subr.mxu0 0.0
    %2820 = vmatpush1.msra.mxu0 %v2792
    %2821 = vmatprep.subr.mxu0 0.0
    %2822 = vmatpush1.msra.mxu0 %v2793
    %2823 = vmatprep.subr.mxu0 0.0
    %2824 = vmatpush1.msra.mxu0 %v2794
    %2825 = vmatprep.subr.mxu0 0.0
    %2826 = vmatpush1.msra.mxu0 %v2795
    %2827 = vmatprep.subr.mxu0 0.0
    %2828 = vmatpush1.msra.mxu0 %v2796
    %2829 = vmatprep.subr.mxu0 0.0
    %2830 = vmatpush1.msra.mxu0 %v2797
    %2831 = vmatprep.subr.mxu0 0.0
    %2832 = vmatpush1.msra.mxu0 %v2798
    %2833 = vmatprep.subr.mxu0 0.0
    %2834 = vmatpush1.msra.mxu0 %v2799
    %2835 = vmatprep.subr.mxu0 0.0
    %2836 = vmatpush1.msra.mxu0 %v2800
    %2837 = vmatprep.subr.mxu0 0.0
    %2838 = vmatpush1.msra.mxu0 %v2801
    %2839 = vmatprep.subr.mxu0 0.0
    %2840 = vmatpush1.msra.mxu0 %v2802
    %2841 = vmatprep.subr.mxu0 0.0
    %2842 = vmatpush1.msra.mxu0 %v2803
    %2843 = vmatprep.subr.mxu0 0.0
    %2844 = vmatpush1.msra.mxu0 %v2804
    %2845 = vmatprep.subr.mxu0 0.0
    %2846 = vmatpush1.msra.mxu0 %v2805
    %2847 = vmatprep.subr.mxu0 0.0
    %2848 = vmatpush1.msra.mxu0 %v2806
    %2849 = vmatprep.subr.mxu0 0.0
    %2850 = vmatpush1.msra.mxu0 0.0
    %2851 = vmatprep.subr.mxu0 0.0
    %2852 = vmatpush1.msra.mxu0 0.0
    %2853 = vmatprep.subr.mxu0 0.0
    %2854 = vmatpush1.msra.mxu0 0.0
    %2855 = vmatprep.subr.mxu0 0.0
    %2856 = vmatpush1.msra.mxu0 0.0
    %2857 = vmatprep.subr.mxu0 0.0
    %2858 = vmatpush1.msra.mxu0 0.0
    %2859 = vmatprep.subr.mxu0 0.0
    %2860 = vmatpush1.msra.mxu0 0.0
    %2861 = vmatprep.subr.mxu0 0.0
    %2862 = vmatpush1.msra.mxu0 0.0
    %2863 = vmatprep.subr.mxu0 0.0
    %2864 = vmatpush1.msra.mxu0 0.0
    %2865 = vmatprep.subr.mxu0 0.0
    %2866 = vmatpush1.msra.mxu0 0.0
    %2867 = vmatprep.subr.mxu0 0.0
    %2868 = vmatpush1.msra.mxu0 0.0
    %2869 = vmatprep.subr.mxu0 0.0
    %2870 = vmatpush1.msra.mxu0 0.0
    %2871 = vmatprep.mubr.f32.mxu0 %v2188
    %2872 = vmatmul.mubr.f32.gmra.mrb[0].mxu0 %v2182
    %v2873 = vpop.f32.mrb[0].mxu0
    %v2874 = vadd.f32 0.0, %v2873
    %v2875 = vpop.f32.mrb[0].mxu0
    %2876 = vmatprep.mubr.f32.mxu0 %v2190
    %2877 = vmatmul.mubr.f32.gmra.mrb[0].mxu0 %v2181
    %v2878 = vpop.f32.mrb[0].mxu0
    %v2879 = vadd.f32 0.0, %v2878
    %v2880 = vpop.f32.mrb[0].mxu0
    %2881 = vdwg.mxu0
    %2882 = vmatprep.subr.mxu0 0.0
    %2883 = vmatpush1.msra.mxu0 %v2764
    %2884 = vmatprep.subr.mxu0 0.0
    %2885 = vmatpush1.msra.mxu0 %v2765
    %2886 = vmatprep.subr.mxu0 0.0
    %2887 = vmatpush1.msra.mxu0 %v2766
    %2888 = vmatprep.subr.mxu0 0.0
    %2889 = vmatpush1.msra.mxu0 %v2767
    %2890 = vmatprep.subr.mxu0 0.0
    %2891 = vmatpush1.msra.mxu0 %v2768
    %2892 = vmatprep.subr.mxu0 0.0
    %2893 = vmatpush1.msra.mxu0 %v2769
    %2894 = vmatprep.subr.mxu0 0.0
    %2895 = vmatpush1.msra.mxu0 %v2770
    %2896 = vmatprep.subr.mxu0 0.0
    %2897 = vmatpush1.msra.mxu0 %v2771
    %2898 = vmatprep.subr.mxu0 0.0
    %2899 = vmatpush1.msra.mxu0 %v2772
    %2900 = vmatprep.subr.mxu0 0.0
    %2901 = vmatpush1.msra.mxu0 %v2773
    %2902 = vmatprep.subr.mxu0 0.0
    %2903 = vmatpush1.msra.mxu0 %v2774
    %2904 = vmatprep.subr.mxu0 0.0
    %2905 = vmatpush1.msra.mxu0 %v2775
    %2906 = vmatprep.subr.mxu0 0.0
    %2907 = vmatpush1.msra.mxu0 %v2776
    %2908 = vmatprep.subr.mxu0 0.0
    %2909 = vmatpush1.msra.mxu0 %v2777
    %2910 = vmatprep.subr.mxu0 0.0
    %2911 = vmatpush1.msra.mxu0 %v2778
    %2912 = vmatprep.subr.mxu0 0.0
    %2913 = vmatpush1.msra.mxu0 %v2779
    %2914 = vmatprep.subr.mxu0 0.0
    %2915 = vmatpush1.msra.mxu0 %v2780
    %2916 = vmatprep.subr.mxu0 0.0
    %2917 = vmatpush1.msra.mxu0 %v2781
    %2918 = vmatprep.subr.mxu0 0.0
    %2919 = vmatpush1.msra.mxu0 %v2782
    %2920 = vmatprep.subr.mxu0 0.0
    %2921 = vmatpush1.msra.mxu0 %v2783
    %2922 = vmatprep.subr.mxu0 0.0
    %2923 = vmatpush1.msra.mxu0 %v2784
    %2924 = vmatprep.subr.mxu0 0.0
    %2925 = vmatpush1.msra.mxu0 0.0
    %2926 = vmatprep.subr.mxu0 0.0
    %2927 = vmatpush1.msra.mxu0 0.0
    %2928 = vmatprep.subr.mxu0 0.0
    %2929 = vmatpush1.msra.mxu0 0.0
    %2930 = vmatprep.subr.mxu0 0.0
    %2931 = vmatpush1.msra.mxu0 0.0
    %2932 = vmatprep.subr.mxu0 0.0
    %2933 = vmatpush1.msra.mxu0 0.0
    %2934 = vmatprep.subr.mxu0 0.0
    %2935 = vmatpush1.msra.mxu0 0.0
    %2936 = vmatprep.subr.mxu0 0.0
    %2937 = vmatpush1.msra.mxu0 0.0
    %2938 = vmatprep.subr.mxu0 0.0
    %2939 = vmatpush1.msra.mxu0 0.0
    %2940 = vmatprep.subr.mxu0 0.0
    %2941 = vmatpush1.msra.mxu0 0.0
    %2942 = vmatprep.subr.mxu0 0.0
    %2943 = vmatpush1.msra.mxu0 0.0
    %2944 = vmatprep.subr.mxu0 0.0
    %2945 = vmatpush1.msra.mxu0 0.0
    %2946 = vmatprep.mubr.f32.mxu0 %v2268
    %2947 = vmatmul.mubr.f32.gmra.mrb[0].mxu0 %v2125
    %v2948 = vpop.f32.mrb[0].mxu0
    %v2949 = vadd.f32 %v2874, %v2948
    %v2950 = vpop.f32.mrb[0].mxu0
    %2951 = vmatprep.mubr.f32.mxu0 %v2271
    %2952 = vmatmul.mubr.f32.gmra.mrb[0].mxu0 %v2127
    %v2953 = vpop.f32.mrb[0].mxu0
    %v2954 = vadd.f32 %v2879, %v2953
    %v2955 = vpop.f32.mrb[0].mxu0
    %2956 = vdwg.mxu0
    %s2957 = scalar_lea.vmem %s3, 1344
    %v2958 = vld [vmem:[%s2957] sm:$0xff]
    %v2959 = vld [vmem:[%s2957 + $0x8] sm:$0xff]
    %v2960 = vld [vmem:[%s2957 + $0x10] sm:$0xff]
    %v2961 = vld [vmem:[%s2957 + $0x18] sm:$0xff]
    %v2962 = vld [vmem:[%s2957 + $0x20] sm:$0xff]
    %v2963 = vld [vmem:[%s2957 + $0x28] sm:$0xff]
    %v2964 = vld [vmem:[%s2957 + $0x30] sm:$0xff]
    %v2965 = vld [vmem:[%s2957 + $0x38] sm:$0xff]
    %v2966 = vld [vmem:[%s2957 + $0x40] sm:$0xff]
    %v2967 = vld [vmem:[%s2957 + $0x48] sm:$0xff]
    %v2968 = vld [vmem:[%s2957 + $0x50] sm:$0xff]
    %v2969 = vld [vmem:[%s2957 + $0x58] sm:$0xff]
    %v2970 = vld [vmem:[%s2957 + $0x60] sm:$0xff]
    %v2971 = vld [vmem:[%s2957 + $0x68] sm:$0xff]
    %v2972 = vld [vmem:[%s2957 + $0x70] sm:$0xff]
    %v2973 = vld [vmem:[%s2957 + $0x78] sm:$0xff]
    %v2974 = vld [vmem:[%s2957 + $0x80] sm:$0xff]
    %v2975 = vld [vmem:[%s2957 + $0x88] sm:$0xff]
    %v2976 = vld [vmem:[%s2957 + $0x90] sm:$0xff]
    %v2977 = vld [vmem:[%s2957 + $0x98] sm:$0xff]
    %v2978 = vld [vmem:[%s2957 + $0xa0] sm:$0xff]
    %2979 = vmatprep.subr.mxu0 0.0
    %2980 = vmatpush1.msra.mxu0 %v2958
    %2981 = vmatprep.subr.mxu0 0.0
    %2982 = vmatpush1.msra.mxu0 %v2959
    %2983 = vmatprep.subr.mxu0 0.0
    %2984 = vmatpush1.msra.mxu0 %v2960
    %2985 = vmatprep.subr.mxu0 0.0
    %2986 = vmatpush1.msra.mxu0 %v2961
    %2987 = vmatprep.subr.mxu0 0.0
    %2988 = vmatpush1.msra.mxu0 %v2962
    %2989 = vmatprep.subr.mxu0 0.0
    %2990 = vmatpush1.msra.mxu0 %v2963
    %2991 = vmatprep.subr.mxu0 0.0
    %2992 = vmatpush1.msra.mxu0 %v2964
    %2993 = vmatprep.subr.mxu0 0.0
    %2994 = vmatpush1.msra.mxu0 %v2965
    %2995 = vmatprep.subr.mxu0 0.0
    %2996 = vmatpush1.msra.mxu0 %v2966
    %2997 = vmatprep.subr.mxu0 0.0
    %2998 = vmatpush1.msra.mxu0 %v2967
    %2999 = vmatprep.subr.mxu0 0.0
    %3000 = vmatpush1.msra.mxu0 %v2968
    %3001 = vmatprep.subr.mxu0 0.0
    %3002 = vmatpush1.msra.mxu0 %v2969
    %3003 = vmatprep.subr.mxu0 0.0
    %3004 = vmatpush1.msra.mxu0 %v2970
    %3005 = vmatprep.subr.mxu0 0.0
    %3006 = vmatpush1.msra.mxu0 %v2971
    %3007 = vmatprep.subr.mxu0 0.0
    %3008 = vmatpush1.msra.mxu0 %v2972
    %3009 = vmatprep.subr.mxu0 0.0
    %3010 = vmatpush1.msra.mxu0 %v2973
    %3011 = vmatprep.subr.mxu0 0.0
    %3012 = vmatpush1.msra.mxu0 %v2974
    %3013 = vmatprep.subr.mxu0 0.0
    %3014 = vmatpush1.msra.mxu0 %v2975
    %3015 = vmatprep.subr.mxu0 0.0
    %3016 = vmatpush1.msra.mxu0 %v2976
    %3017 = vmatprep.subr.mxu0 0.0
    %3018 = vmatpush1.msra.mxu0 %v2977
    %3019 = vmatprep.subr.mxu0 0.0
    %3020 = vmatpush1.msra.mxu0 %v2978
    %3021 = vmatprep.subr.mxu0 0.0
    %3022 = vmatpush1.msra.mxu0 0.0
    %3023 = vmatprep.subr.mxu0 0.0
    %3024 = vmatpush1.msra.mxu0 0.0
    %3025 = vmatprep.subr.mxu0 0.0
    %3026 = vmatpush1.msra.mxu0 0.0
    %3027 = vmatprep.subr.mxu0 0.0
    %3028 = vmatpush1.msra.mxu0 0.0
    %3029 = vmatprep.subr.mxu0 0.0
    %3030 = vmatpush1.msra.mxu0 0.0
    %3031 = vmatprep.subr.mxu0 0.0
    %3032 = vmatpush1.msra.mxu0 0.0
    %3033 = vmatprep.subr.mxu0 0.0
    %3034 = vmatpush1.msra.mxu0 0.0
    %3035 = vmatprep.subr.mxu0 0.0
    %3036 = vmatpush1.msra.mxu0 0.0
    %3037 = vmatprep.subr.mxu0 0.0
    %3038 = vmatpush1.msra.mxu0 0.0
    %3039 = vmatprep.subr.mxu0 0.0
    %3040 = vmatpush1.msra.mxu0 0.0
    %3041 = vmatprep.subr.mxu0 0.0
    %3042 = vmatpush1.msra.mxu0 0.0
    %3043 = vmatprep.mubr.f32.mxu0 %v2387
    %3044 = vmatmul.mubr.f32.gmra.mrb[0].mxu0 %v2381
    %v3045 = vpop.f32.mrb[0].mxu0
    %v3046 = vadd.f32 0.0, %v3045
    %v3047 = vpop.f32.mrb[0].mxu0
    %3048 = vmatprep.mubr.f32.mxu0 %v2389
    %3049 = vmatmul.mubr.f32.gmra.mrb[0].mxu0 %v2380
    %v3050 = vpop.f32.mrb[0].mxu0
    %v3051 = vadd.f32 0.0, %v3050
    %v3052 = vpop.f32.mrb[0].mxu0
    %3053 = vdwg.mxu0
    %v3054 = vadd.f32 %v2949, %v3046
    %v3055 = vadd.f32 %v2954, %v3051
    %v3056 = vmax.f32 %v2761, %v3054
    %v3057 = vmax.f32 %v2762, %v3055
    %s3058 = scalar_lea.vmem %s3, 1512
    %v3059 = vld [vmem:[%s3058] sm:$0xff]
    %v3060 = vld [vmem:[%s3058 + $0x8] sm:$0xff]
    %v3061 = vld [vmem:[%s3058 + $0x10] sm:$0xff]
    %v3062 = vld [vmem:[%s3058 + $0x18] sm:$0xff]
    %v3063 = vld [vmem:[%s3058 + $0x20] sm:$0xff]
    %v3064 = vld [vmem:[%s3058 + $0x28] sm:$0xff]
    %v3065 = vld [vmem:[%s3058 + $0x30] sm:$0xff]
    %v3066 = vld [vmem:[%s3058 + $0x38] sm:$0xff]
    %v3067 = vld [vmem:[%s3058 + $0x40] sm:$0xff]
    %v3068 = vld [vmem:[%s3058 + $0x48] sm:$0xff]
    %v3069 = vld [vmem:[%s3058 + $0x50] sm:$0xff]
    %v3070 = vld [vmem:[%s3058 + $0x58] sm:$0xff]
    %v3071 = vld [vmem:[%s3058 + $0x60] sm:$0xff]
    %v3072 = vld [vmem:[%s3058 + $0x68] sm:$0xff]
    %v3073 = vld [vmem:[%s3058 + $0x70] sm:$0xff]
    %v3074 = vld [vmem:[%s3058 + $0x78] sm:$0xff]
    %v3075 = vld [vmem:[%s3058 + $0x80] sm:$0xff]
    %v3076 = vld [vmem:[%s3058 + $0x88] sm:$0xff]
    %v3077 = vld [vmem:[%s3058 + $0x90] sm:$0xff]
    %v3078 = vld [vmem:[%s3058 + $0x98] sm:$0xff]
    %v3079 = vld [vmem:[%s3058 + $0xa0] sm:$0xff]
    %s3080 = scalar_lea.vmem %s3, 1680
    %v3081 = vld [vmem:[%s3080] sm:$0xff]
    %v3082 = vld [vmem:[%s3080 + $0x8] sm:$0xff]
    %v3083 = vld [vmem:[%s3080 + $0x10] sm:$0xff]
    %v3084 = vld [vmem:[%s3080 + $0x18] sm:$0xff]
    %v3085 = vld [vmem:[%s3080 + $0x20] sm:$0xff]
    %v3086 = vld [vmem:[%s3080 + $0x28] sm:$0xff]
    %v3087 = vld [vmem:[%s3080 + $0x30] sm:$0xff]
    %v3088 = vld [vmem:[%s3080 + $0x38] sm:$0xff]
    %v3089 = vld [vmem:[%s3080 + $0x40] sm:$0xff]
    %v3090 = vld [vmem:[%s3080 + $0x48] sm:$0xff]
    %v3091 = vld [vmem:[%s3080 + $0x50] sm:$0xff]
    %v3092 = vld [vmem:[%s3080 + $0x58] sm:$0xff]
    %v3093 = vld [vmem:[%s3080 + $0x60] sm:$0xff]
    %v3094 = vld [vmem:[%s3080 + $0x68] sm:$0xff]
    %v3095 = vld [vmem:[%s3080 + $0x70] sm:$0xff]
    %v3096 = vld [vmem:[%s3080 + $0x78] sm:$0xff]
    %v3097 = vld [vmem:[%s3080 + $0x80] sm:$0xff]
    %v3098 = vld [vmem:[%s3080 + $0x88] sm:$0xff]
    %v3099 = vld [vmem:[%s3080 + $0x90] sm:$0xff]
    %v3100 = vld [vmem:[%s3080 + $0x98] sm:$0xff]
    %v3101 = vld [vmem:[%s3080 + $0xa0] sm:$0xff]
    %3102 = vmatprep.subr.mxu0 0.0
    %3103 = vmatpush1.msra.mxu0 %v3081
    %3104 = vmatprep.subr.mxu0 0.0
    %3105 = vmatpush1.msra.mxu0 %v3082
    %3106 = vmatprep.subr.mxu0 0.0
    %3107 = vmatpush1.msra.mxu0 %v3083
    %3108 = vmatprep.subr.mxu0 0.0
    %3109 = vmatpush1.msra.mxu0 %v3084
    %3110 = vmatprep.subr.mxu0 0.0
    %3111 = vmatpush1.msra.mxu0 %v3085
    %3112 = vmatprep.subr.mxu0 0.0
    %3113 = vmatpush1.msra.mxu0 %v3086
    %3114 = vmatprep.subr.mxu0 0.0
    %3115 = vmatpush1.msra.mxu0 %v3087
    %3116 = vmatprep.subr.mxu0 0.0
    %3117 = vmatpush1.msra.mxu0 %v3088
    %3118 = vmatprep.subr.mxu0 0.0
    %3119 = vmatpush1.msra.mxu0 %v3089
    %3120 = vmatprep.subr.mxu0 0.0
    %3121 = vmatpush1.msra.mxu0 %v3090
    %3122 = vmatprep.subr.mxu0 0.0
    %3123 = vmatpush1.msra.mxu0 %v3091
    %3124 = vmatprep.subr.mxu0 0.0
    %3125 = vmatpush1.msra.mxu0 %v3092
    %3126 = vmatprep.subr.mxu0 0.0
    %3127 = vmatpush1.msra.mxu0 %v3093
    %3128 = vmatprep.subr.mxu0 0.0
    %3129 = vmatpush1.msra.mxu0 %v3094
    %3130 = vmatprep.subr.mxu0 0.0
    %3131 = vmatpush1.msra.mxu0 %v3095
    %3132 = vmatprep.subr.mxu0 0.0
    %3133 = vmatpush1.msra.mxu0 %v3096
    %3134 = vmatprep.subr.mxu0 0.0
    %3135 = vmatpush1.msra.mxu0 %v3097
    %3136 = vmatprep.subr.mxu0 0.0
    %3137 = vmatpush1.msra.mxu0 %v3098
    %3138 = vmatprep.subr.mxu0 0.0
    %3139 = vmatpush1.msra.mxu0 %v3099
    %3140 = vmatprep.subr.mxu0 0.0
    %3141 = vmatpush1.msra.mxu0 %v3100
    %3142 = vmatprep.subr.mxu0 0.0
    %3143 = vmatpush1.msra.mxu0 %v3101
    %3144 = vmatprep.subr.mxu0 0.0
    %3145 = vmatpush1.msra.mxu0 0.0
    %3146 = vmatprep.subr.mxu0 0.0
    %3147 = vmatpush1.msra.mxu0 0.0
    %3148 = vmatprep.subr.mxu0 0.0
    %3149 = vmatpush1.msra.mxu0 0.0
    %3150 = vmatprep.subr.mxu0 0.0
    %3151 = vmatpush1.msra.mxu0 0.0
    %3152 = vmatprep.subr.mxu0 0.0
    %3153 = vmatpush1.msra.mxu0 0.0
    %3154 = vmatprep.subr.mxu0 0.0
    %3155 = vmatpush1.msra.mxu0 0.0
    %3156 = vmatprep.subr.mxu0 0.0
    %3157 = vmatpush1.msra.mxu0 0.0
    %3158 = vmatprep.subr.mxu0 0.0
    %3159 = vmatpush1.msra.mxu0 0.0
    %3160 = vmatprep.subr.mxu0 0.0
    %3161 = vmatpush1.msra.mxu0 0.0
    %3162 = vmatprep.subr.mxu0 0.0
    %3163 = vmatpush1.msra.mxu0 0.0
    %3164 = vmatprep.subr.mxu0 0.0
    %3165 = vmatpush1.msra.mxu0 0.0
    %3166 = vmatprep.mubr.f32.mxu0 %v2188
    %3167 = vmatmul.mubr.f32.gmra.mrb[0].mxu0 %v2182
    %v3168 = vpop.f32.mrb[0].mxu0
    %v3169 = vadd.f32 0.0, %v3168
    %v3170 = vpop.f32.mrb[0].mxu0
    %3171 = vmatprep.mubr.f32.mxu0 %v2190
    %3172 = vmatmul.mubr.f32.gmra.mrb[0].mxu0 %v2181
    %v3173 = vpop.f32.mrb[0].mxu0
    %v3174 = vadd.f32 0.0, %v3173
    %v3175 = vpop.f32.mrb[0].mxu0
    %3176 = vdwg.mxu0
    %3177 = vmatprep.subr.mxu0 0.0
    %3178 = vmatpush1.msra.mxu0 %v3059
    %3179 = vmatprep.subr.mxu0 0.0
    %3180 = vmatpush1.msra.mxu0 %v3060
    %3181 = vmatprep.subr.mxu0 0.0
    %3182 = vmatpush1.msra.mxu0 %v3061
    %3183 = vmatprep.subr.mxu0 0.0
    %3184 = vmatpush1.msra.mxu0 %v3062
    %3185 = vmatprep.subr.mxu0 0.0
    %3186 = vmatpush1.msra.mxu0 %v3063
    %3187 = vmatprep.subr.mxu0 0.0
    %3188 = vmatpush1.msra.mxu0 %v3064
    %3189 = vmatprep.subr.mxu0 0.0
    %3190 = vmatpush1.msra.mxu0 %v3065
    %3191 = vmatprep.subr.mxu0 0.0
    %3192 = vmatpush1.msra.mxu0 %v3066
    %3193 = vmatprep.subr.mxu0 0.0
    %3194 = vmatpush1.msra.mxu0 %v3067
    %3195 = vmatprep.subr.mxu0 0.0
    %3196 = vmatpush1.msra.mxu0 %v3068
    %3197 = vmatprep.subr.mxu0 0.0
    %3198 = vmatpush1.msra.mxu0 %v3069
    %3199 = vmatprep.subr.mxu0 0.0
    %3200 = vmatpush1.msra.mxu0 %v3070
    %3201 = vmatprep.subr.mxu0 0.0
    %3202 = vmatpush1.msra.mxu0 %v3071
    %3203 = vmatprep.subr.mxu0 0.0
    %3204 = vmatpush1.msra.mxu0 %v3072
    %3205 = vmatprep.subr.mxu0 0.0
    %3206 = vmatpush1.msra.mxu0 %v3073
    %3207 = vmatprep.subr.mxu0 0.0
    %3208 = vmatpush1.msra.mxu0 %v3074
    %3209 = vmatprep.subr.mxu0 0.0
    %3210 = vmatpush1.msra.mxu0 %v3075
    %3211 = vmatprep.subr.mxu0 0.0
    %3212 = vmatpush1.msra.mxu0 %v3076
    %3213 = vmatprep.subr.mxu0 0.0
    %3214 = vmatpush1.msra.mxu0 %v3077
    %3215 = vmatprep.subr.mxu0 0.0
    %3216 = vmatpush1.msra.mxu0 %v3078
    %3217 = vmatprep.subr.mxu0 0.0
    %3218 = vmatpush1.msra.mxu0 %v3079
    %3219 = vmatprep.subr.mxu0 0.0
    %3220 = vmatpush1.msra.mxu0 0.0
    %3221 = vmatprep.subr.mxu0 0.0
    %3222 = vmatpush1.msra.mxu0 0.0
    %3223 = vmatprep.subr.mxu0 0.0
    %3224 = vmatpush1.msra.mxu0 0.0
    %3225 = vmatprep.subr.mxu0 0.0
    %3226 = vmatpush1.msra.mxu0 0.0
    %3227 = vmatprep.subr.mxu0 0.0
    %3228 = vmatpush1.msra.mxu0 0.0
    %3229 = vmatprep.subr.mxu0 0.0
    %3230 = vmatpush1.msra.mxu0 0.0
    %3231 = vmatprep.subr.mxu0 0.0
    %3232 = vmatpush1.msra.mxu0 0.0
    %3233 = vmatprep.subr.mxu0 0.0
    %3234 = vmatpush1.msra.mxu0 0.0
    %3235 = vmatprep.subr.mxu0 0.0
    %3236 = vmatpush1.msra.mxu0 0.0
    %3237 = vmatprep.subr.mxu0 0.0
    %3238 = vmatpush1.msra.mxu0 0.0
    %3239 = vmatprep.subr.mxu0 0.0
    %3240 = vmatpush1.msra.mxu0 0.0
    %3241 = vmatprep.mubr.f32.mxu0 %v2268
    %3242 = vmatmul.mubr.f32.gmra.mrb[0].mxu0 %v2125
    %v3243 = vpop.f32.mrb[0].mxu0
    %v3244 = vadd.f32 %v3169, %v3243
    %v3245 = vpop.f32.mrb[0].mxu0
    %3246 = vmatprep.mubr.f32.mxu0 %v2271
    %3247 = vmatmul.mubr.f32.gmra.mrb[0].mxu0 %v2127
    %v3248 = vpop.f32.mrb[0].mxu0
    %v3249 = vadd.f32 %v3174, %v3248
    %v3250 = vpop.f32.mrb[0].mxu0
    %3251 = vdwg.mxu0
    %s3252 = scalar_lea.vmem %s3, 1848
    %v3253 = vld [vmem:[%s3252] sm:$0xff]
    %v3254 = vld [vmem:[%s3252 + $0x8] sm:$0xff]
    %v3255 = vld [vmem:[%s3252 + $0x10] sm:$0xff]
    %v3256 = vld [vmem:[%s3252 + $0x18] sm:$0xff]
    %v3257 = vld [vmem:[%s3252 + $0x20] sm:$0xff]
    %v3258 = vld [vmem:[%s3252 + $0x28] sm:$0xff]
    %v3259 = vld [vmem:[%s3252 + $0x30] sm:$0xff]
    %v3260 = vld [vmem:[%s3252 + $0x38] sm:$0xff]
    %v3261 = vld [vmem:[%s3252 + $0x40] sm:$0xff]
    %v3262 = vld [vmem:[%s3252 + $0x48] sm:$0xff]
    %v3263 = vld [vmem:[%s3252 + $0x50] sm:$0xff]
    %v3264 = vld [vmem:[%s3252 + $0x58] sm:$0xff]
    %v3265 = vld [vmem:[%s3252 + $0x60] sm:$0xff]
    %v3266 = vld [vmem:[%s3252 + $0x68] sm:$0xff]
    %v3267 = vld [vmem:[%s3252 + $0x70] sm:$0xff]
    %v3268 = vld [vmem:[%s3252 + $0x78] sm:$0xff]
    %v3269 = vld [vmem:[%s3252 + $0x80] sm:$0xff]
    %v3270 = vld [vmem:[%s3252 + $0x88] sm:$0xff]
    %v3271 = vld [vmem:[%s3252 + $0x90] sm:$0xff]
    %v3272 = vld [vmem:[%s3252 + $0x98] sm:$0xff]
    %v3273 = vld [vmem:[%s3252 + $0xa0] sm:$0xff]
    %3274 = vmatprep.subr.mxu0 0.0
    %3275 = vmatpush1.msra.mxu0 %v3253
    %3276 = vmatprep.subr.mxu0 0.0
    %3277 = vmatpush1.msra.mxu0 %v3254
    %3278 = vmatprep.subr.mxu0 0.0
    %3279 = vmatpush1.msra.mxu0 %v3255
    %3280 = vmatprep.subr.mxu0 0.0
    %3281 = vmatpush1.msra.mxu0 %v3256
    %3282 = vmatprep.subr.mxu0 0.0
    %3283 = vmatpush1.msra.mxu0 %v3257
    %3284 = vmatprep.subr.mxu0 0.0
    %3285 = vmatpush1.msra.mxu0 %v3258
    %3286 = vmatprep.subr.mxu0 0.0
    %3287 = vmatpush1.msra.mxu0 %v3259
    %3288 = vmatprep.subr.mxu0 0.0
    %3289 = vmatpush1.msra.mxu0 %v3260
    %3290 = vmatprep.subr.mxu0 0.0
    %3291 = vmatpush1.msra.mxu0 %v3261
    %3292 = vmatprep.subr.mxu0 0.0
    %3293 = vmatpush1.msra.mxu0 %v3262
    %3294 = vmatprep.subr.mxu0 0.0
    %3295 = vmatpush1.msra.mxu0 %v3263
    %3296 = vmatprep.subr.mxu0 0.0
    %3297 = vmatpush1.msra.mxu0 %v3264
    %3298 = vmatprep.subr.mxu0 0.0
    %3299 = vmatpush1.msra.mxu0 %v3265
    %3300 = vmatprep.subr.mxu0 0.0
    %3301 = vmatpush1.msra.mxu0 %v3266
    %3302 = vmatprep.subr.mxu0 0.0
    %3303 = vmatpush1.msra.mxu0 %v3267
    %3304 = vmatprep.subr.mxu0 0.0
    %3305 = vmatpush1.msra.mxu0 %v3268
    %3306 = vmatprep.subr.mxu0 0.0
    %3307 = vmatpush1.msra.mxu0 %v3269
    %3308 = vmatprep.subr.mxu0 0.0
    %3309 = vmatpush1.msra.mxu0 %v3270
    %3310 = vmatprep.subr.mxu0 0.0
    %3311 = vmatpush1.msra.mxu0 %v3271
    %3312 = vmatprep.subr.mxu0 0.0
    %3313 = vmatpush1.msra.mxu0 %v3272
    %3314 = vmatprep.subr.mxu0 0.0
    %3315 = vmatpush1.msra.mxu0 %v3273
    %3316 = vmatprep.subr.mxu0 0.0
    %3317 = vmatpush1.msra.mxu0 0.0
    %3318 = vmatprep.subr.mxu0 0.0
    %3319 = vmatpush1.msra.mxu0 0.0
    %3320 = vmatprep.subr.mxu0 0.0
    %3321 = vmatpush1.msra.mxu0 0.0
    %3322 = vmatprep.subr.mxu0 0.0
    %3323 = vmatpush1.msra.mxu0 0.0
    %3324 = vmatprep.subr.mxu0 0.0
    %3325 = vmatpush1.msra.mxu0 0.0
    %3326 = vmatprep.subr.mxu0 0.0
    %3327 = vmatpush1.msra.mxu0 0.0
    %3328 = vmatprep.subr.mxu0 0.0
    %3329 = vmatpush1.msra.mxu0 0.0
    %3330 = vmatprep.subr.mxu0 0.0
    %3331 = vmatpush1.msra.mxu0 0.0
    %3332 = vmatprep.subr.mxu0 0.0
    %3333 = vmatpush1.msra.mxu0 0.0
    %3334 = vmatprep.subr.mxu0 0.0
    %3335 = vmatpush1.msra.mxu0 0.0
    %3336 = vmatprep.subr.mxu0 0.0
    %3337 = vmatpush1.msra.mxu0 0.0
    %3338 = vmatprep.mubr.f32.mxu0 %v2387
    %3339 = vmatmul.mubr.f32.gmra.mrb[0].mxu0 %v2381
    %v3340 = vpop.f32.mrb[0].mxu0
    %v3341 = vadd.f32 0.0, %v3340
    %v3342 = vpop.f32.mrb[0].mxu0
    %3343 = vmatprep.mubr.f32.mxu0 %v2389
    %3344 = vmatmul.mubr.f32.gmra.mrb[0].mxu0 %v2380
    %v3345 = vpop.f32.mrb[0].mxu0
    %v3346 = vadd.f32 0.0, %v3345
    %v3347 = vpop.f32.mrb[0].mxu0
    %3348 = vdwg.mxu0
    %v3349 = vadd.f32 %v3244, %v3341
    %v3350 = vadd.f32 %v3249, %v3346
    %v3351 = vmax.f32 %v3056, %v3349
    %v3352 = vmax.f32 %v3057, %v3350
    %v3353 = vld [vmem:[%s4] sm:$0x1]
    %v3355 = vlaneseq
    %v3356 = vshrl.u32 %v3355, 7
    %v3357 = vsub.s32 0, %v3356
    %v3358 = vrot.slane %v3353, %v3357
    %v3360 = vadd.f32 %v3351, %v3358
    %v3361 = vadd.f32 %v3352, %v3358
    %v3362 = vmax.f32 %v3360, 0.0
    %v3363 = vmax.f32 %v3361, 0.0
    %v3364 = vlaneseq
    %v3365 = vshrl.u32 %v3364, 7
    %v3366 = vlaneseq
    %v3367 = vand.u32 %v3366, 127
    %v3368 = vmul.u32 %v3365, 8
    %v3369 = vsub.s32 %v3367, %v3368
    %vm3370 = vcmp.eq.s32.totalorder %v3369, 0
    %v3371 = vsel %vm3370, 1, 0
    %v3372 = vcvt.s32.f32 %v3371
    %vm3373 = vcmask 113664
    %v3375 = vsel %vm3373, %v3372, 0
    %v3378 = vsel %vm2378, %v3363, 0
    %3380 = vmatprep.subr.mxu0 0.0
    %3381 = vmatpush1.msra.mxu0 %v3362
    %3382 = vmatprep.subr.mxu0 0.0
    %3383 = vmatpush1.msra.mxu0 %v3378
    %3384 = vmatprep.subr.mxu0 0.0
    %3385 = vmatpush1.msra.mxu0 0.0
    %3386 = vmatprep.subr.mxu0 0.0
    %3387 = vmatpush1.msra.mxu0 0.0
    %3388 = vmatprep.subr.mxu0 0.0
    %3389 = vmatpush1.msra.mxu0 0.0
    %3390 = vmatprep.subr.mxu0 0.0
    %3391 = vmatpush1.msra.mxu0 0.0
    %3392 = vmatprep.subr.mxu0 0.0
    %3393 = vmatpush1.msra.mxu0 0.0
    %3394 = vmatprep.subr.mxu0 0.0
    %3395 = vmatpush1.msra.mxu0 0.0
    %3396 = vmatprep.subr.mxu0 0.0
    %3397 = vmatpush1.msra.mxu0 0.0
    %3398 = vmatprep.subr.mxu0 0.0
    %3399 = vmatpush1.msra.mxu0 0.0
    %3400 = vmatprep.subr.mxu0 0.0
    %3401 = vmatpush1.msra.mxu0 0.0
    %3402 = vmatprep.subr.mxu0 0.0
    %3403 = vmatpush1.msra.mxu0 0.0
    %3404 = vmatprep.subr.mxu0 0.0
    %3405 = vmatpush1.msra.mxu0 0.0
    %3406 = vmatprep.subr.mxu0 0.0
    %3407 = vmatpush1.msra.mxu0 0.0
    %3408 = vmatprep.subr.mxu0 0.0
    %3409 = vmatpush1.msra.mxu0 0.0
    %3410 = vmatprep.subr.mxu0 0.0
    %3411 = vmatpush1.msra.mxu0 0.0
    %3412 = vmatprep.subr.mxu0 0.0
    %3413 = vmatpush1.msra.mxu0 0.0
    %3414 = vmatprep.subr.mxu0 0.0
    %3415 = vmatpush1.msra.mxu0 0.0
    %3416 = vmatprep.subr.mxu0 0.0
    %3417 = vmatpush1.msra.mxu0 0.0
    %3418 = vmatprep.subr.mxu0 0.0
    %3419 = vmatpush1.msra.mxu0 0.0
    %3420 = vmatprep.subr.mxu0 0.0
    %3421 = vmatpush1.msra.mxu0 0.0
    %3422 = vmatprep.subr.mxu0 0.0
    %3423 = vmatpush1.msra.mxu0 0.0
    %3424 = vmatprep.subr.mxu0 0.0
    %3425 = vmatpush1.msra.mxu0 0.0
    %3426 = vmatprep.subr.mxu0 0.0
    %3427 = vmatpush1.msra.mxu0 0.0
    %3428 = vmatprep.subr.mxu0 0.0
    %3429 = vmatpush1.msra.mxu0 0.0
    %3430 = vmatprep.subr.mxu0 0.0
    %3431 = vmatpush1.msra.mxu0 0.0
    %3432 = vmatprep.subr.mxu0 0.0
    %3433 = vmatpush1.msra.mxu0 0.0
    %3434 = vmatprep.subr.mxu0 0.0
    %3435 = vmatpush1.msra.mxu0 0.0
    %3436 = vmatprep.subr.mxu0 0.0
    %3437 = vmatpush1.msra.mxu0 0.0
    %3438 = vmatprep.subr.mxu0 0.0
    %3439 = vmatpush1.msra.mxu0 0.0
    %3440 = vmatprep.subr.mxu0 0.0
    %3441 = vmatpush1.msra.mxu0 0.0
    %3442 = vmatprep.subr.mxu0 0.0
    %3443 = vmatpush1.msra.mxu0 0.0
    %3444 = vmatprep.mubr.f32.mxu0 0.0
    %3445 = vmatmul.mubr.f32.gmra.mrb[0].mxu0 %v3375
    %v3446 = vpop.f32.mrb[0].mxu0
    %v3447 = vadd.f32 0.0, %v3446
    %v3448 = vpop.f32.mrb[0].mxu0
    %3449 = vdwg.mxu0
    %v3450 = vld [vmem:[%s5] sm:$0xff]
    %v3451 = vld [vmem:[%s5 + $0x8] sm:$0xff]
    %v3452 = vld [vmem:[%s5 + $0x10] sm:$0xff]
    %v3453 = vld [vmem:[%s5 + $0x18] sm:$0xff]
    %v3454 = vld [vmem:[%s5 + $0x20] sm:$0xff]
    %v3455 = vld [vmem:[%s5 + $0x28] sm:$0xff]
    %v3456 = vld [vmem:[%s5 + $0x30] sm:$0xff]
    %v3457 = vld [vmem:[%s5 + $0x38] sm:$0xff]
    %v3458 = vld [vmem:[%s5 + $0x40] sm:$0xff]
    %v3459 = vld [vmem:[%s5 + $0x48] sm:$0xff]
    %v3460 = vld [vmem:[%s5 + $0x50] sm:$0xff]
    %v3461 = vld [vmem:[%s5 + $0x58] sm:$0xff]
    %v3462 = vld [vmem:[%s5 + $0x60] sm:$0xff]
    %v3463 = vld [vmem:[%s5 + $0x68] sm:$0xff]
    %v3464 = vld [vmem:[%s5 + $0x70] sm:$0xff]
    %v3465 = vld [vmem:[%s5 + $0x78] sm:$0xff]
    %v3466 = vld [vmem:[%s5 + $0x80] sm:$0xff]
    %v3467 = vld [vmem:[%s5 + $0x88] sm:$0xff]
    %v3468 = vld [vmem:[%s5 + $0x90] sm:$0xff]
    %v3469 = vld [vmem:[%s5 + $0x98] sm:$0xff]
    %vm3470 = vcmp.eq.s32.totalorder %v3369, 1
    %v3471 = vsel %vm3470, 1, 0
    %v3472 = vcvt.s32.f32 %v3471
    %v3474 = vsel %vm3373, %v3472, 0
    %3476 = vmatprep.subr.mxu0 0.0
    %3477 = vmatpush1.msra.mxu0 %v3362
    %3478 = vmatprep.subr.mxu0 0.0
    %3479 = vmatpush1.msra.mxu0 %v3378
    %3480 = vmatprep.subr.mxu0 0.0
    %3481 = vmatpush1.msra.mxu0 0.0
    %3482 = vmatprep.subr.mxu0 0.0
    %3483 = vmatpush1.msra.mxu0 0.0
    %3484 = vmatprep.subr.mxu0 0.0
    %3485 = vmatpush1.msra.mxu0 0.0
    %3486 = vmatprep.subr.mxu0 0.0
    %3487 = vmatpush1.msra.mxu0 0.0
    %3488 = vmatprep.subr.mxu0 0.0
    %3489 = vmatpush1.msra.mxu0 0.0
    %3490 = vmatprep.subr.mxu0 0.0
    %3491 = vmatpush1.msra.mxu0 0.0
    %3492 = vmatprep.subr.mxu0 0.0
    %3493 = vmatpush1.msra.mxu0 0.0
    %3494 = vmatprep.subr.mxu0 0.0
    %3495 = vmatpush1.msra.mxu0 0.0
    %3496 = vmatprep.subr.mxu0 0.0
    %3497 = vmatpush1.msra.mxu0 0.0
    %3498 = vmatprep.subr.mxu0 0.0
    %3499 = vmatpush1.msra.mxu0 0.0
    %3500 = vmatprep.subr.mxu0 0.0
    %3501 = vmatpush1.msra.mxu0 0.0
    %3502 = vmatprep.subr.mxu0 0.0
    %3503 = vmatpush1.msra.mxu0 0.0
    %3504 = vmatprep.subr.mxu0 0.0
    %3505 = vmatpush1.msra.mxu0 0.0
    %3506 = vmatprep.subr.mxu0 0.0
    %3507 = vmatpush1.msra.mxu0 0.0
    %3508 = vmatprep.subr.mxu0 0.0
    %3509 = vmatpush1.msra.mxu0 0.0
    %3510 = vmatprep.subr.mxu0 0.0
    %3511 = vmatpush1.msra.mxu0 0.0
    %3512 = vmatprep.subr.mxu0 0.0
    %3513 = vmatpush1.msra.mxu0 0.0
    %3514 = vmatprep.subr.mxu0 0.0
    %3515 = vmatpush1.msra.mxu0 0.0
    %3516 = vmatprep.subr.mxu0 0.0
    %3517 = vmatpush1.msra.mxu0 0.0
    %3518 = vmatprep.subr.mxu0 0.0
    %3519 = vmatpush1.msra.mxu0 0.0
    %3520 = vmatprep.subr.mxu0 0.0
    %3521 = vmatpush1.msra.mxu0 0.0
    %3522 = vmatprep.subr.mxu0 0.0
    %3523 = vmatpush1.msra.mxu0 0.0
    %3524 = vmatprep.subr.mxu0 0.0
    %3525 = vmatpush1.msra.mxu0 0.0
    %3526 = vmatprep.subr.mxu0 0.0
    %3527 = vmatpush1.msra.mxu0 0.0
    %3528 = vmatprep.subr.mxu0 0.0
    %3529 = vmatpush1.msra.mxu0 0.0
    %3530 = vmatprep.subr.mxu0 0.0
    %3531 = vmatpush1.msra.mxu0 0.0
    %3532 = vmatprep.subr.mxu0 0.0
    %3533 = vmatpush1.msra.mxu0 0.0
    %3534 = vmatprep.subr.mxu0 0.0
    %3535 = vmatpush1.msra.mxu0 0.0
    %3536 = vmatprep.subr.mxu0 0.0
    %3537 = vmatpush1.msra.mxu0 0.0
    %3538 = vmatprep.subr.mxu0 0.0
    %3539 = vmatpush1.msra.mxu0 0.0
    %3540 = vmatprep.mubr.f32.mxu0 0.0
    %3541 = vmatmul.mubr.f32.gmra.mrb[0].mxu0 %v3474
    %v3542 = vpop.f32.mrb[0].mxu0
    %v3543 = vadd.f32 0.0, %v3542
    %v3544 = vpop.f32.mrb[0].mxu0
    %3545 = vdwg.mxu0
    %s3546 = scalar_lea.vmem %s5, 160
    %v3547 = vld [vmem:[%s3546] sm:$0xff]
    %v3548 = vld [vmem:[%s3546 + $0x8] sm:$0xff]
    %v3549 = vld [vmem:[%s3546 + $0x10] sm:$0xff]
    %v3550 = vld [vmem:[%s3546 + $0x18] sm:$0xff]
    %v3551 = vld [vmem:[%s3546 + $0x20] sm:$0xff]
    %v3552 = vld [vmem:[%s3546 + $0x28] sm:$0xff]
    %v3553 = vld [vmem:[%s3546 + $0x30] sm:$0xff]
    %v3554 = vld [vmem:[%s3546 + $0x38] sm:$0xff]
    %v3555 = vld [vmem:[%s3546 + $0x40] sm:$0xff]
    %v3556 = vld [vmem:[%s3546 + $0x48] sm:$0xff]
    %v3557 = vld [vmem:[%s3546 + $0x50] sm:$0xff]
    %v3558 = vld [vmem:[%s3546 + $0x58] sm:$0xff]
    %v3559 = vld [vmem:[%s3546 + $0x60] sm:$0xff]
    %v3560 = vld [vmem:[%s3546 + $0x68] sm:$0xff]
    %v3561 = vld [vmem:[%s3546 + $0x70] sm:$0xff]
    %v3562 = vld [vmem:[%s3546 + $0x78] sm:$0xff]
    %v3563 = vld [vmem:[%s3546 + $0x80] sm:$0xff]
    %v3564 = vld [vmem:[%s3546 + $0x88] sm:$0xff]
    %v3565 = vld [vmem:[%s3546 + $0x90] sm:$0xff]
    %v3566 = vld [vmem:[%s3546 + $0x98] sm:$0xff]
    %vm3567 = vcmask 654336
    %v3569 = vsel %vm3567, %v3543, 0
    %3571 = vmatprep.subr.mxu0 %v3548
    %3572 = vmatpush1.msra.mxu0 %v3547
    %3573 = vmatprep.subr.mxu0 %v3550
    %3574 = vmatpush1.msra.mxu0 %v3549
    %3575 = vmatprep.subr.mxu0 %v3552
    %3576 = vmatpush1.msra.mxu0 %v3551
    %3577 = vmatprep.subr.mxu0 %v3554
    %3578 = vmatpush1.msra.mxu0 %v3553
    %3579 = vmatprep.subr.mxu0 %v3556
    %3580 = vmatpush1.msra.mxu0 %v3555
    %3581 = vmatprep.subr.mxu0 %v3558
    %3582 = vmatpush1.msra.mxu0 %v3557
    %3583 = vmatprep.subr.mxu0 %v3560
    %3584 = vmatpush1.msra.mxu0 %v3559
    %3585 = vmatprep.subr.mxu0 %v3562
    %3586 = vmatpush1.msra.mxu0 %v3561
    %3587 = vmatprep.subr.mxu0 %v3564
    %3588 = vmatpush1.msra.mxu0 %v3563
    %3589 = vmatprep.subr.mxu0 %v3566
    %3590 = vmatpush1.msra.mxu0 %v3565
    %3591 = vmatprep.subr.mxu0 0.0
    %3592 = vmatpush1.msra.mxu0 0.0
    %3593 = vmatprep.subr.mxu0 0.0
    %3594 = vmatpush1.msra.mxu0 0.0
    %3595 = vmatprep.subr.mxu0 0.0
    %3596 = vmatpush1.msra.mxu0 0.0
    %3597 = vmatprep.subr.mxu0 0.0
    %3598 = vmatpush1.msra.mxu0 0.0
    %3599 = vmatprep.subr.mxu0 0.0
    %3600 = vmatpush1.msra.mxu0 0.0
    %3601 = vmatprep.subr.mxu0 0.0
    %3602 = vmatpush1.msra.mxu0 0.0
    %3603 = vmatprep.subr.mxu0 0.0
    %3604 = vmatpush1.msra.mxu0 0.0
    %3605 = vmatprep.subr.mxu0 0.0
    %3606 = vmatpush1.msra.mxu0 0.0
    %3607 = vmatprep.subr.mxu0 0.0
    %3608 = vmatpush1.msra.mxu0 0.0
    %3609 = vmatprep.subr.mxu0 0.0
    %3610 = vmatpush1.msra.mxu0 0.0
    %3611 = vmatprep.subr.mxu0 0.0
    %3612 = vmatpush1.msra.mxu0 0.0
    %3613 = vmatprep.subr.mxu0 0.0
    %3614 = vmatpush1.msra.mxu0 0.0
    %3615 = vmatprep.subr.mxu0 0.0
    %3616 = vmatpush1.msra.mxu0 0.0
    %3617 = vmatprep.subr.mxu0 0.0
    %3618 = vmatpush1.msra.mxu0 0.0
    %3619 = vmatprep.subr.mxu0 0.0
    %3620 = vmatpush1.msra.mxu0 0.0
    %3621 = vmatprep.subr.mxu0 0.0
    %3622 = vmatpush1.msra.mxu0 0.0
    %3623 = vmatprep.subr.mxu0 0.0
    %3624 = vmatpush1.msra.mxu0 0.0
    %3625 = vmatprep.subr.mxu0 0.0
    %3626 = vmatpush1.msra.mxu0 0.0
    %3627 = vmatprep.subr.mxu0 0.0
    %3628 = vmatpush1.msra.mxu0 0.0
    %3629 = vmatprep.subr.mxu0 0.0
    %3630 = vmatpush1.msra.mxu0 0.0
    %3631 = vmatprep.subr.mxu0 0.0
    %3632 = vmatpush1.msra.mxu0 0.0
    %3633 = vmatprep.subr.mxu0 0.0
    %3634 = vmatpush1.msra.mxu0 0.0
    %3635 = vmatprep.mubr.f32.mxu0 0.0
    %3636 = vmatmul.mubr.f32.gmra.mrb[0].mxu0 %v3569
    %v3637 = vpop.f32.mrb[0].mxu0
    %v3638 = vadd.f32 0.0, %v3637
    %v3639 = vpop.f32.mrb[0].mxu0
    %v3640 = vadd.f32 0.0, %v3639
    %3641 = vdwg.mxu0
    %v3643 = vsel %vm3567, %v3447, 0
    %3645 = vmatprep.subr.mxu0 %v3451
    %3646 = vmatpush1.msra.mxu0 %v3450
    %3647 = vmatprep.subr.mxu0 %v3453
    %3648 = vmatpush1.msra.mxu0 %v3452
    %3649 = vmatprep.subr.mxu0 %v3455
    %3650 = vmatpush1.msra.mxu0 %v3454
    %3651 = vmatprep.subr.mxu0 %v3457
    %3652 = vmatpush1.msra.mxu0 %v3456
    %3653 = vmatprep.subr.mxu0 %v3459
    %3654 = vmatpush1.msra.mxu0 %v3458
    %3655 = vmatprep.subr.mxu0 %v3461
    %3656 = vmatpush1.msra.mxu0 %v3460
    %3657 = vmatprep.subr.mxu0 %v3463
    %3658 = vmatpush1.msra.mxu0 %v3462
    %3659 = vmatprep.subr.mxu0 %v3465
    %3660 = vmatpush1.msra.mxu0 %v3464
    %3661 = vmatprep.subr.mxu0 %v3467
    %3662 = vmatpush1.msra.mxu0 %v3466
    %3663 = vmatprep.subr.mxu0 %v3469
    %3664 = vmatpush1.msra.mxu0 %v3468
    %3665 = vmatprep.subr.mxu0 0.0
    %3666 = vmatpush1.msra.mxu0 0.0
    %3667 = vmatprep.subr.mxu0 0.0
    %3668 = vmatpush1.msra.mxu0 0.0
    %3669 = vmatprep.subr.mxu0 0.0
    %3670 = vmatpush1.msra.mxu0 0.0
    %3671 = vmatprep.subr.mxu0 0.0
    %3672 = vmatpush1.msra.mxu0 0.0
    %3673 = vmatprep.subr.mxu0 0.0
    %3674 = vmatpush1.msra.mxu0 0.0
    %3675 = vmatprep.subr.mxu0 0.0
    %3676 = vmatpush1.msra.mxu0 0.0
    %3677 = vmatprep.subr.mxu0 0.0
    %3678 = vmatpush1.msra.mxu0 0.0
    %3679 = vmatprep.subr.mxu0 0.0
    %3680 = vmatpush1.msra.mxu0 0.0
    %3681 = vmatprep.subr.mxu0 0.0
    %3682 = vmatpush1.msra.mxu0 0.0
    %3683 = vmatprep.subr.mxu0 0.0
    %3684 = vmatpush1.msra.mxu0 0.0
    %3685 = vmatprep.subr.mxu0 0.0
    %3686 = vmatpush1.msra.mxu0 0.0
    %3687 = vmatprep.subr.mxu0 0.0
    %3688 = vmatpush1.msra.mxu0 0.0
    %3689 = vmatprep.subr.mxu0 0.0
    %3690 = vmatpush1.msra.mxu0 0.0
    %3691 = vmatprep.subr.mxu0 0.0
    %3692 = vmatpush1.msra.mxu0 0.0
    %3693 = vmatprep.subr.mxu0 0.0
    %3694 = vmatpush1.msra.mxu0 0.0
    %3695 = vmatprep.subr.mxu0 0.0
    %3696 = vmatpush1.msra.mxu0 0.0
    %3697 = vmatprep.subr.mxu0 0.0
    %3698 = vmatpush1.msra.mxu0 0.0
    %3699 = vmatprep.subr.mxu0 0.0
    %3700 = vmatpush1.msra.mxu0 0.0
    %3701 = vmatprep.subr.mxu0 0.0
    %3702 = vmatpush1.msra.mxu0 0.0
    %3703 = vmatprep.subr.mxu0 0.0
    %3704 = vmatpush1.msra.mxu0 0.0
    %3705 = vmatprep.subr.mxu0 0.0
    %3706 = vmatpush1.msra.mxu0 0.0
    %3707 = vmatprep.subr.mxu0 0.0
    %3708 = vmatpush1.msra.mxu0 0.0
    %3709 = vmatprep.mubr.f32.mxu0 0.0
    %3710 = vmatmul.mubr.f32.gmra.mrb[0].mxu0 %v3643
    %v3711 = vpop.f32.mrb[0].mxu0
    %v3712 = vadd.f32 %v3638, %v3711
    %v3713 = vpop.f32.mrb[0].mxu0
    %v3714 = vadd.f32 %v3640, %v3713
    %3715 = vdwg.mxu0
    %vm3716 = vcmp.eq.s32.totalorder %v3369, 2
    %v3717 = vsel %vm3716, 1, 0
    %v3718 = vcvt.s32.f32 %v3717
    %v3720 = vsel %vm3373, %v3718, 0
    %3722 = vmatprep.subr.mxu0 0.0
    %3723 = vmatpush1.msra.mxu0 %v3362
    %3724 = vmatprep.subr.mxu0 0.0
    %3725 = vmatpush1.msra.mxu0 %v3378
    %3726 = vmatprep.subr.mxu0 0.0
    %3727 = vmatpush1.msra.mxu0 0.0
    %3728 = vmatprep.subr.mxu0 0.0
    %3729 = vmatpush1.msra.mxu0 0.0
    %3730 = vmatprep.subr.mxu0 0.0
    %3731 = vmatpush1.msra.mxu0 0.0
    %3732 = vmatprep.subr.mxu0 0.0
    %3733 = vmatpush1.msra.mxu0 0.0
    %3734 = vmatprep.subr.mxu0 0.0
    %3735 = vmatpush1.msra.mxu0 0.0
    %3736 = vmatprep.subr.mxu0 0.0
    %3737 = vmatpush1.msra.mxu0 0.0
    %3738 = vmatprep.subr.mxu0 0.0
    %3739 = vmatpush1.msra.mxu0 0.0
    %3740 = vmatprep.subr.mxu0 0.0
    %3741 = vmatpush1.msra.mxu0 0.0
    %3742 = vmatprep.subr.mxu0 0.0
    %3743 = vmatpush1.msra.mxu0 0.0
    %3744 = vmatprep.subr.mxu0 0.0
    %3745 = vmatpush1.msra.mxu0 0.0
    %3746 = vmatprep.subr.mxu0 0.0
    %3747 = vmatpush1.msra.mxu0 0.0
    %3748 = vmatprep.subr.mxu0 0.0
    %3749 = vmatpush1.msra.mxu0 0.0
    %3750 = vmatprep.subr.mxu0 0.0
    %3751 = vmatpush1.msra.mxu0 0.0
    %3752 = vmatprep.subr.mxu0 0.0
    %3753 = vmatpush1.msra.mxu0 0.0
    %3754 = vmatprep.subr.mxu0 0.0
    %3755 = vmatpush1.msra.mxu0 0.0
    %3756 = vmatprep.subr.mxu0 0.0
    %3757 = vmatpush1.msra.mxu0 0.0
    %3758 = vmatprep.subr.mxu0 0.0
    %3759 = vmatpush1.msra.mxu0 0.0
    %3760 = vmatprep.subr.mxu0 0.0
    %3761 = vmatpush1.msra.mxu0 0.0
    %3762 = vmatprep.subr.mxu0 0.0
    %3763 = vmatpush1.msra.mxu0 0.0
    %3764 = vmatprep.subr.mxu0 0.0
    %3765 = vmatpush1.msra.mxu0 0.0
    %3766 = vmatprep.subr.mxu0 0.0
    %3767 = vmatpush1.msra.mxu0 0.0
    %3768 = vmatprep.subr.mxu0 0.0
    %3769 = vmatpush1.msra.mxu0 0.0
    %3770 = vmatprep.subr.mxu0 0.0
    %3771 = vmatpush1.msra.mxu0 0.0
    %3772 = vmatprep.subr.mxu0 0.0
    %3773 = vmatpush1.msra.mxu0 0.0
    %3774 = vmatprep.subr.mxu0 0.0
    %3775 = vmatpush1.msra.mxu0 0.0
    %3776 = vmatprep.subr.mxu0 0.0
    %3777 = vmatpush1.msra.mxu0 0.0
    %3778 = vmatprep.subr.mxu0 0.0
    %3779 = vmatpush1.msra.mxu0 0.0
    %3780 = vmatprep.subr.mxu0 0.0
    %3781 = vmatpush1.msra.mxu0 0.0
    %3782 = vmatprep.subr.mxu0 0.0
    %3783 = vmatpush1.msra.mxu0 0.0
    %3784 = vmatprep.subr.mxu0 0.0
    %3785 = vmatpush1.msra.mxu0 0.0
    %3786 = vmatprep.mubr.f32.mxu0 0.0
    %3787 = vmatmul.mubr.f32.gmra.mrb[0].mxu0 %v3720
    %v3788 = vpop.f32.mrb[0].mxu0
    %v3789 = vadd.f32 0.0, %v3788
    %v3790 = vpop.f32.mrb[0].mxu0
    %3791 = vdwg.mxu0
    %s3792 = scalar_lea.vmem %s5, 320
    %v3793 = vld [vmem:[%s3792] sm:$0xff]
    %v3794 = vld [vmem:[%s3792 + $0x8] sm:$0xff]
    %v3795 = vld [vmem:[%s3792 + $0x10] sm:$0xff]
    %v3796 = vld [vmem:[%s3792 + $0x18] sm:$0xff]
    %v3797 = vld [vmem:[%s3792 + $0x20] sm:$0xff]
    %v3798 = vld [vmem:[%s3792 + $0x28] sm:$0xff]
    %v3799 = vld [vmem:[%s3792 + $0x30] sm:$0xff]
    %v3800 = vld [vmem:[%s3792 + $0x38] sm:$0xff]
    %v3801 = vld [vmem:[%s3792 + $0x40] sm:$0xff]
    %v3802 = vld [vmem:[%s3792 + $0x48] sm:$0xff]
    %v3803 = vld [vmem:[%s3792 + $0x50] sm:$0xff]
    %v3804 = vld [vmem:[%s3792 + $0x58] sm:$0xff]
    %v3805 = vld [vmem:[%s3792 + $0x60] sm:$0xff]
    %v3806 = vld [vmem:[%s3792 + $0x68] sm:$0xff]
    %v3807 = vld [vmem:[%s3792 + $0x70] sm:$0xff]
    %v3808 = vld [vmem:[%s3792 + $0x78] sm:$0xff]
    %v3809 = vld [vmem:[%s3792 + $0x80] sm:$0xff]
    %v3810 = vld [vmem:[%s3792 + $0x88] sm:$0xff]
    %v3811 = vld [vmem:[%s3792 + $0x90] sm:$0xff]
    %v3812 = vld [vmem:[%s3792 + $0x98] sm:$0xff]
    %v3814 = vsel %vm3567, %v3789, 0
    %3816 = vmatprep.subr.mxu0 %v3794
    %3817 = vmatpush1.msra.mxu0 %v3793
    %3818 = vmatprep.subr.mxu0 %v3796
    %3819 = vmatpush1.msra.mxu0 %v3795
    %3820 = vmatprep.subr.mxu0 %v3798
    %3821 = vmatpush1.msra.mxu0 %v3797
    %3822 = vmatprep.subr.mxu0 %v3800
    %3823 = vmatpush1.msra.mxu0 %v3799
    %3824 = vmatprep.subr.mxu0 %v3802
    %3825 = vmatpush1.msra.mxu0 %v3801
    %3826 = vmatprep.subr.mxu0 %v3804
    %3827 = vmatpush1.msra.mxu0 %v3803
    %3828 = vmatprep.subr.mxu0 %v3806
    %3829 = vmatpush1.msra.mxu0 %v3805
    %3830 = vmatprep.subr.mxu0 %v3808
    %3831 = vmatpush1.msra.mxu0 %v3807
    %3832 = vmatprep.subr.mxu0 %v3810
    %3833 = vmatpush1.msra.mxu0 %v3809
    %3834 = vmatprep.subr.mxu0 %v3812
    %3835 = vmatpush1.msra.mxu0 %v3811
    %3836 = vmatprep.subr.mxu0 0.0
    %3837 = vmatpush1.msra.mxu0 0.0
    %3838 = vmatprep.subr.mxu0 0.0
    %3839 = vmatpush1.msra.mxu0 0.0
    %3840 = vmatprep.subr.mxu0 0.0
    %3841 = vmatpush1.msra.mxu0 0.0
    %3842 = vmatprep.subr.mxu0 0.0
    %3843 = vmatpush1.msra.mxu0 0.0
    %3844 = vmatprep.subr.mxu0 0.0
    %3845 = vmatpush1.msra.mxu0 0.0
    %3846 = vmatprep.subr.mxu0 0.0
    %3847 = vmatpush1.msra.mxu0 0.0
    %3848 = vmatprep.subr.mxu0 0.0
    %3849 = vmatpush1.msra.mxu0 0.0
    %3850 = vmatprep.subr.mxu0 0.0
    %3851 = vmatpush1.msra.mxu0 0.0
    %3852 = vmatprep.subr.mxu0 0.0
    %3853 = vmatpush1.msra.mxu0 0.0
    %3854 = vmatprep.subr.mxu0 0.0
    %3855 = vmatpush1.msra.mxu0 0.0
    %3856 = vmatprep.subr.mxu0 0.0
    %3857 = vmatpush1.msra.mxu0 0.0
    %3858 = vmatprep.subr.mxu0 0.0
    %3859 = vmatpush1.msra.mxu0 0.0
    %3860 = vmatprep.subr.mxu0 0.0
    %3861 = vmatpush1.msra.mxu0 0.0
    %3862 = vmatprep.subr.mxu0 0.0
    %3863 = vmatpush1.msra.mxu0 0.0
    %3864 = vmatprep.subr.mxu0 0.0
    %3865 = vmatpush1.msra.mxu0 0.0
    %3866 = vmatprep.subr.mxu0 0.0
    %3867 = vmatpush1.msra.mxu0 0.0
    %3868 = vmatprep.subr.mxu0 0.0
    %3869 = vmatpush1.msra.mxu0 0.0
    %3870 = vmatprep.subr.mxu0 0.0
    %3871 = vmatpush1.msra.mxu0 0.0
    %3872 = vmatprep.subr.mxu0 0.0
    %3873 = vmatpush1.msra.mxu0 0.0
    %3874 = vmatprep.subr.mxu0 0.0
    %3875 = vmatpush1.msra.mxu0 0.0
    %3876 = vmatprep.subr.mxu0 0.0
    %3877 = vmatpush1.msra.mxu0 0.0
    %3878 = vmatprep.subr.mxu0 0.0
    %3879 = vmatpush1.msra.mxu0 0.0
    %3880 = vmatprep.mubr.f32.mxu0 0.0
    %3881 = vmatmul.mubr.f32.gmra.mrb[0].mxu0 %v3814
    %v3882 = vpop.f32.mrb[0].mxu0
    %v3883 = vadd.f32 0.0, %v3882
    %v3884 = vpop.f32.mrb[0].mxu0
    %v3885 = vadd.f32 0.0, %v3884
    %3886 = vdwg.mxu0
    %v3887 = vadd.f32 %v3712, %v3883
    %v3888 = vadd.f32 %v3714, %v3885
    %vm3889 = vcmp.eq.s32.totalorder %v3369, 3
    %v3890 = vsel %vm3889, 1, 0
    %v3891 = vcvt.s32.f32 %v3890
    %v3893 = vsel %vm3373, %v3891, 0
    %3895 = vmatprep.subr.mxu0 0.0
    %3896 = vmatpush1.msra.mxu0 %v3362
    %3897 = vmatprep.subr.mxu0 0.0
    %3898 = vmatpush1.msra.mxu0 %v3378
    %3899 = vmatprep.subr.mxu0 0.0
    %3900 = vmatpush1.msra.mxu0 0.0
    %3901 = vmatprep.subr.mxu0 0.0
    %3902 = vmatpush1.msra.mxu0 0.0
    %3903 = vmatprep.subr.mxu0 0.0
    %3904 = vmatpush1.msra.mxu0 0.0
    %3905 = vmatprep.subr.mxu0 0.0
    %3906 = vmatpush1.msra.mxu0 0.0
    %3907 = vmatprep.subr.mxu0 0.0
    %3908 = vmatpush1.msra.mxu0 0.0
    %3909 = vmatprep.subr.mxu0 0.0
    %3910 = vmatpush1.msra.mxu0 0.0
    %3911 = vmatprep.subr.mxu0 0.0
    %3912 = vmatpush1.msra.mxu0 0.0
    %3913 = vmatprep.subr.mxu0 0.0
    %3914 = vmatpush1.msra.mxu0 0.0
    %3915 = vmatprep.subr.mxu0 0.0
    %3916 = vmatpush1.msra.mxu0 0.0
    %3917 = vmatprep.subr.mxu0 0.0
    %3918 = vmatpush1.msra.mxu0 0.0
    %3919 = vmatprep.subr.mxu0 0.0
    %3920 = vmatpush1.msra.mxu0 0.0
    %3921 = vmatprep.subr.mxu0 0.0
    %3922 = vmatpush1.msra.mxu0 0.0
    %3923 = vmatprep.subr.mxu0 0.0
    %3924 = vmatpush1.msra.mxu0 0.0
    %3925 = vmatprep.subr.mxu0 0.0
    %3926 = vmatpush1.msra.mxu0 0.0
    %3927 = vmatprep.subr.mxu0 0.0
    %3928 = vmatpush1.msra.mxu0 0.0
    %3929 = vmatprep.subr.mxu0 0.0
    %3930 = vmatpush1.msra.mxu0 0.0
    %3931 = vmatprep.subr.mxu0 0.0
    %3932 = vmatpush1.msra.mxu0 0.0
    %3933 = vmatprep.subr.mxu0 0.0
    %3934 = vmatpush1.msra.mxu0 0.0
    %3935 = vmatprep.subr.mxu0 0.0
    %3936 = vmatpush1.msra.mxu0 0.0
    %3937 = vmatprep.subr.mxu0 0.0
    %3938 = vmatpush1.msra.mxu0 0.0
    %3939 = vmatprep.subr.mxu0 0.0
    %3940 = vmatpush1.msra.mxu0 0.0
    %3941 = vmatprep.subr.mxu0 0.0
    %3942 = vmatpush1.msra.mxu0 0.0
    %3943 = vmatprep.subr.mxu0 0.0
    %3944 = vmatpush1.msra.mxu0 0.0
    %3945 = vmatprep.subr.mxu0 0.0
    %3946 = vmatpush1.msra.mxu0 0.0
    %3947 = vmatprep.subr.mxu0 0.0
    %3948 = vmatpush1.msra.mxu0 0.0
    %3949 = vmatprep.subr.mxu0 0.0
    %3950 = vmatpush1.msra.mxu0 0.0
    %3951 = vmatprep.subr.mxu0 0.0
    %3952 = vmatpush1.msra.mxu0 0.0
    %3953 = vmatprep.subr.mxu0 0.0
    %3954 = vmatpush1.msra.mxu0 0.0
    %3955 = vmatprep.subr.mxu0 0.0
    %3956 = vmatpush1.msra.mxu0 0.0
    %3957 = vmatprep.subr.mxu0 0.0
    %3958 = vmatpush1.msra.mxu0 0.0
    %3959 = vmatprep.mubr.f32.mxu0 0.0
    %3960 = vmatmul.mubr.f32.gmra.mrb[0].mxu0 %v3893
    %v3961 = vpop.f32.mrb[0].mxu0
    %v3962 = vadd.f32 0.0, %v3961
    %v3963 = vpop.f32.mrb[0].mxu0
    %3964 = vdwg.mxu0
    %s3965 = scalar_lea.vmem %s5, 480
    %v3966 = vld [vmem:[%s3965] sm:$0xff]
    %v3967 = vld [vmem:[%s3965 + $0x8] sm:$0xff]
    %v3968 = vld [vmem:[%s3965 + $0x10] sm:$0xff]
    %v3969 = vld [vmem:[%s3965 + $0x18] sm:$0xff]
    %v3970 = vld [vmem:[%s3965 + $0x20] sm:$0xff]
    %v3971 = vld [vmem:[%s3965 + $0x28] sm:$0xff]
    %v3972 = vld [vmem:[%s3965 + $0x30] sm:$0xff]
    %v3973 = vld [vmem:[%s3965 + $0x38] sm:$0xff]
    %v3974 = vld [vmem:[%s3965 + $0x40] sm:$0xff]
    %v3975 = vld [vmem:[%s3965 + $0x48] sm:$0xff]
    %v3976 = vld [vmem:[%s3965 + $0x50] sm:$0xff]
    %v3977 = vld [vmem:[%s3965 + $0x58] sm:$0xff]
    %v3978 = vld [vmem:[%s3965 + $0x60] sm:$0xff]
    %v3979 = vld [vmem:[%s3965 + $0x68] sm:$0xff]
    %v3980 = vld [vmem:[%s3965 + $0x70] sm:$0xff]
    %v3981 = vld [vmem:[%s3965 + $0x78] sm:$0xff]
    %v3982 = vld [vmem:[%s3965 + $0x80] sm:$0xff]
    %v3983 = vld [vmem:[%s3965 + $0x88] sm:$0xff]
    %v3984 = vld [vmem:[%s3965 + $0x90] sm:$0xff]
    %v3985 = vld [vmem:[%s3965 + $0x98] sm:$0xff]
    %v3987 = vsel %vm3567, %v3962, 0
    %3989 = vmatprep.subr.mxu0 %v3967
    %3990 = vmatpush1.msra.mxu0 %v3966
    %3991 = vmatprep.subr.mxu0 %v3969
    %3992 = vmatpush1.msra.mxu0 %v3968
    %3993 = vmatprep.subr.mxu0 %v3971
    %3994 = vmatpush1.msra.mxu0 %v3970
    %3995 = vmatprep.subr.mxu0 %v3973
    %3996 = vmatpush1.msra.mxu0 %v3972
    %3997 = vmatprep.subr.mxu0 %v3975
    %3998 = vmatpush1.msra.mxu0 %v3974
    %3999 = vmatprep.subr.mxu0 %v3977
    %4000 = vmatpush1.msra.mxu0 %v3976
    %4001 = vmatprep.subr.mxu0 %v3979
    %4002 = vmatpush1.msra.mxu0 %v3978
    %4003 = vmatprep.subr.mxu0 %v3981
    %4004 = vmatpush1.msra.mxu0 %v3980
    %4005 = vmatprep.subr.mxu0 %v3983
    %4006 = vmatpush1.msra.mxu0 %v3982
    %4007 = vmatprep.subr.mxu0 %v3985
    %4008 = vmatpush1.msra.mxu0 %v3984
    %4009 = vmatprep.subr.mxu0 0.0
    %4010 = vmatpush1.msra.mxu0 0.0
    %4011 = vmatprep.subr.mxu0 0.0
    %4012 = vmatpush1.msra.mxu0 0.0
    %4013 = vmatprep.subr.mxu0 0.0
    %4014 = vmatpush1.msra.mxu0 0.0
    %4015 = vmatprep.subr.mxu0 0.0
    %4016 = vmatpush1.msra.mxu0 0.0
    %4017 = vmatprep.subr.mxu0 0.0
    %4018 = vmatpush1.msra.mxu0 0.0
    %4019 = vmatprep.subr.mxu0 0.0
    %4020 = vmatpush1.msra.mxu0 0.0
    %4021 = vmatprep.subr.mxu0 0.0
    %4022 = vmatpush1.msra.mxu0 0.0
    %4023 = vmatprep.subr.mxu0 0.0
    %4024 = vmatpush1.msra.mxu0 0.0
    %4025 = vmatprep.subr.mxu0 0.0
    %4026 = vmatpush1.msra.mxu0 0.0
    %4027 = vmatprep.subr.mxu0 0.0
    %4028 = vmatpush1.msra.mxu0 0.0
    %4029 = vmatprep.subr.mxu0 0.0
    %4030 = vmatpush1.msra.mxu0 0.0
    %4031 = vmatprep.subr.mxu0 0.0
    %4032 = vmatpush1.msra.mxu0 0.0
    %4033 = vmatprep.subr.mxu0 0.0
    %4034 = vmatpush1.msra.mxu0 0.0
    %4035 = vmatprep.subr.mxu0 0.0
    %4036 = vmatpush1.msra.mxu0 0.0
    %4037 = vmatprep.subr.mxu0 0.0
    %4038 = vmatpush1.msra.mxu0 0.0
    %4039 = vmatprep.subr.mxu0 0.0
    %4040 = vmatpush1.msra.mxu0 0.0
    %4041 = vmatprep.subr.mxu0 0.0
    %4042 = vmatpush1.msra.mxu0 0.0
    %4043 = vmatprep.subr.mxu0 0.0
    %4044 = vmatpush1.msra.mxu0 0.0
    %4045 = vmatprep.subr.mxu0 0.0
    %4046 = vmatpush1.msra.mxu0 0.0
    %4047 = vmatprep.subr.mxu0 0.0
    %4048 = vmatpush1.msra.mxu0 0.0
    %4049 = vmatprep.subr.mxu0 0.0
    %4050 = vmatpush1.msra.mxu0 0.0
    %4051 = vmatprep.subr.mxu0 0.0
    %4052 = vmatpush1.msra.mxu0 0.0
    %4053 = vmatprep.mubr.f32.mxu0 0.0
    %4054 = vmatmul.mubr.f32.gmra.mrb[0].mxu0 %v3987
    %v4055 = vpop.f32.mrb[0].mxu0
    %v4056 = vadd.f32 0.0, %v4055
    %v4057 = vpop.f32.mrb[0].mxu0
    %v4058 = vadd.f32 0.0, %v4057
    %4059 = vdwg.mxu0
    %v4060 = vadd.f32 %v3887, %v4056
    %v4061 = vadd.f32 %v3888, %v4058
    %vm4062 = vcmp.eq.s32.totalorder %v3369, 4
    %v4063 = vsel %vm4062, 1, 0
    %v4064 = vcvt.s32.f32 %v4063
    %v4066 = vsel %vm3373, %v4064, 0
    %4068 = vmatprep.subr.mxu0 0.0
    %4069 = vmatpush1.msra.mxu0 %v3362
    %4070 = vmatprep.subr.mxu0 0.0
    %4071 = vmatpush1.msra.mxu0 %v3378
    %4072 = vmatprep.subr.mxu0 0.0
    %4073 = vmatpush1.msra.mxu0 0.0
    %4074 = vmatprep.subr.mxu0 0.0
    %4075 = vmatpush1.msra.mxu0 0.0
    %4076 = vmatprep.subr.mxu0 0.0
    %4077 = vmatpush1.msra.mxu0 0.0
    %4078 = vmatprep.subr.mxu0 0.0
    %4079 = vmatpush1.msra.mxu0 0.0
    %4080 = vmatprep.subr.mxu0 0.0
    %4081 = vmatpush1.msra.mxu0 0.0
    %4082 = vmatprep.subr.mxu0 0.0
    %4083 = vmatpush1.msra.mxu0 0.0
    %4084 = vmatprep.subr.mxu0 0.0
    %4085 = vmatpush1.msra.mxu0 0.0
    %4086 = vmatprep.subr.mxu0 0.0
    %4087 = vmatpush1.msra.mxu0 0.0
    %4088 = vmatprep.subr.mxu0 0.0
    %4089 = vmatpush1.msra.mxu0 0.0
    %4090 = vmatprep.subr.mxu0 0.0
    %4091 = vmatpush1.msra.mxu0 0.0
    %4092 = vmatprep.subr.mxu0 0.0
    %4093 = vmatpush1.msra.mxu0 0.0
    %4094 = vmatprep.subr.mxu0 0.0
    %4095 = vmatpush1.msra.mxu0 0.0
    %4096 = vmatprep.subr.mxu0 0.0
    %4097 = vmatpush1.msra.mxu0 0.0
    %4098 = vmatprep.subr.mxu0 0.0
    %4099 = vmatpush1.msra.mxu0 0.0
    %4100 = vmatprep.subr.mxu0 0.0
    %4101 = vmatpush1.msra.mxu0 0.0
    %4102 = vmatprep.subr.mxu0 0.0
    %4103 = vmatpush1.msra.mxu0 0.0
    %4104 = vmatprep.subr.mxu0 0.0
    %4105 = vmatpush1.msra.mxu0 0.0
    %4106 = vmatprep.subr.mxu0 0.0
    %4107 = vmatpush1.msra.mxu0 0.0
    %4108 = vmatprep.subr.mxu0 0.0
    %4109 = vmatpush1.msra.mxu0 0.0
    %4110 = vmatprep.subr.mxu0 0.0
    %4111 = vmatpush1.msra.mxu0 0.0
    %4112 = vmatprep.subr.mxu0 0.0
    %4113 = vmatpush1.msra.mxu0 0.0
    %4114 = vmatprep.subr.mxu0 0.0
    %4115 = vmatpush1.msra.mxu0 0.0
    %4116 = vmatprep.subr.mxu0 0.0
    %4117 = vmatpush1.msra.mxu0 0.0
    %4118 = vmatprep.subr.mxu0 0.0
    %4119 = vmatpush1.msra.mxu0 0.0
    %4120 = vmatprep.subr.mxu0 0.0
    %4121 = vmatpush1.msra.mxu0 0.0
    %4122 = vmatprep.subr.mxu0 0.0
    %4123 = vmatpush1.msra.mxu0 0.0
    %4124 = vmatprep.subr.mxu0 0.0
    %4125 = vmatpush1.msra.mxu0 0.0
    %4126 = vmatprep.subr.mxu0 0.0
    %4127 = vmatpush1.msra.mxu0 0.0
    %4128 = vmatprep.subr.mxu0 0.0
    %4129 = vmatpush1.msra.mxu0 0.0
    %4130 = vmatprep.subr.mxu0 0.0
    %4131 = vmatpush1.msra.mxu0 0.0
    %4132 = vmatprep.mubr.f32.mxu0 0.0
    %4133 = vmatmul.mubr.f32.gmra.mrb[0].mxu0 %v4066
    %v4134 = vpop.f32.mrb[0].mxu0
    %v4135 = vadd.f32 0.0, %v4134
    %v4136 = vpop.f32.mrb[0].mxu0
    %4137 = vdwg.mxu0
    %s4138 = scalar_lea.vmem %s5, 640
    %v4139 = vld [vmem:[%s4138] sm:$0xff]
    %v4140 = vld [vmem:[%s4138 + $0x8] sm:$0xff]
    %v4141 = vld [vmem:[%s4138 + $0x10] sm:$0xff]
    %v4142 = vld [vmem:[%s4138 + $0x18] sm:$0xff]
    %v4143 = vld [vmem:[%s4138 + $0x20] sm:$0xff]
    %v4144 = vld [vmem:[%s4138 + $0x28] sm:$0xff]
    %v4145 = vld [vmem:[%s4138 + $0x30] sm:$0xff]
    %v4146 = vld [vmem:[%s4138 + $0x38] sm:$0xff]
    %v4147 = vld [vmem:[%s4138 + $0x40] sm:$0xff]
    %v4148 = vld [vmem:[%s4138 + $0x48] sm:$0xff]
    %v4149 = vld [vmem:[%s4138 + $0x50] sm:$0xff]
    %v4150 = vld [vmem:[%s4138 + $0x58] sm:$0xff]
    %v4151 = vld [vmem:[%s4138 + $0x60] sm:$0xff]
    %v4152 = vld [vmem:[%s4138 + $0x68] sm:$0xff]
    %v4153 = vld [vmem:[%s4138 + $0x70] sm:$0xff]
    %v4154 = vld [vmem:[%s4138 + $0x78] sm:$0xff]
    %v4155 = vld [vmem:[%s4138 + $0x80] sm:$0xff]
    %v4156 = vld [vmem:[%s4138 + $0x88] sm:$0xff]
    %v4157 = vld [vmem:[%s4138 + $0x90] sm:$0xff]
    %v4158 = vld [vmem:[%s4138 + $0x98] sm:$0xff]
    %v4160 = vsel %vm3567, %v4135, 0
    %4162 = vmatprep.subr.mxu0 %v4140
    %4163 = vmatpush1.msra.mxu0 %v4139
    %4164 = vmatprep.subr.mxu0 %v4142
    %4165 = vmatpush1.msra.mxu0 %v4141
    %4166 = vmatprep.subr.mxu0 %v4144
    %4167 = vmatpush1.msra.mxu0 %v4143
    %4168 = vmatprep.subr.mxu0 %v4146
    %4169 = vmatpush1.msra.mxu0 %v4145
    %4170 = vmatprep.subr.mxu0 %v4148
    %4171 = vmatpush1.msra.mxu0 %v4147
    %4172 = vmatprep.subr.mxu0 %v4150
    %4173 = vmatpush1.msra.mxu0 %v4149
    %4174 = vmatprep.subr.mxu0 %v4152
    %4175 = vmatpush1.msra.mxu0 %v4151
    %4176 = vmatprep.subr.mxu0 %v4154
    %4177 = vmatpush1.msra.mxu0 %v4153
    %4178 = vmatprep.subr.mxu0 %v4156
    %4179 = vmatpush1.msra.mxu0 %v4155
    %4180 = vmatprep.subr.mxu0 %v4158
    %4181 = vmatpush1.msra.mxu0 %v4157
    %4182 = vmatprep.subr.mxu0 0.0
    %4183 = vmatpush1.msra.mxu0 0.0
    %4184 = vmatprep.subr.mxu0 0.0
    %4185 = vmatpush1.msra.mxu0 0.0
    %4186 = vmatprep.subr.mxu0 0.0
    %4187 = vmatpush1.msra.mxu0 0.0
    %4188 = vmatprep.subr.mxu0 0.0
    %4189 = vmatpush1.msra.mxu0 0.0
    %4190 = vmatprep.subr.mxu0 0.0
    %4191 = vmatpush1.msra.mxu0 0.0
    %4192 = vmatprep.subr.mxu0 0.0
    %4193 = vmatpush1.msra.mxu0 0.0
    %4194 = vmatprep.subr.mxu0 0.0
    %4195 = vmatpush1.msra.mxu0 0.0
    %4196 = vmatprep.subr.mxu0 0.0
    %4197 = vmatpush1.msra.mxu0 0.0
    %4198 = vmatprep.subr.mxu0 0.0
    %4199 = vmatpush1.msra.mxu0 0.0
    %4200 = vmatprep.subr.mxu0 0.0
    %4201 = vmatpush1.msra.mxu0 0.0
    %4202 = vmatprep.subr.mxu0 0.0
    %4203 = vmatpush1.msra.mxu0 0.0
    %4204 = vmatprep.subr.mxu0 0.0
    %4205 = vmatpush1.msra.mxu0 0.0
    %4206 = vmatprep.subr.mxu0 0.0
    %4207 = vmatpush1.msra.mxu0 0.0
    %4208 = vmatprep.subr.mxu0 0.0
    %4209 = vmatpush1.msra.mxu0 0.0
    %4210 = vmatprep.subr.mxu0 0.0
    %4211 = vmatpush1.msra.mxu0 0.0
    %4212 = vmatprep.subr.mxu0 0.0
    %4213 = vmatpush1.msra.mxu0 0.0
    %4214 = vmatprep.subr.mxu0 0.0
    %4215 = vmatpush1.msra.mxu0 0.0
    %4216 = vmatprep.subr.mxu0 0.0
    %4217 = vmatpush1.msra.mxu0 0.0
    %4218 = vmatprep.subr.mxu0 0.0
    %4219 = vmatpush1.msra.mxu0 0.0
    %4220 = vmatprep.subr.mxu0 0.0
    %4221 = vmatpush1.msra.mxu0 0.0
    %4222 = vmatprep.subr.mxu0 0.0
    %4223 = vmatpush1.msra.mxu0 0.0
    %4224 = vmatprep.subr.mxu0 0.0
    %4225 = vmatpush1.msra.mxu0 0.0
    %4226 = vmatprep.mubr.f32.mxu0 0.0
    %4227 = vmatmul.mubr.f32.gmra.mrb[0].mxu0 %v4160
    %v4228 = vpop.f32.mrb[0].mxu0
    %v4229 = vadd.f32 0.0, %v4228
    %v4230 = vpop.f32.mrb[0].mxu0
    %v4231 = vadd.f32 0.0, %v4230
    %4232 = vdwg.mxu0
    %v4233 = vadd.f32 %v4060, %v4229
    %v4234 = vadd.f32 %v4061, %v4231
    %v4235 = vld [vmem:[%s6] sm:$0x3]
    %v4237 = vlaneseq
    %v4238 = vshrl.u32 %v4237, 7
    %v4239 = vsub.s32 0, %v4238
    %v4240 = vrot.slane %v4235, %v4239
    %v4241 = vlaneseq
    %v4242 = vshrl.u32 %v4241, 7
    %v4243 = vsub.s32 1, %v4242
    %v4244 = vrot.slane %v4235, %v4243
    %v4247 = vadd.f32 %v4233, %v4240
    %v4248 = vadd.f32 %v4234, %v4244
    %v4249 = vmax.f32 %v4247, 0.0
    %v4250 = vmax.f32 %v4248, 0.0
    %v4251 = vld [vmem:[%s7] sm:$0xff]
    %v4252 = vld [vmem:[%s7 + $0x8] sm:$0xff]
    %v4253 = vld [vmem:[%s7 + $0x10] sm:$0xff]
    %v4254 = vld [vmem:[%s7 + $0x18] sm:$0xff]
    %v4255 = vld [vmem:[%s7 + $0x20] sm:$0xff]
    %v4256 = vld [vmem:[%s7 + $0x28] sm:$0xff]
    %v4257 = vld [vmem:[%s7 + $0x30] sm:$0xff]
    %v4258 = vld [vmem:[%s7 + $0x38] sm:$0xff]
    %v4259 = vld [vmem:[%s7 + $0x40] sm:$0xff]
    %v4260 = vld [vmem:[%s7 + $0x48] sm:$0xff]
    %v4261 = vld [vmem:[%s7 + $0x50] sm:$0xff]
    %v4262 = vld [vmem:[%s7 + $0x58] sm:$0xff]
    %v4263 = vld [vmem:[%s7 + $0x60] sm:$0xff]
    %v4264 = vld [vmem:[%s7 + $0x68] sm:$0xff]
    %v4265 = vld [vmem:[%s7 + $0x70] sm:$0xff]
    %v4266 = vld [vmem:[%s7 + $0x78] sm:$0xff]
    %v4267 = vld [vmem:[%s7 + $0x80] sm:$0xff]
    %v4268 = vld [vmem:[%s7 + $0x88] sm:$0xff]
    %v4269 = vld [vmem:[%s7 + $0x90] sm:$0xff]
    %v4270 = vld [vmem:[%s7 + $0x98] sm:$0xff]
    %v4271 = vld [vmem:[%s7 + $0xa0] sm:$0xff]
    %v4272 = vld [vmem:[%s7 + $0xa8] sm:$0xff]
    %v4273 = vld [vmem:[%s7 + $0xb0] sm:$0xff]
    %v4274 = vld [vmem:[%s7 + $0xb8] sm:$0xff]
    %v4275 = vld [vmem:[%s7 + $0xc0] sm:$0xff]
    %v4276 = vld [vmem:[%s7 + $0xc8] sm:$0xff]
    %v4277 = vld [vmem:[%s7 + $0xd0] sm:$0xff]
    %v4278 = vld [vmem:[%s7 + $0xd8] sm:$0xff]
    %v4279 = vld [vmem:[%s7 + $0xe0] sm:$0xff]
    %v4280 = vld [vmem:[%s7 + $0xe8] sm:$0xff]
    %v4281 = vld [vmem:[%s7 + $0xf0] sm:$0xff]
    %v4282 = vld [vmem:[%s7 + $0xf8] sm:$0xff]
    %v4283 = vld [vmem:[%s8] sm:$0x1]
    %v4285 = vlaneseq
    %v4286 = vshrl.u32 %v4285, 7
    %v4287 = vsub.s32 0, %v4286
    %v4288 = vrot.slane %v4283, %v4287
    %4290 = vmatprep.subr.mxu0 0.0
    %4291 = vmatpush1.msra.mxu0 %v4251
    %4292 = vmatprep.subr.mxu0 0.0
    %4293 = vmatpush1.msra.mxu0 %v4252
    %4294 = vmatprep.subr.mxu0 0.0
    %4295 = vmatpush1.msra.mxu0 %v4253
    %4296 = vmatprep.subr.mxu0 0.0
    %4297 = vmatpush1.msra.mxu0 %v4254
    %4298 = vmatprep.subr.mxu0 0.0
    %4299 = vmatpush1.msra.mxu0 %v4255
    %4300 = vmatprep.subr.mxu0 0.0
    %4301 = vmatpush1.msra.mxu0 %v4256
    %4302 = vmatprep.subr.mxu0 0.0
    %4303 = vmatpush1.msra.mxu0 %v4257
    %4304 = vmatprep.subr.mxu0 0.0
    %4305 = vmatpush1.msra.mxu0 %v4258
    %4306 = vmatprep.subr.mxu0 0.0
    %4307 = vmatpush1.msra.mxu0 %v4259
    %4308 = vmatprep.subr.mxu0 0.0
    %4309 = vmatpush1.msra.mxu0 %v4260
    %4310 = vmatprep.subr.mxu0 0.0
    %4311 = vmatpush1.msra.mxu0 %v4261
    %4312 = vmatprep.subr.mxu0 0.0
    %4313 = vmatpush1.msra.mxu0 %v4262
    %4314 = vmatprep.subr.mxu0 0.0
    %4315 = vmatpush1.msra.mxu0 %v4263
    %4316 = vmatprep.subr.mxu0 0.0
    %4317 = vmatpush1.msra.mxu0 %v4264
    %4318 = vmatprep.subr.mxu0 0.0
    %4319 = vmatpush1.msra.mxu0 %v4265
    %4320 = vmatprep.subr.mxu0 0.0
    %4321 = vmatpush1.msra.mxu0 %v4266
    %4322 = vmatprep.subr.mxu0 0.0
    %4323 = vmatpush1.msra.mxu0 %v4267
    %4324 = vmatprep.subr.mxu0 0.0
    %4325 = vmatpush1.msra.mxu0 %v4268
    %4326 = vmatprep.subr.mxu0 0.0
    %4327 = vmatpush1.msra.mxu0 %v4269
    %4328 = vmatprep.subr.mxu0 0.0
    %4329 = vmatpush1.msra.mxu0 %v4270
    %4330 = vmatprep.subr.mxu0 0.0
    %4331 = vmatpush1.msra.mxu0 %v4271
    %4332 = vmatprep.subr.mxu0 0.0
    %4333 = vmatpush1.msra.mxu0 %v4272
    %4334 = vmatprep.subr.mxu0 0.0
    %4335 = vmatpush1.msra.mxu0 %v4273
    %4336 = vmatprep.subr.mxu0 0.0
    %4337 = vmatpush1.msra.mxu0 %v4274
    %4338 = vmatprep.subr.mxu0 0.0
    %4339 = vmatpush1.msra.mxu0 %v4275
    %4340 = vmatprep.subr.mxu0 0.0
    %4341 = vmatpush1.msra.mxu0 %v4276
    %4342 = vmatprep.subr.mxu0 0.0
    %4343 = vmatpush1.msra.mxu0 %v4277
    %4344 = vmatprep.subr.mxu0 0.0
    %4345 = vmatpush1.msra.mxu0 %v4278
    %4346 = vmatprep.subr.mxu0 0.0
    %4347 = vmatpush1.msra.mxu0 %v4279
    %4348 = vmatprep.subr.mxu0 0.0
    %4349 = vmatpush1.msra.mxu0 %v4280
    %4350 = vmatprep.subr.mxu0 0.0
    %4351 = vmatpush1.msra.mxu0 %v4281
    %4352 = vmatprep.subr.mxu0 0.0
    %4353 = vmatpush1.msra.mxu0 %v4282
    %4354 = vmatprep.mubr.f32.mxu0 %v4250
    %4355 = vmatmul.mubr.f32.gmra.mrb[0].mxu0 %v4249
    %v4356 = vpop.f32.mrb[0].mxu0
    %v4357 = vadd.f32 %v4288, %v4356
    %v4358 = vpop.f32.mrb[0].mxu0
    %4359 = vdwg.mxu0
    %v4360 = vmax.f32 %v4357, 0.0
    %v4361 = vld [vmem:[%s9] sm:$0xff]
    %v4362 = vld [vmem:[%s9 + $0x8] sm:$0xff]
    %v4363 = vld [vmem:[%s9 + $0x10] sm:$0xff]
    %v4364 = vld [vmem:[%s9 + $0x18] sm:$0xff]
    %v4365 = vld [vmem:[%s9 + $0x20] sm:$0xff]
    %v4366 = vld [vmem:[%s9 + $0x28] sm:$0xff]
    %v4367 = vld [vmem:[%s9 + $0x30] sm:$0xff]
    %v4368 = vld [vmem:[%s9 + $0x38] sm:$0xff]
    %v4369 = vld [vmem:[%s9 + $0x40] sm:$0xff]
    %v4370 = vld [vmem:[%s9 + $0x48] sm:$0xff]
    %v4371 = vld [vmem:[%s9 + $0x50] sm:$0xff]
    %v4372 = vld [vmem:[%s9 + $0x58] sm:$0xff]
    %v4373 = vld [vmem:[%s9 + $0x60] sm:$0xff]
    %v4374 = vld [vmem:[%s9 + $0x68] sm:$0xff]
    %v4375 = vld [vmem:[%s9 + $0x70] sm:$0xff]
    %v4376 = vld [vmem:[%s9 + $0x78] sm:$0xff]
    %v4377 = vld [vmem:[%s10] sm:$0x1]
    %v4379 = vlaneseq
    %v4380 = vshrl.u32 %v4379, 7
    %v4381 = vsub.s32 0, %v4380
    %v4382 = vrot.slane %v4377, %v4381
    %4384 = vmatprep.subr.mxu0 0.0
    %4385 = vmatpush1.msra.mxu0 %v4361
    %4386 = vmatprep.subr.mxu0 0.0
    %4387 = vmatpush1.msra.mxu0 %v4362
    %4388 = vmatprep.subr.mxu0 0.0
    %4389 = vmatpush1.msra.mxu0 %v4363
    %4390 = vmatprep.subr.mxu0 0.0
    %4391 = vmatpush1.msra.mxu0 %v4364
    %4392 = vmatprep.subr.mxu0 0.0
    %4393 = vmatpush1.msra.mxu0 %v4365
    %4394 = vmatprep.subr.mxu0 0.0
    %4395 = vmatpush1.msra.mxu0 %v4366
    %4396 = vmatprep.subr.mxu0 0.0
    %4397 = vmatpush1.msra.mxu0 %v4367
    %4398 = vmatprep.subr.mxu0 0.0
    %4399 = vmatpush1.msra.mxu0 %v4368
    %4400 = vmatprep.subr.mxu0 0.0
    %4401 = vmatpush1.msra.mxu0 %v4369
    %4402 = vmatprep.subr.mxu0 0.0
    %4403 = vmatpush1.msra.mxu0 %v4370
    %4404 = vmatprep.subr.mxu0 0.0
    %4405 = vmatpush1.msra.mxu0 %v4371
    %4406 = vmatprep.subr.mxu0 0.0
    %4407 = vmatpush1.msra.mxu0 %v4372
    %4408 = vmatprep.subr.mxu0 0.0
    %4409 = vmatpush1.msra.mxu0 %v4373
    %4410 = vmatprep.subr.mxu0 0.0
    %4411 = vmatpush1.msra.mxu0 %v4374
    %4412 = vmatprep.subr.mxu0 0.0
    %4413 = vmatpush1.msra.mxu0 %v4375
    %4414 = vmatprep.subr.mxu0 0.0
    %4415 = vmatpush1.msra.mxu0 %v4376
    %4416 = vmatprep.subr.mxu0 0.0
    %4417 = vmatpush1.msra.mxu0 0.0
    %4418 = vmatprep.subr.mxu0 0.0
    %4419 = vmatpush1.msra.mxu0 0.0
    %4420 = vmatprep.subr.mxu0 0.0
    %4421 = vmatpush1.msra.mxu0 0.0
    %4422 = vmatprep.subr.mxu0 0.0
    %4423 = vmatpush1.msra.mxu0 0.0
    %4424 = vmatprep.subr.mxu0 0.0
    %4425 = vmatpush1.msra.mxu0 0.0
    %4426 = vmatprep.subr.mxu0 0.0
    %4427 = vmatpush1.msra.mxu0 0.0
    %4428 = vmatprep.subr.mxu0 0.0
    %4429 = vmatpush1.msra.mxu0 0.0
    %4430 = vmatprep.subr.mxu0 0.0
    %4431 = vmatpush1.msra.mxu0 0.0
    %4432 = vmatprep.subr.mxu0 0.0
    %4433 = vmatpush1.msra.mxu0 0.0
    %4434 = vmatprep.subr.mxu0 0.0
    %4435 = vmatpush1.msra.mxu0 0.0
    %4436 = vmatprep.subr.mxu0 0.0
    %4437 = vmatpush1.msra.mxu0 0.0
    %4438 = vmatprep.subr.mxu0 0.0
    %4439 = vmatpush1.msra.mxu0 0.0
    %4440 = vmatprep.subr.mxu0 0.0
    %4441 = vmatpush1.msra.mxu0 0.0
    %4442 = vmatprep.subr.mxu0 0.0
    %4443 = vmatpush1.msra.mxu0 0.0
    %4444 = vmatprep.subr.mxu0 0.0
    %4445 = vmatpush1.msra.mxu0 0.0
    %4446 = vmatprep.subr.mxu0 0.0
    %4447 = vmatpush1.msra.mxu0 0.0
    %4448 = vmatprep.mubr.f32.mxu0 0.0
    %4449 = vmatmul.mubr.f32.gmra.mrb[0].mxu0 %v4360
    %v4450 = vpop.f32.mrb[0].mxu0
    %v4451 = vadd.f32 %v4382, %v4450
    %v4452 = vpop.f32.mrb[0].mxu0
    %4453 = vdwg.mxu0
    %vm4454 = vcmask 812032
    %4455 = vst.msk [vmem:[#allocation3] sm:$0x3] %vm4454, %v4451
    // Predicated region
    $region46: #{trash_forward.1} parent=1 // pred_check
      _
    $region47: #{trash_forward.1} parent=1 // pred_check_branch
      %4457 = sbr.rel (0) target = $region49
    $region48: #{trash_forward.1} parent=1 // pred_region
      %s4459 = ssub.s32 32, 32
      %4460 = vsyncadd [#allocation4], %s4459
      %s4462 = sshll.u32 [#allocation3], 4
      %s4463 = int_to_ptr.vmem [resolvable:$true] %s4462
      %4465 = dma.vmem_to_hbm [thread:$0]  %s4463, 32, %s11, [#allocation4]
    $region49: #{trash_forward.1} parent=1 // pred_fallthru
      _
    // Predicated region
    $region50: #{trash_forward.1} parent=1 // pred_check
      _
    $region51: #{trash_forward.1} parent=1 // pred_check_branch
      %4467 = sbr.rel (0) target = $region53
    $region52: #{trash_forward.1} parent=1 // pred_region
      %4468 = dma.done [#allocation4], 32
    $region53: #{trash_forward.1} parent=1 // pred_fallthru
      _
    %4469 = vsyncpa [#allocation4], 1

</llo_original>
